<compile_context>
chip_gen: v5e
topology: v5e:2x2
jax: 0.10.0
libtpu: 0.0.40
codegen_flags: <defaults>
</compile_context>

<pallas_src>
import jax
import jax.numpy as jnp
from jax.experimental import pallas as pl
from jax.experimental.pallas import tpu as pltpu

_F32 = jnp.float32
_VMEM = pl.BlockSpec(memory_space=pltpu.MemorySpace.VMEM)


def _round_up(x, m):
    return (x + m - 1) // m * m


# ------------------------- shared attention body ----------------------------

def _attend(y, T, n, wp, bp, ctx):
    """HAN-style attention pooling.  y: (T*n, H2), t-major.  Returns (n, H2)."""
    u = jnp.tanh(jnp.dot(y, wp, preferred_element_type=_F32) + bp)   # 1 big matmul
    s = jnp.dot(u, ctx, preferred_element_type=_F32)                 # (T*n, 1)
    s_t = [s[t * n:(t + 1) * n] for t in range(T)]                   # static slices
    m = s_t[0]
    for t in range(1, T):
        m = jnp.maximum(m, s_t[t])
    e_t = [jnp.exp(v - m) for v in s_t]
    denom = e_t[0]
    for t in range(1, T):
        denom = denom + e_t[t]
    inv = pl.reciprocal(denom, approx=True)
    pooled = (e_t[0] * inv) * y[0:n, :]
    for t in range(1, T):
        pooled = pooled + (e_t[t] * inv) * y[t * n:(t + 1) * n, :]
    return pooled


# ----------------------------- Pallas kernels -------------------------------

def _make_bilstm_kernel(T, bn, H, pool, imp):
    """Fused BiLSTM (+ optional attention pooling + optional importance head).

    Per batch block of bn rows: x (T*bn, Din) t-major, fused gate weights
    wih (Din,4H), whh (H,4H), bias (1,4H) (b_ih+b_hh), PyTorch gate order
    (i|f|g|o).  Writes y (T*bn, 2H) = [h_fwd || h_bwd].
    """
    H2 = 2 * H

    def kernel(*refs):
        if pool and imp:
            (x_ref, wihf_ref, whhf_ref, bf_ref, wihb_ref, whhb_ref, bb_ref,
             wp_ref, bp_ref, ctx_ref, wi_ref, bi_ref,
             pooled_ref, imp_ref, y_ref) = refs
        elif pool:
            (x_ref, wihf_ref, whhf_ref, bf_ref, wihb_ref, whhb_ref, bb_ref,
             wp_ref, bp_ref, ctx_ref, pooled_ref, y_ref) = refs
        else:
            (x_ref, wihf_ref, whhf_ref, bf_ref, wihb_ref, whhb_ref, bb_ref,
             y_ref) = refs

        # Hoisted input projection: one matmul per direction, biases folded in
        # once; only h @ Whh remains on the serial critical path.
        x = x_ref[...]                                              # (T*bn, Din)
        xw_f = jnp.dot(x, wihf_ref[...], preferred_element_type=_F32) + bf_ref[...]
        xw_b = jnp.dot(x, wihb_ref[...], preferred_element_type=_F32) + bb_ref[...]
        whh_f = whhf_ref[...]
        whh_b = whhb_ref[...]

        hf = jnp.zeros((bn, H), _F32)
        cf = jnp.zeros((bn, H), _F32)
        hb = jnp.zeros((bn, H), _F32)
        cb = jnp.zeros((bn, H), _F32)

        # Statically unrolled timestep loop; fwd & bwd interleaved so the
        # scheduler can overlap one direction's EUP with the other's MXU.
        for t in range(T):
            tr = T - 1 - t
            gf = xw_f[t * bn:(t + 1) * bn] + jnp.dot(
                hf, whh_f, preferred_element_type=_F32)             # (bn, 4H)
            gb = xw_b[tr * bn:(tr + 1) * bn] + jnp.dot(
                hb, whh_b, preferred_element_type=_F32)
            sf = jax.nn.sigmoid(gf)                                 # whole 4H slab
            sb = jax.nn.sigmoid(gb)
            cf = sf[:, H:2 * H] * cf + sf[:, 0:H] * jnp.tanh(gf[:, 2 * H:3 * H])
            cb = sb[:, H:2 * H] * cb + sb[:, 0:H] * jnp.tanh(gb[:, 2 * H:3 * H])
            hf = sf[:, 3 * H:4 * H] * jnp.tanh(cf)
            hb = sb[:, 3 * H:4 * H] * jnp.tanh(cb)
            y_ref[t * bn:(t + 1) * bn, 0:H] = hf
            y_ref[tr * bn:(tr + 1) * bn, H:H2] = hb

        if not pool:
            return

        pooled = _attend(y_ref[...], T, bn,
                         wp_ref[...], bp_ref[...], ctx_ref[...])
        pooled_ref[...] = pooled
        if imp:
            imp_ref[...] = jax.nn.sigmoid(
                jnp.dot(pooled, wi_ref[...], preferred_element_type=_F32)
                + bi_ref[...])

    return kernel


def _make_attn_kernel(T, n, imp):
    """Standalone attention pooling (+ optional importance head) on (T*n, H2)."""
    def kernel(*refs):
        if imp:
            (y_ref, wp_ref, bp_ref, ctx_ref, wi_ref, bi_ref,
             pooled_ref, imp_ref) = refs
        else:
            y_ref, wp_ref, bp_ref, ctx_ref, pooled_ref = refs
        pooled = _attend(y_ref[...], T, n,
                         wp_ref[...], bp_ref[...], ctx_ref[...])
        pooled_ref[...] = pooled
        if imp:
            imp_ref[...] = jax.nn.sigmoid(
                jnp.dot(pooled, wi_ref[...], preferred_element_type=_F32)
                + bi_ref[...])
    return kernel


# ----------------------------- kernel wrappers -------------------------------

def _pick_blocks(N):
    # Two blocks when worthwhile so v7x's 2 TensorCores both get work;
    # block size kept sublane-aligned (multiple of 8).
    G = 2 if N > 8 else 1
    bn = _round_up(-(-N // G), 8)
    return G, bn


def _block_layout(x_ntd, G, bn):
    """(N, T, D) batch-major -> (G*T*bn, D), t-major within each N-block."""
    N, T, D = x_ntd.shape
    Np = G * bn
    if Np != N:
        x_ntd = jnp.pad(x_ntd, ((0, Np - N), (0, 0), (0, 0)))
    return x_ntd.reshape(G, bn, T, D).transpose(0, 2, 1, 3).reshape(G * T * bn, D)


def bilstm_attn_pool(x_ntd, lstm_p, attn_p, imp_p=None):
    """Fused BiLSTM + attention pooling (+ optional sigmoid importance head).

    x_ntd: (N, T, Din) batch-major.  Returns pooled (N, 2H) [, importance (N, 1)].
    """
    N, T, Din = x_ntd.shape
    H = lstm_p['whh_f'].shape[0]
    H2 = 2 * H
    G, bn = _pick_blocks(N)
    Np = G * bn
    xb = _block_layout(x_ntd, G, bn)

    with_imp = imp_p is not None
    weights = [lstm_p['wih_f'], lstm_p['whh_f'], lstm_p['b_f'],
               lstm_p['wih_b'], lstm_p['whh_b'], lstm_p['b_b'],
               attn_p['w'], attn_p['b'], attn_p['ctx']]
    if with_imp:
        weights += [imp_p['w'], imp_p['b']]

    in_specs = ([pl.BlockSpec((T * bn, Din), lambda g: (g, 0))]
                + [pl.BlockSpec(w.shape, lambda g: (0, 0)) for w in weights])
    out_shape = [jax.ShapeDtypeStruct((Np, H2), _F32)]
    out_specs = [pl.BlockSpec((bn, H2), lambda g: (g, 0))]
    if with_imp:
        out_shape.append(jax.ShapeDtypeStruct((Np, 1), _F32))
        out_specs.append(pl.BlockSpec((bn, 1), lambda g: (g, 0)))

    outs = pl.pallas_call(
        _make_bilstm_kernel(T, bn, H, pool=True, imp=with_imp),
        out_shape=tuple(out_shape),
        grid_spec=pltpu.PrefetchScalarGridSpec(
            num_scalar_prefetch=0, grid=(G,),
            in_specs=in_specs, out_specs=tuple(out_specs),
            scratch_shapes=[pltpu.VMEM((T * bn, H2), _F32)]),
        compiler_params=pltpu.CompilerParams(dimension_semantics=("parallel",)),
    )(xb, *weights)

    if with_imp:
        return outs[0][:N], outs[1][:N]
    return outs[0][:N]


def bilstm_seq(x_ntd, lstm_p):
    """BiLSTM only (full output sequence).  x: (N, T, Din) -> y: (N, T, 2H)."""
    N, T, Din = x_ntd.shape
    H = lstm_p['whh_f'].shape[0]
    H2 = 2 * H
    G, bn = _pick_blocks(N)
    Np = G * bn
    xb = _block_layout(x_ntd, G, bn)
    weights = [lstm_p['wih_f'], lstm_p['whh_f'], lstm_p['b_f'],
               lstm_p['wih_b'], lstm_p['whh_b'], lstm_p['b_b']]

    y = pl.pallas_call(
        _make_bilstm_kernel(T, bn, H, pool=False, imp=False),
        out_shape=jax.ShapeDtypeStruct((G * T * bn, H2), _F32),
        grid_spec=pltpu.PrefetchScalarGridSpec(
            num_scalar_prefetch=0, grid=(G,),
            in_specs=([pl.BlockSpec((T * bn, Din), lambda g: (g, 0))]
                      + [pl.BlockSpec(w.shape, lambda g: (0, 0)) for w in weights]),
            out_specs=pl.BlockSpec((T * bn, H2), lambda g: (g, 0))),
        compiler_params=pltpu.CompilerParams(dimension_semantics=("parallel",)),
    )(xb, *weights)

    y = y.reshape(G, T, bn, H2).transpose(0, 2, 1, 3).reshape(Np, T, H2)
    return y[:N]


def attn_pool(y_ntd, attn_p, imp_p=None):
    """Attention pooling over axis 1 of y (N, T, H2) -> (N, H2) [, (N, 1)]."""
    N, T, H2 = y_ntd.shape
    Np = _round_up(N, 8)
    if Np != N:
        y_ntd = jnp.pad(y_ntd, ((0, Np - N), (0, 0), (0, 0)))
    yflat = jnp.transpose(y_ntd, (1, 0, 2)).reshape(T * Np, H2)      # t-major 2D

    with_imp = imp_p is not None
    weights = [attn_p['w'], attn_p['b'], attn_p['ctx']]
    if with_imp:
        weights += [imp_p['w'], imp_p['b']]
    out_shape = [jax.ShapeDtypeStruct((Np, H2), _F32)]
    if with_imp:
        out_shape.append(jax.ShapeDtypeStruct((Np, 1), _F32))

    outs = pl.pallas_call(
        _make_attn_kernel(T, Np, with_imp),
        out_shape=tuple(out_shape),
        in_specs=[_VMEM] * (1 + len(weights)),
        out_specs=tuple([_VMEM] * len(out_shape)),
    )(yflat, *weights)

    if with_imp:
        return outs[0][:N], outs[1][:N]
    return outs[0][:N]


# ----------------------------- parameter init -------------------------------

def _normal(key, shape, scale=0.1):
    return (scale * jax.random.normal(key, shape)).astype(_F32)


def init_lstm_params(key, din, h):
    ks = jax.random.split(key, 8)

    def direction(kw_ih, kw_hh, kb_ih, kb_hh):
        w_ih = _normal(kw_ih, (4 * h, din))        # PyTorch weight_ih (i|f|g|o)
        w_hh = _normal(kw_hh, (4 * h, h))          # PyTorch weight_hh
        b = _normal(kb_ih, (4 * h,)) + _normal(kb_hh, (4 * h,))   # b_ih + b_hh
        # fused kernel-ready slabs: (Din, 4H), (H, 4H), (1, 4H)
        return w_ih.T, w_hh.T, b.reshape(1, 4 * h)

    wih_f, whh_f, b_f = direction(*ks[:4])
    wih_b, whh_b, b_b = direction(*ks[4:])
    return dict(wih_f=wih_f, whh_f=whh_f, b_f=b_f,
                wih_b=wih_b, whh_b=whh_b, b_b=b_b)


def init_attention_params(key, dim):
    # HAN-style attention over 2*dim features (the bi-LSTM output width).
    k1, k2, k3 = jax.random.split(key, 3)
    w = _normal(k1, (2 * dim, 2 * dim))            # Linear(2d, 2d).weight (out,in)
    b = _normal(k2, (2 * dim,))
    ctx = _normal(k3, (1, 2 * dim))                # Linear(2d, 1, bias=False).weight
    return dict(w=w.T, b=b.reshape(1, 2 * dim), ctx=ctx.T)   # kernel-ready layouts


def init_linear_params(key, din):
    k1, k2 = jax.random.split(key)
    w = _normal(k1, (1, din))                      # Linear(din, 1).weight
    b = _normal(k2, (1,))
    return dict(w=w.T, b=b.reshape(1, 1))


def init_params(key, vocab, embedding_dim):
    E = embedding_dim
    ks = jax.random.split(key, 10)
    return dict(
        embedding=_normal(ks[0], (vocab, E), scale=1.0),
        titleEncoder=init_lstm_params(ks[1], E, E),
        titleAttention=init_attention_params(ks[2], E),
        sentenceEncoder=init_lstm_params(ks[3], E, E),
        sentenceAttention=init_attention_params(ks[4], E),
        sectionEncoder=init_lstm_params(ks[5], 2 * E, E),
        sectionAttention=init_attention_params(ks[6], E),  # defined but unused (as in reference forward)
        sentenceImportance=init_linear_params(ks[7], 2 * E),
        sectionTitleAttention=init_attention_params(ks[8], E),
        sectionTitleImportance=init_linear_params(ks[9], 2 * E),
    )


# ----------------------------- model forward --------------------------------

def forward(params, titles, sections):
    emb = params['embedding']
    E = emb.shape[1]
    H2 = 2 * E
    B, S, Lt = titles.shape
    _, _, Ns, Ls = sections.shape

    # ---- titles: fused BiLSTM + attention pooling (importance head skipped) --
    title_embeds = jnp.take(emb, titles, axis=0)                  # (B, S, Lt, E)
    x = jnp.swapaxes(title_embeds, 0, 1).reshape(S * B, Lt, E)    # (S*B, Lt, E)
    title_pooled = bilstm_attn_pool(x, params['titleEncoder'],
                                    params['titleAttention'])     # (S*B, 2E)
    title_store = title_pooled.reshape(S, B, H2)

    # ---- sentences: fused BiLSTM + attention + sigmoid importance ------------
    section_embeds = jnp.take(emb, sections, axis=0)              # (B, S, Ns, Ls, E)
    se = jnp.transpose(section_embeds, (1, 2, 0, 3, 4))           # (S, Ns, B, Ls, E)
    x = se.reshape(S * Ns * B, Ls, E)
    sent_pooled, sent_imp = bilstm_attn_pool(
        x, params['sentenceEncoder'], params['sentenceAttention'],
        params['sentenceImportance'])
    sentence_store = sent_pooled.reshape(S, Ns, B, H2)
    sentences_importance = sent_imp.reshape(S, Ns, B).transpose(2, 0, 1)   # (B,S,Ns)

    # ---- sections: the reference feeds a batch-first tensor into a
    # non-batch_first LSTM, so the recurrence runs over the document axis B
    # with Ns as batch, while the attention pools over Ns.  The pooling axis
    # differs from the recurrence axis, so this stage stays BiLSTM kernel +
    # attention kernel (not fusable per batch block). ---------------------------
    x = sentence_store.reshape(S * Ns, B, H2)                     # (N=S*Ns, T=B, 2E)
    y = bilstm_seq(x, params['sectionEncoder'])                   # (S*Ns, B, 2E)
    y = y.reshape(S, Ns, B, H2).transpose(0, 2, 1, 3).reshape(S * B, Ns, H2)
    # reference reuses sentenceAttention here (not sectionAttention)
    sec_pooled = attn_pool(y, params['sentenceAttention'])        # (S*B, 2E)
    sec_pooled = sec_pooled.reshape(S, B, H2)

    # ---- section/title fusion + section importance ---------------------------
    st = jnp.stack([title_store, sec_pooled], axis=2).reshape(S * B, 2, H2)
    _, sec_imp = attn_pool(st, params['sectionTitleAttention'],
                           params['sectionTitleImportance'])
    sections_importance = sec_imp.reshape(S, B, 1).transpose(1, 0, 2)      # (B, S, 1)

    sentence_store_out = jnp.transpose(sentence_store, (2, 0, 1, 3))       # (B,S,Ns,2E)
    return sections_importance, sentences_importance, sentence_store_out


# ----------------------------------- main ------------------------------------

if __name__ == "__main__":
    B, S, Lt, Ns, Ls = 2, 3, 6, 4, 5      # docs, sections, title len, sentences/section, sentence len
    V, E = 50, 25                         # vocab size, embedding_dim (GloVe-25)

    params = init_params(jax.random.PRNGKey(0), vocab=V, embedding_dim=E)

    key = jax.random.PRNGKey(0)
    k1, k2 = jax.random.split(key)
    titles = jax.random.randint(k1, (B, S, Lt), 0, V, dtype=jnp.int32)
    sections = jax.random.randint(k2, (B, S, Ns, Ls), 0, V, dtype=jnp.int32)

    out = jax.jit(forward)(params, titles, sections)
    out = jax.block_until_ready(out)
    sections_importance, sentences_importance, sentence_store = out

    assert sections_importance.shape == (B, S, 1)
    assert sentences_importance.shape == (B, S, Ns)
    assert sentence_store.shape == (B, S, Ns, 2 * E)
    assert all(bool(jnp.all(jnp.isfinite(o))) for o in out)

    print("KERNEL_OK")
</pallas_src>

<mosaic_0001>
module attributes {stable_mosaic.version = 11 : i64} {
  func.func @kernel(%arg0: i32, %arg1: memref<80x25xf32, #tpu.memory_space<vmem>>, %arg2: memref<25x100xf32, #tpu.memory_space<vmem>>, %arg3: memref<25x100xf32, #tpu.memory_space<vmem>>, %arg4: memref<1x100xf32, #tpu.memory_space<vmem>>, %arg5: memref<25x100xf32, #tpu.memory_space<vmem>>, %arg6: memref<25x100xf32, #tpu.memory_space<vmem>>, %arg7: memref<1x100xf32, #tpu.memory_space<vmem>>, %arg8: memref<50x50xf32, #tpu.memory_space<vmem>>, %arg9: memref<1x50xf32, #tpu.memory_space<vmem>>, %arg10: memref<50x1xf32, #tpu.memory_space<vmem>>, %arg11: memref<50x1xf32, #tpu.memory_space<vmem>>, %arg12: memref<1x1xf32, #tpu.memory_space<vmem>>, %arg13: memref<16x50xf32, #tpu.memory_space<vmem>>, %arg14: memref<16x1xf32, #tpu.memory_space<vmem>>, %arg15: memref<80x50xf32, #tpu.memory_space<vmem>>) attributes {dimension_semantics = [#tpu.dimension_semantics<parallel>], iteration_bounds = array<i64: 2>, scalar_prefetch = 0 : i64, scratch_operands = 1 : i64, tpu.core_type = #tpu.core_type<tc>, window_params = [{transform_indices = @transform_0, window_bounds = array<i64: 80, 25>}, {pipeline_mode = #tpu.pipeline_mode<synchronous>, transform_indices = @transform_1, window_bounds = array<i64: 25, 100>}, {pipeline_mode = #tpu.pipeline_mode<synchronous>, transform_indices = @transform_2, window_bounds = array<i64: 25, 100>}, {pipeline_mode = #tpu.pipeline_mode<synchronous>, transform_indices = @transform_3, window_bounds = array<i64: 1, 100>}, {pipeline_mode = #tpu.pipeline_mode<synchronous>, transform_indices = @transform_4, window_bounds = array<i64: 25, 100>}, {pipeline_mode = #tpu.pipeline_mode<synchronous>, transform_indices = @transform_5, window_bounds = array<i64: 25, 100>}, {pipeline_mode = #tpu.pipeline_mode<synchronous>, transform_indices = @transform_6, window_bounds = array<i64: 1, 100>}, {pipeline_mode = #tpu.pipeline_mode<synchronous>, transform_indices = @transform_7, window_bounds = array<i64: 50, 50>}, {pipeline_mode = #tpu.pipeline_mode<synchronous>, transform_indices = @transform_8, window_bounds = array<i64: 1, 50>}, {pipeline_mode = #tpu.pipeline_mode<synchronous>, transform_indices = @transform_9, window_bounds = array<i64: 50, 1>}, {pipeline_mode = #tpu.pipeline_mode<synchronous>, transform_indices = @transform_10, window_bounds = array<i64: 50, 1>}, {pipeline_mode = #tpu.pipeline_mode<synchronous>, transform_indices = @transform_11, window_bounds = array<i64: 1, 1>}, {transform_indices = @transform_12, window_bounds = array<i64: 16, 50>}, {transform_indices = @transform_13, window_bounds = array<i64: 16, 1>}]} {
    %c0 = arith.constant 0 : index
    %c0_0 = arith.constant 0 : index
    %0 = vector.load %arg1[%c0, %c0_0] : memref<80x25xf32, #tpu.memory_space<vmem>>, vector<80x25xf32>
    %c0_1 = arith.constant 0 : index
    %c0_2 = arith.constant 0 : index
    %1 = vector.load %arg2[%c0_1, %c0_2] : memref<25x100xf32, #tpu.memory_space<vmem>>, vector<25x100xf32>
    %cst = arith.constant dense<0.000000e+00> : vector<80x100xf32>
    %2 = tpu.matmul %0, %1, %cst {dimension_numbers = #tpu.dot_dimension_numbers<[1], [0], [0], [1], [0, 0, 1, 1], [], []>} : vector<80x25xf32>, vector<25x100xf32>, vector<80x100xf32> -> vector<80x100xf32>
    %c0_3 = arith.constant 0 : index
    %c0_4 = arith.constant 0 : index
    %3 = vector.load %arg4[%c0_3, %c0_4] : memref<1x100xf32, #tpu.memory_space<vmem>>, vector<1x100xf32>
    %4 = vector.broadcast %3 : vector<1x100xf32> to vector<80x100xf32>
    %5 = arith.addf %2, %4 : vector<80x100xf32>
    %c0_5 = arith.constant 0 : index
    %c0_6 = arith.constant 0 : index
    %6 = vector.load %arg5[%c0_5, %c0_6] : memref<25x100xf32, #tpu.memory_space<vmem>>, vector<25x100xf32>
    %cst_7 = arith.constant dense<0.000000e+00> : vector<80x100xf32>
    %7 = tpu.matmul %0, %6, %cst_7 {dimension_numbers = #tpu.dot_dimension_numbers<[1], [0], [0], [1], [0, 0, 1, 1], [], []>} : vector<80x25xf32>, vector<25x100xf32>, vector<80x100xf32> -> vector<80x100xf32>
    %c0_8 = arith.constant 0 : index
    %c0_9 = arith.constant 0 : index
    %8 = vector.load %arg7[%c0_8, %c0_9] : memref<1x100xf32, #tpu.memory_space<vmem>>, vector<1x100xf32>
    %9 = vector.broadcast %8 : vector<1x100xf32> to vector<80x100xf32>
    %10 = arith.addf %7, %9 : vector<80x100xf32>
    %c0_10 = arith.constant 0 : index
    %c0_11 = arith.constant 0 : index
    %11 = vector.load %arg3[%c0_10, %c0_11] : memref<25x100xf32, #tpu.memory_space<vmem>>, vector<25x100xf32>
    %c0_12 = arith.constant 0 : index
    %c0_13 = arith.constant 0 : index
    %12 = vector.load %arg6[%c0_12, %c0_13] : memref<25x100xf32, #tpu.memory_space<vmem>>, vector<25x100xf32>
    %cst_14 = arith.constant 0.000000e+00 : f32
    %13 = vector.broadcast %cst_14 : f32 to vector<16x25xf32>
    %cst_15 = arith.constant 0.000000e+00 : f32
    %14 = vector.broadcast %cst_15 : f32 to vector<16x25xf32>
    %cst_16 = arith.constant 0.000000e+00 : f32
    %15 = vector.broadcast %cst_16 : f32 to vector<16x25xf32>
    %cst_17 = arith.constant 0.000000e+00 : f32
    %16 = vector.broadcast %cst_17 : f32 to vector<16x25xf32>
    %17 = vector.extract_strided_slice %5 {offsets = [0, 0], sizes = [16, 100], strides = [1, 1]} : vector<80x100xf32> to vector<16x100xf32>
    %cst_18 = arith.constant dense<0.000000e+00> : vector<16x100xf32>
    %18 = tpu.matmul %13, %11, %cst_18 {dimension_numbers = #tpu.dot_dimension_numbers<[1], [0], [0], [1], [0, 0, 1, 1], [], []>} : vector<16x25xf32>, vector<25x100xf32>, vector<16x100xf32> -> vector<16x100xf32>
    %19 = arith.addf %17, %18 : vector<16x100xf32>
    %20 = vector.extract_strided_slice %10 {offsets = [64, 0], sizes = [16, 100], strides = [1, 1]} : vector<80x100xf32> to vector<16x100xf32>
    %cst_19 = arith.constant dense<0.000000e+00> : vector<16x100xf32>
    %21 = tpu.matmul %15, %12, %cst_19 {dimension_numbers = #tpu.dot_dimension_numbers<[1], [0], [0], [1], [0, 0, 1, 1], [], []>} : vector<16x25xf32>, vector<25x100xf32>, vector<16x100xf32> -> vector<16x100xf32>
    %22 = arith.addf %20, %21 : vector<16x100xf32>
    %23 = arith.negf %19 : vector<16x100xf32>
    %24 = math.exp %23 : vector<16x100xf32>
    %cst_20 = arith.constant 1.000000e+00 : f32
    %25 = vector.broadcast %cst_20 : f32 to vector<16x100xf32>
    %26 = arith.addf %25, %24 : vector<16x100xf32>
    %27 = arith.divf %25, %26 : vector<16x100xf32>
    %28 = arith.negf %22 : vector<16x100xf32>
    %29 = math.exp %28 : vector<16x100xf32>
    %cst_21 = arith.constant 1.000000e+00 : f32
    %30 = vector.broadcast %cst_21 : f32 to vector<16x100xf32>
    %31 = arith.addf %30, %29 : vector<16x100xf32>
    %32 = arith.divf %30, %31 : vector<16x100xf32>
    %33 = vector.extract_strided_slice %27 {offsets = [0, 25], sizes = [16, 25], strides = [1, 1]} : vector<16x100xf32> to vector<16x25xf32>
    %34 = arith.mulf %33, %14 : vector<16x25xf32>
    %35 = vector.extract_strided_slice %27 {offsets = [0, 0], sizes = [16, 25], strides = [1, 1]} : vector<16x100xf32> to vector<16x25xf32>
    %36 = vector.extract_strided_slice %19 {offsets = [0, 50], sizes = [16, 25], strides = [1, 1]} : vector<16x100xf32> to vector<16x25xf32>
    %37 = math.tanh %36 : vector<16x25xf32>
    %38 = arith.mulf %35, %37 : vector<16x25xf32>
    %39 = arith.addf %34, %38 : vector<16x25xf32>
    %40 = vector.extract_strided_slice %32 {offsets = [0, 25], sizes = [16, 25], strides = [1, 1]} : vector<16x100xf32> to vector<16x25xf32>
    %41 = arith.mulf %40, %16 : vector<16x25xf32>
    %42 = vector.extract_strided_slice %32 {offsets = [0, 0], sizes = [16, 25], strides = [1, 1]} : vector<16x100xf32> to vector<16x25xf32>
    %43 = vector.extract_strided_slice %22 {offsets = [0, 50], sizes = [16, 25], strides = [1, 1]} : vector<16x100xf32> to vector<16x25xf32>
    %44 = math.tanh %43 : vector<16x25xf32>
    %45 = arith.mulf %42, %44 : vector<16x25xf32>
    %46 = arith.addf %41, %45 : vector<16x25xf32>
    %47 = vector.extract_strided_slice %27 {offsets = [0, 75], sizes = [16, 25], strides = [1, 1]} : vector<16x100xf32> to vector<16x25xf32>
    %48 = math.tanh %39 : vector<16x25xf32>
    %49 = arith.mulf %47, %48 : vector<16x25xf32>
    %50 = vector.extract_strided_slice %32 {offsets = [0, 75], sizes = [16, 25], strides = [1, 1]} : vector<16x100xf32> to vector<16x25xf32>
    %51 = math.tanh %46 : vector<16x25xf32>
    %52 = arith.mulf %50, %51 : vector<16x25xf32>
    %c0_22 = arith.constant 0 : index
    %c0_23 = arith.constant 0 : index
    %53 = vector.load %arg15[%c0_22, %c0_23] : memref<80x50xf32, #tpu.memory_space<vmem>>, vector<16x25xf32>
    tpu.vector_store %arg15[%c0_22, %c0_23], %49 {strides = array<i32>} : memref<80x50xf32, #tpu.memory_space<vmem>>, vector<16x25xf32>,
    %c64 = arith.constant 64 : index
    %c25 = arith.constant 25 : index
    %54 = vector.load %arg15[%c64, %c25] : memref<80x50xf32, #tpu.memory_space<vmem>>, vector<16x25xf32>
    tpu.vector_store %arg15[%c64, %c25], %52 {strides = array<i32>} : memref<80x50xf32, #tpu.memory_space<vmem>>, vector<16x25xf32>,
    %55 = vector.extract_strided_slice %5 {offsets = [16, 0], sizes = [16, 100], strides = [1, 1]} : vector<80x100xf32> to vector<16x100xf32>
    %cst_24 = arith.constant dense<0.000000e+00> : vector<16x100xf32>
    %56 = tpu.matmul %49, %11, %cst_24 {dimension_numbers = #tpu.dot_dimension_numbers<[1], [0], [0], [1], [0, 0, 1, 1], [], []>} : vector<16x25xf32>, vector<25x100xf32>, vector<16x100xf32> -> vector<16x100xf32>
    %57 = arith.addf %55, %56 : vector<16x100xf32>
    %58 = vector.extract_strided_slice %10 {offsets = [48, 0], sizes = [16, 100], strides = [1, 1]} : vector<80x100xf32> to vector<16x100xf32>
    %cst_25 = arith.constant dense<0.000000e+00> : vector<16x100xf32>
    %59 = tpu.matmul %52, %12, %cst_25 {dimension_numbers = #tpu.dot_dimension_numbers<[1], [0], [0], [1], [0, 0, 1, 1], [], []>} : vector<16x25xf32>, vector<25x100xf32>, vector<16x100xf32> -> vector<16x100xf32>
    %60 = arith.addf %58, %59 : vector<16x100xf32>
    %61 = arith.negf %57 : vector<16x100xf32>
    %62 = math.exp %61 : vector<16x100xf32>
    %cst_26 = arith.constant 1.000000e+00 : f32
    %63 = vector.broadcast %cst_26 : f32 to vector<16x100xf32>
    %64 = arith.addf %63, %62 : vector<16x100xf32>
    %65 = arith.divf %63, %64 : vector<16x100xf32>
    %66 = arith.negf %60 : vector<16x100xf32>
    %67 = math.exp %66 : vector<16x100xf32>
    %cst_27 = arith.constant 1.000000e+00 : f32
    %68 = vector.broadcast %cst_27 : f32 to vector<16x100xf32>
    %69 = arith.addf %68, %67 : vector<16x100xf32>
    %70 = arith.divf %68, %69 : vector<16x100xf32>
    %71 = vector.extract_strided_slice %65 {offsets = [0, 25], sizes = [16, 25], strides = [1, 1]} : vector<16x100xf32> to vector<16x25xf32>
    %72 = arith.mulf %71, %39 : vector<16x25xf32>
    %73 = vector.extract_strided_slice %65 {offsets = [0, 0], sizes = [16, 25], strides = [1, 1]} : vector<16x100xf32> to vector<16x25xf32>
    %74 = vector.extract_strided_slice %57 {offsets = [0, 50], sizes = [16, 25], strides = [1, 1]} : vector<16x100xf32> to vector<16x25xf32>
    %75 = math.tanh %74 : vector<16x25xf32>
    %76 = arith.mulf %73, %75 : vector<16x25xf32>
    %77 = arith.addf %72, %76 : vector<16x25xf32>
    %78 = vector.extract_strided_slice %70 {offsets = [0, 25], sizes = [16, 25], strides = [1, 1]} : vector<16x100xf32> to vector<16x25xf32>
    %79 = arith.mulf %78, %46 : vector<16x25xf32>
    %80 = vector.extract_strided_slice %70 {offsets = [0, 0], sizes = [16, 25], strides = [1, 1]} : vector<16x100xf32> to vector<16x25xf32>
    %81 = vector.extract_strided_slice %60 {offsets = [0, 50], sizes = [16, 25], strides = [1, 1]} : vector<16x100xf32> to vector<16x25xf32>
    %82 = math.tanh %81 : vector<16x25xf32>
    %83 = arith.mulf %80, %82 : vector<16x25xf32>
    %84 = arith.addf %79, %83 : vector<16x25xf32>
    %85 = vector.extract_strided_slice %65 {offsets = [0, 75], sizes = [16, 25], strides = [1, 1]} : vector<16x100xf32> to vector<16x25xf32>
    %86 = math.tanh %77 : vector<16x25xf32>
    %87 = arith.mulf %85, %86 : vector<16x25xf32>
    %88 = vector.extract_strided_slice %70 {offsets = [0, 75], sizes = [16, 25], strides = [1, 1]} : vector<16x100xf32> to vector<16x25xf32>
    %89 = math.tanh %84 : vector<16x25xf32>
    %90 = arith.mulf %88, %89 : vector<16x25xf32>
    %c16 = arith.constant 16 : index
    %c0_28 = arith.constant 0 : index
    %91 = vector.load %arg15[%c16, %c0_28] : memref<80x50xf32, #tpu.memory_space<vmem>>, vector<16x25xf32>
    tpu.vector_store %arg15[%c16, %c0_28], %87 {strides = array<i32>} : memref<80x50xf32, #tpu.memory_space<vmem>>, vector<16x25xf32>,
    %c48 = arith.constant 48 : index
    %c25_29 = arith.constant 25 : index
    %92 = vector.load %arg15[%c48, %c25_29] : memref<80x50xf32, #tpu.memory_space<vmem>>, vector<16x25xf32>
    tpu.vector_store %arg15[%c48, %c25_29], %90 {strides = array<i32>} : memref<80x50xf32, #tpu.memory_space<vmem>>, vector<16x25xf32>,
    %93 = vector.extract_strided_slice %5 {offsets = [32, 0], sizes = [16, 100], strides = [1, 1]} : vector<80x100xf32> to vector<16x100xf32>
    %cst_30 = arith.constant dense<0.000000e+00> : vector<16x100xf32>
    %94 = tpu.matmul %87, %11, %cst_30 {dimension_numbers = #tpu.dot_dimension_numbers<[1], [0], [0], [1], [0, 0, 1, 1], [], []>} : vector<16x25xf32>, vector<25x100xf32>, vector<16x100xf32> -> vector<16x100xf32>
    %95 = arith.addf %93, %94 : vector<16x100xf32>
    %96 = vector.extract_strided_slice %10 {offsets = [32, 0], sizes = [16, 100], strides = [1, 1]} : vector<80x100xf32> to vector<16x100xf32>
    %cst_31 = arith.constant dense<0.000000e+00> : vector<16x100xf32>
    %97 = tpu.matmul %90, %12, %cst_31 {dimension_numbers = #tpu.dot_dimension_numbers<[1], [0], [0], [1], [0, 0, 1, 1], [], []>} : vector<16x25xf32>, vector<25x100xf32>, vector<16x100xf32> -> vector<16x100xf32>
    %98 = arith.addf %96, %97 : vector<16x100xf32>
    %99 = arith.negf %95 : vector<16x100xf32>
    %100 = math.exp %99 : vector<16x100xf32>
    %cst_32 = arith.constant 1.000000e+00 : f32
    %101 = vector.broadcast %cst_32 : f32 to vector<16x100xf32>
    %102 = arith.addf %101, %100 : vector<16x100xf32>
    %103 = arith.divf %101, %102 : vector<16x100xf32>
    %104 = arith.negf %98 : vector<16x100xf32>
    %105 = math.exp %104 : vector<16x100xf32>
    %cst_33 = arith.constant 1.000000e+00 : f32
    %106 = vector.broadcast %cst_33 : f32 to vector<16x100xf32>
    %107 = arith.addf %106, %105 : vector<16x100xf32>
    %108 = arith.divf %106, %107 : vector<16x100xf32>
    %109 = vector.extract_strided_slice %103 {offsets = [0, 25], sizes = [16, 25], strides = [1, 1]} : vector<16x100xf32> to vector<16x25xf32>
    %110 = arith.mulf %109, %77 : vector<16x25xf32>
    %111 = vector.extract_strided_slice %103 {offsets = [0, 0], sizes = [16, 25], strides = [1, 1]} : vector<16x100xf32> to vector<16x25xf32>
    %112 = vector.extract_strided_slice %95 {offsets = [0, 50], sizes = [16, 25], strides = [1, 1]} : vector<16x100xf32> to vector<16x25xf32>
    %113 = math.tanh %112 : vector<16x25xf32>
    %114 = arith.mulf %111, %113 : vector<16x25xf32>
    %115 = arith.addf %110, %114 : vector<16x25xf32>
    %116 = vector.extract_strided_slice %108 {offsets = [0, 25], sizes = [16, 25], strides = [1, 1]} : vector<16x100xf32> to vector<16x25xf32>
    %117 = arith.mulf %116, %84 : vector<16x25xf32>
    %118 = vector.extract_strided_slice %108 {offsets = [0, 0], sizes = [16, 25], strides = [1, 1]} : vector<16x100xf32> to vector<16x25xf32>
    %119 = vector.extract_strided_slice %98 {offsets = [0, 50], sizes = [16, 25], strides = [1, 1]} : vector<16x100xf32> to vector<16x25xf32>
    %120 = math.tanh %119 : vector<16x25xf32>
    %121 = arith.mulf %118, %120 : vector<16x25xf32>
    %122 = arith.addf %117, %121 : vector<16x25xf32>
    %123 = vector.extract_strided_slice %103 {offsets = [0, 75], sizes = [16, 25], strides = [1, 1]} : vector<16x100xf32> to vector<16x25xf32>
    %124 = math.tanh %115 : vector<16x25xf32>
    %125 = arith.mulf %123, %124 : vector<16x25xf32>
    %126 = vector.extract_strided_slice %108 {offsets = [0, 75], sizes = [16, 25], strides = [1, 1]} : vector<16x100xf32> to vector<16x25xf32>
    %127 = math.tanh %122 : vector<16x25xf32>
    %128 = arith.mulf %126, %127 : vector<16x25xf32>
    %c32 = arith.constant 32 : index
    %c0_34 = arith.constant 0 : index
    %129 = vector.load %arg15[%c32, %c0_34] : memref<80x50xf32, #tpu.memory_space<vmem>>, vector<16x25xf32>
    tpu.vector_store %arg15[%c32, %c0_34], %125 {strides = array<i32>} : memref<80x50xf32, #tpu.memory_space<vmem>>, vector<16x25xf32>,
    %c32_35 = arith.constant 32 : index
    %c25_36 = arith.constant 25 : index
    %130 = vector.load %arg15[%c32_35, %c25_36] : memref<80x50xf32, #tpu.memory_space<vmem>>, vector<16x25xf32>
    tpu.vector_store %arg15[%c32_35, %c25_36], %128 {strides = array<i32>} : memref<80x50xf32, #tpu.memory_space<vmem>>, vector<16x25xf32>,
    %131 = vector.extract_strided_slice %5 {offsets = [48, 0], sizes = [16, 100], strides = [1, 1]} : vector<80x100xf32> to vector<16x100xf32>
    %cst_37 = arith.constant dense<0.000000e+00> : vector<16x100xf32>
    %132 = tpu.matmul %125, %11, %cst_37 {dimension_numbers = #tpu.dot_dimension_numbers<[1], [0], [0], [1], [0, 0, 1, 1], [], []>} : vector<16x25xf32>, vector<25x100xf32>, vector<16x100xf32> -> vector<16x100xf32>
    %133 = arith.addf %131, %132 : vector<16x100xf32>
    %134 = vector.extract_strided_slice %10 {offsets = [16, 0], sizes = [16, 100], strides = [1, 1]} : vector<80x100xf32> to vector<16x100xf32>
    %cst_38 = arith.constant dense<0.000000e+00> : vector<16x100xf32>
    %135 = tpu.matmul %128, %12, %cst_38 {dimension_numbers = #tpu.dot_dimension_numbers<[1], [0], [0], [1], [0, 0, 1, 1], [], []>} : vector<16x25xf32>, vector<25x100xf32>, vector<16x100xf32> -> vector<16x100xf32>
    %136 = arith.addf %134, %135 : vector<16x100xf32>
    %137 = arith.negf %133 : vector<16x100xf32>
    %138 = math.exp %137 : vector<16x100xf32>
    %cst_39 = arith.constant 1.000000e+00 : f32
    %139 = vector.broadcast %cst_39 : f32 to vector<16x100xf32>
    %140 = arith.addf %139, %138 : vector<16x100xf32>
    %141 = arith.divf %139, %140 : vector<16x100xf32>
    %142 = arith.negf %136 : vector<16x100xf32>
    %143 = math.exp %142 : vector<16x100xf32>
    %cst_40 = arith.constant 1.000000e+00 : f32
    %144 = vector.broadcast %cst_40 : f32 to vector<16x100xf32>
    %145 = arith.addf %144, %143 : vector<16x100xf32>
    %146 = arith.divf %144, %145 : vector<16x100xf32>
    %147 = vector.extract_strided_slice %141 {offsets = [0, 25], sizes = [16, 25], strides = [1, 1]} : vector<16x100xf32> to vector<16x25xf32>
    %148 = arith.mulf %147, %115 : vector<16x25xf32>
    %149 = vector.extract_strided_slice %141 {offsets = [0, 0], sizes = [16, 25], strides = [1, 1]} : vector<16x100xf32> to vector<16x25xf32>
    %150 = vector.extract_strided_slice %133 {offsets = [0, 50], sizes = [16, 25], strides = [1, 1]} : vector<16x100xf32> to vector<16x25xf32>
    %151 = math.tanh %150 : vector<16x25xf32>
    %152 = arith.mulf %149, %151 : vector<16x25xf32>
    %153 = arith.addf %148, %152 : vector<16x25xf32>
    %154 = vector.extract_strided_slice %146 {offsets = [0, 25], sizes = [16, 25], strides = [1, 1]} : vector<16x100xf32> to vector<16x25xf32>
    %155 = arith.mulf %154, %122 : vector<16x25xf32>
    %156 = vector.extract_strided_slice %146 {offsets = [0, 0], sizes = [16, 25], strides = [1, 1]} : vector<16x100xf32> to vector<16x25xf32>
    %157 = vector.extract_strided_slice %136 {offsets = [0, 50], sizes = [16, 25], strides = [1, 1]} : vector<16x100xf32> to vector<16x25xf32>
    %158 = math.tanh %157 : vector<16x25xf32>
    %159 = arith.mulf %156, %158 : vector<16x25xf32>
    %160 = arith.addf %155, %159 : vector<16x25xf32>
    %161 = vector.extract_strided_slice %141 {offsets = [0, 75], sizes = [16, 25], strides = [1, 1]} : vector<16x100xf32> to vector<16x25xf32>
    %162 = math.tanh %153 : vector<16x25xf32>
    %163 = arith.mulf %161, %162 : vector<16x25xf32>
    %164 = vector.extract_strided_slice %146 {offsets = [0, 75], sizes = [16, 25], strides = [1, 1]} : vector<16x100xf32> to vector<16x25xf32>
    %165 = math.tanh %160 : vector<16x25xf32>
    %166 = arith.mulf %164, %165 : vector<16x25xf32>
    %c48_41 = arith.constant 48 : index
    %c0_42 = arith.constant 0 : index
    %167 = vector.load %arg15[%c48_41, %c0_42] : memref<80x50xf32, #tpu.memory_space<vmem>>, vector<16x25xf32>
    tpu.vector_store %arg15[%c48_41, %c0_42], %163 {strides = array<i32>} : memref<80x50xf32, #tpu.memory_space<vmem>>, vector<16x25xf32>,
    %c16_43 = arith.constant 16 : index
    %c25_44 = arith.constant 25 : index
    %168 = vector.load %arg15[%c16_43, %c25_44] : memref<80x50xf32, #tpu.memory_space<vmem>>, vector<16x25xf32>
    tpu.vector_store %arg15[%c16_43, %c25_44], %166 {strides = array<i32>} : memref<80x50xf32, #tpu.memory_space<vmem>>, vector<16x25xf32>,
    %169 = vector.extract_strided_slice %5 {offsets = [64, 0], sizes = [16, 100], strides = [1, 1]} : vector<80x100xf32> to vector<16x100xf32>
    %cst_45 = arith.constant dense<0.000000e+00> : vector<16x100xf32>
    %170 = tpu.matmul %163, %11, %cst_45 {dimension_numbers = #tpu.dot_dimension_numbers<[1], [0], [0], [1], [0, 0, 1, 1], [], []>} : vector<16x25xf32>, vector<25x100xf32>, vector<16x100xf32> -> vector<16x100xf32>
    %171 = arith.addf %169, %170 : vector<16x100xf32>
    %172 = vector.extract_strided_slice %10 {offsets = [0, 0], sizes = [16, 100], strides = [1, 1]} : vector<80x100xf32> to vector<16x100xf32>
    %cst_46 = arith.constant dense<0.000000e+00> : vector<16x100xf32>
    %173 = tpu.matmul %166, %12, %cst_46 {dimension_numbers = #tpu.dot_dimension_numbers<[1], [0], [0], [1], [0, 0, 1, 1], [], []>} : vector<16x25xf32>, vector<25x100xf32>, vector<16x100xf32> -> vector<16x100xf32>
    %174 = arith.addf %172, %173 : vector<16x100xf32>
    %175 = arith.negf %171 : vector<16x100xf32>
    %176 = math.exp %175 : vector<16x100xf32>
    %cst_47 = arith.constant 1.000000e+00 : f32
    %177 = vector.broadcast %cst_47 : f32 to vector<16x100xf32>
    %178 = arith.addf %177, %176 : vector<16x100xf32>
    %179 = arith.divf %177, %178 : vector<16x100xf32>
    %180 = arith.negf %174 : vector<16x100xf32>
    %181 = math.exp %180 : vector<16x100xf32>
    %cst_48 = arith.constant 1.000000e+00 : f32
    %182 = vector.broadcast %cst_48 : f32 to vector<16x100xf32>
    %183 = arith.addf %182, %181 : vector<16x100xf32>
    %184 = arith.divf %182, %183 : vector<16x100xf32>
    %185 = vector.extract_strided_slice %179 {offsets = [0, 25], sizes = [16, 25], strides = [1, 1]} : vector<16x100xf32> to vector<16x25xf32>
    %186 = arith.mulf %185, %153 : vector<16x25xf32>
    %187 = vector.extract_strided_slice %179 {offsets = [0, 0], sizes = [16, 25], strides = [1, 1]} : vector<16x100xf32> to vector<16x25xf32>
    %188 = vector.extract_strided_slice %171 {offsets = [0, 50], sizes = [16, 25], strides = [1, 1]} : vector<16x100xf32> to vector<16x25xf32>
    %189 = math.tanh %188 : vector<16x25xf32>
    %190 = arith.mulf %187, %189 : vector<16x25xf32>
    %191 = arith.addf %186, %190 : vector<16x25xf32>
    %192 = vector.extract_strided_slice %184 {offsets = [0, 25], sizes = [16, 25], strides = [1, 1]} : vector<16x100xf32> to vector<16x25xf32>
    %193 = arith.mulf %192, %160 : vector<16x25xf32>
    %194 = vector.extract_strided_slice %184 {offsets = [0, 0], sizes = [16, 25], strides = [1, 1]} : vector<16x100xf32> to vector<16x25xf32>
    %195 = vector.extract_strided_slice %174 {offsets = [0, 50], sizes = [16, 25], strides = [1, 1]} : vector<16x100xf32> to vector<16x25xf32>
    %196 = math.tanh %195 : vector<16x25xf32>
    %197 = arith.mulf %194, %196 : vector<16x25xf32>
    %198 = arith.addf %193, %197 : vector<16x25xf32>
    %199 = vector.extract_strided_slice %179 {offsets = [0, 75], sizes = [16, 25], strides = [1, 1]} : vector<16x100xf32> to vector<16x25xf32>
    %200 = math.tanh %191 : vector<16x25xf32>
    %201 = arith.mulf %199, %200 : vector<16x25xf32>
    %202 = vector.extract_strided_slice %184 {offsets = [0, 75], sizes = [16, 25], strides = [1, 1]} : vector<16x100xf32> to vector<16x25xf32>
    %203 = math.tanh %198 : vector<16x25xf32>
    %204 = arith.mulf %202, %203 : vector<16x25xf32>
    %c64_49 = arith.constant 64 : index
    %c0_50 = arith.constant 0 : index
    %205 = vector.load %arg15[%c64_49, %c0_50] : memref<80x50xf32, #tpu.memory_space<vmem>>, vector<16x25xf32>
    tpu.vector_store %arg15[%c64_49, %c0_50], %201 {strides = array<i32>} : memref<80x50xf32, #tpu.memory_space<vmem>>, vector<16x25xf32>,
    %c0_51 = arith.constant 0 : index
    %c25_52 = arith.constant 25 : index
    %206 = vector.load %arg15[%c0_51, %c25_52] : memref<80x50xf32, #tpu.memory_space<vmem>>, vector<16x25xf32>
    tpu.vector_store %arg15[%c0_51, %c25_52], %204 {strides = array<i32>} : memref<80x50xf32, #tpu.memory_space<vmem>>, vector<16x25xf32>,
    %c0_53 = arith.constant 0 : index
    %c0_54 = arith.constant 0 : index
    %207 = vector.load %arg15[%c0_53, %c0_54] : memref<80x50xf32, #tpu.memory_space<vmem>>, vector<80x50xf32>
    %c0_55 = arith.constant 0 : index
    %c0_56 = arith.constant 0 : index
    %208 = vector.load %arg8[%c0_55, %c0_56] : memref<50x50xf32, #tpu.memory_space<vmem>>, vector<50x50xf32>
    %c0_57 = arith.constant 0 : index
    %c0_58 = arith.constant 0 : index
    %209 = vector.load %arg9[%c0_57, %c0_58] : memref<1x50xf32, #tpu.memory_space<vmem>>, vector<1x50xf32>
    %c0_59 = arith.constant 0 : index
    %c0_60 = arith.constant 0 : index
    %210 = vector.load %arg10[%c0_59, %c0_60] : memref<50x1xf32, #tpu.memory_space<vmem>>, vector<50x1xf32>
    %cst_61 = arith.constant dense<0.000000e+00> : vector<80x50xf32>
    %211 = tpu.matmul %207, %208, %cst_61 {dimension_numbers = #tpu.dot_dimension_numbers<[1], [0], [0], [1], [0, 0, 1, 1], [], []>} : vector<80x50xf32>, vector<50x50xf32>, vector<80x50xf32> -> vector<80x50xf32>
    %212 = vector.broadcast %209 : vector<1x50xf32> to vector<80x50xf32>
    %213 = arith.addf %211, %212 : vector<80x50xf32>
    %214 = math.tanh %213 : vector<80x50xf32>
    %cst_62 = arith.constant dense<0.000000e+00> : vector<80x1xf32>
    %215 = tpu.matmul %214, %210, %cst_62 {dimension_numbers = #tpu.dot_dimension_numbers<[1], [0], [0], [1], [0, 0, 1, 1], [], []>} : vector<80x50xf32>, vector<50x1xf32>, vector<80x1xf32> -> vector<80x1xf32>
    %216 = vector.extract_strided_slice %215 {offsets = [0, 0], sizes = [16, 1], strides = [1, 1]} : vector<80x1xf32> to vector<16x1xf32>
    %217 = vector.extract_strided_slice %215 {offsets = [16, 0], sizes = [16, 1], strides = [1, 1]} : vector<80x1xf32> to vector<16x1xf32>
    %218 = vector.extract_strided_slice %215 {offsets = [32, 0], sizes = [16, 1], strides = [1, 1]} : vector<80x1xf32> to vector<16x1xf32>
    %219 = vector.extract_strided_slice %215 {offsets = [48, 0], sizes = [16, 1], strides = [1, 1]} : vector<80x1xf32> to vector<16x1xf32>
    %220 = vector.extract_strided_slice %215 {offsets = [64, 0], sizes = [16, 1], strides = [1, 1]} : vector<80x1xf32> to vector<16x1xf32>
    %221 = arith.maximumf %216, %217 : vector<16x1xf32>
    %222 = arith.maximumf %221, %218 : vector<16x1xf32>
    %223 = arith.maximumf %222, %219 : vector<16x1xf32>
    %224 = arith.maximumf %223, %220 : vector<16x1xf32>
    %225 = arith.subf %216, %224 : vector<16x1xf32>
    %226 = math.exp %225 : vector<16x1xf32>
    %227 = arith.subf %217, %224 : vector<16x1xf32>
    %228 = math.exp %227 : vector<16x1xf32>
    %229 = arith.subf %218, %224 : vector<16x1xf32>
    %230 = math.exp %229 : vector<16x1xf32>
    %231 = arith.subf %219, %224 : vector<16x1xf32>
    %232 = math.exp %231 : vector<16x1xf32>
    %233 = arith.subf %220, %224 : vector<16x1xf32>
    %234 = math.exp %233 : vector<16x1xf32>
    %235 = arith.addf %226, %228 : vector<16x1xf32>
    %236 = arith.addf %235, %230 : vector<16x1xf32>
    %237 = arith.addf %236, %232 : vector<16x1xf32>
    %238 = arith.addf %237, %234 : vector<16x1xf32>
    %239 = tpu.reciprocal %238 {approx = true} : vector<16x1xf32> -> vector<16x1xf32>
    %240 = arith.mulf %226, %239 : vector<16x1xf32>
    %241 = vector.extract_strided_slice %207 {offsets = [0, 0], sizes = [16, 50], strides = [1, 1]} : vector<80x50xf32> to vector<16x50xf32>
    %242 = vector.broadcast %240 : vector<16x1xf32> to vector<16x50xf32>
    %243 = arith.mulf %242, %241 : vector<16x50xf32>
    %244 = arith.mulf %228, %239 : vector<16x1xf32>
    %245 = vector.extract_strided_slice %207 {offsets = [16, 0], sizes = [16, 50], strides = [1, 1]} : vector<80x50xf32> to vector<16x50xf32>
    %246 = vector.broadcast %244 : vector<16x1xf32> to vector<16x50xf32>
    %247 = arith.mulf %246, %245 : vector<16x50xf32>
    %248 = arith.addf %243, %247 : vector<16x50xf32>
    %249 = arith.mulf %230, %239 : vector<16x1xf32>
    %250 = vector.extract_strided_slice %207 {offsets = [32, 0], sizes = [16, 50], strides = [1, 1]} : vector<80x50xf32> to vector<16x50xf32>
    %251 = vector.broadcast %249 : vector<16x1xf32> to vector<16x50xf32>
    %252 = arith.mulf %251, %250 : vector<16x50xf32>
    %253 = arith.addf %248, %252 : vector<16x50xf32>
    %254 = arith.mulf %232, %239 : vector<16x1xf32>
    %255 = vector.extract_strided_slice %207 {offsets = [48, 0], sizes = [16, 50], strides = [1, 1]} : vector<80x50xf32> to vector<16x50xf32>
    %256 = vector.broadcast %254 : vector<16x1xf32> to vector<16x50xf32>
    %257 = arith.mulf %256, %255 : vector<16x50xf32>
    %258 = arith.addf %253, %257 : vector<16x50xf32>
    %259 = arith.mulf %234, %239 : vector<16x1xf32>
    %260 = vector.extract_strided_slice %207 {offsets = [64, 0], sizes = [16, 50], strides = [1, 1]} : vector<80x50xf32> to vector<16x50xf32>
    %261 = vector.broadcast %259 : vector<16x1xf32> to vector<16x50xf32>
    %262 = arith.mulf %261, %260 : vector<16x50xf32>
    %263 = arith.addf %258, %262 : vector<16x50xf32>
    %c0_63 = arith.constant 0 : index
    %c0_64 = arith.constant 0 : index
    %264 = vector.load %arg13[%c0_63, %c0_64] : memref<16x50xf32, #tpu.memory_space<vmem>>, vector<16x50xf32>
    tpu.vector_store %arg13[%c0_63, %c0_64], %263 {strides = array<i32>} : memref<16x50xf32, #tpu.memory_space<vmem>>, vector<16x50xf32>,
    %c0_65 = arith.constant 0 : index
    %c0_66 = arith.constant 0 : index
    %265 = vector.load %arg11[%c0_65, %c0_66] : memref<50x1xf32, #tpu.memory_space<vmem>>, vector<50x1xf32>
    %cst_67 = arith.constant dense<0.000000e+00> : vector<16x1xf32>
    %266 = tpu.matmul %263, %265, %cst_67 {dimension_numbers = #tpu.dot_dimension_numbers<[1], [0], [0], [1], [0, 0, 1, 1], [], []>} : vector<16x50xf32>, vector<50x1xf32>, vector<16x1xf32> -> vector<16x1xf32>
    %c0_68 = arith.constant 0 : index
    %c0_69 = arith.constant 0 : index
    %267 = vector.load %arg12[%c0_68, %c0_69] : memref<1x1xf32, #tpu.memory_space<vmem>>, vector<1x1xf32>
    %268 = vector.broadcast %267 : vector<1x1xf32> to vector<16x1xf32>
    %269 = arith.addf %266, %268 : vector<16x1xf32>
    %270 = arith.negf %269 : vector<16x1xf32>
    %271 = math.exp %270 : vector<16x1xf32>
    %cst_70 = arith.constant 1.000000e+00 : f32
    %272 = vector.broadcast %cst_70 : f32 to vector<16x1xf32>
    %273 = arith.addf %272, %271 : vector<16x1xf32>
    %274 = arith.divf %272, %273 : vector<16x1xf32>
    %c0_71 = arith.constant 0 : index
    %c0_72 = arith.constant 0 : index
    %275 = vector.load %arg14[%c0_71, %c0_72] : memref<16x1xf32, #tpu.memory_space<vmem>>, vector<16x1xf32>
    tpu.vector_store %arg14[%c0_71, %c0_72], %274 {strides = array<i32>} : memref<16x1xf32, #tpu.memory_space<vmem>>, vector<16x1xf32>,
    return
  }
  func.func @transform_0(%arg0: i32) -> (i32, i32) {
    %c0_i32 = arith.constant 0 : i32
    %c0_i32_0 = arith.constant 0 : i32
    return %arg0, %c0_i32 : i32, i32
  }
  func.func @transform_1(%arg0: i32) -> (i32, i32) {
    %c0_i32 = arith.constant 0 : i32
    %c0_i32_0 = arith.constant 0 : i32
    %c0_i32_1 = arith.constant 0 : i32
    return %c0_i32, %c0_i32_0 : i32, i32
  }
  func.func @transform_2(%arg0: i32) -> (i32, i32) {
    %c0_i32 = arith.constant 0 : i32
    %c0_i32_0 = arith.constant 0 : i32
    %c0_i32_1 = arith.constant 0 : i32
    return %c0_i32, %c0_i32_0 : i32, i32
  }
  func.func @transform_3(%arg0: i32) -> (i32, i32) {
    %c0_i32 = arith.constant 0 : i32
    %c0_i32_0 = arith.constant 0 : i32
    %c0_i32_1 = arith.constant 0 : i32
    return %c0_i32, %c0_i32_0 : i32, i32
  }
  func.func @transform_4(%arg0: i32) -> (i32, i32) {
    %c0_i32 = arith.constant 0 : i32
    %c0_i32_0 = arith.constant 0 : i32
    %c0_i32_1 = arith.constant 0 : i32
    return %c0_i32, %c0_i32_0 : i32, i32
  }
  func.func @transform_5(%arg0: i32) -> (i32, i32) {
    %c0_i32 = arith.constant 0 : i32
    %c0_i32_0 = arith.constant 0 : i32
    %c0_i32_1 = arith.constant 0 : i32
    return %c0_i32, %c0_i32_0 : i32, i32
  }
  func.func @transform_6(%arg0: i32) -> (i32, i32) {
    %c0_i32 = arith.constant 0 : i32
    %c0_i32_0 = arith.constant 0 : i32
    %c0_i32_1 = arith.constant 0 : i32
    return %c0_i32, %c0_i32_0 : i32, i32
  }
  func.func @transform_7(%arg0: i32) -> (i32, i32) {
    %c0_i32 = arith.constant 0 : i32
    %c0_i32_0 = arith.constant 0 : i32
    %c0_i32_1 = arith.constant 0 : i32
    return %c0_i32, %c0_i32_0 : i32, i32
  }
  func.func @transform_8(%arg0: i32) -> (i32, i32) {
    %c0_i32 = arith.constant 0 : i32
    %c0_i32_0 = arith.constant 0 : i32
    %c0_i32_1 = arith.constant 0 : i32
    return %c0_i32, %c0_i32_0 : i32, i32
  }
  func.func @transform_9(%arg0: i32) -> (i32, i32) {
    %c0_i32 = arith.constant 0 : i32
    %c0_i32_0 = arith.constant 0 : i32
    %c0_i32_1 = arith.constant 0 : i32
    return %c0_i32, %c0_i32_0 : i32, i32
  }
  func.func @transform_10(%arg0: i32) -> (i32, i32) {
    %c0_i32 = arith.constant 0 : i32
    %c0_i32_0 = arith.constant 0 : i32
    %c0_i32_1 = arith.constant 0 : i32
    return %c0_i32, %c0_i32_0 : i32, i32
  }
  func.func @transform_11(%arg0: i32) -> (i32, i32) {
    %c0_i32 = arith.constant 0 : i32
    %c0_i32_0 = arith.constant 0 : i32
    %c0_i32_1 = arith.constant 0 : i32
    return %c0_i32, %c0_i32_0 : i32, i32
  }
  func.func @transform_12(%arg0: i32) -> (i32, i32) {
    %c0_i32 = arith.constant 0 : i32
    %c0_i32_0 = arith.constant 0 : i32
    return %arg0, %c0_i32 : i32, i32
  }
  func.func @transform_13(%arg0: i32) -> (i32, i32) {
    %c0_i32 = arith.constant 0 : i32
    %c0_i32_0 = arith.constant 0 : i32
    return %arg0, %c0_i32 : i32, i32
  }
}

module attributes {stable_mosaic.version = 11 : i64} {
  func.func @kernel(%arg0: i32, %arg1: memref<16x50xf32, #tpu.memory_space<vmem>>, %arg2: memref<50x100xf32, #tpu.memory_space<vmem>>, %arg3: memref<25x100xf32, #tpu.memory_space<vmem>>, %arg4: memref<1x100xf32, #tpu.memory_space<vmem>>, %arg5: memref<50x100xf32, #tpu.memory_space<vmem>>, %arg6: memref<25x100xf32, #tpu.memory_space<vmem>>, %arg7: memref<1x100xf32, #tpu.memory_space<vmem>>, %arg8: memref<16x50xf32, #tpu.memory_space<vmem>>) attributes {dimension_semantics = [#tpu.dimension_semantics<parallel>], iteration_bounds = array<i64: 2>, scalar_prefetch = 0 : i64, scratch_operands = 0 : i64, tpu.core_type = #tpu.core_type<tc>, window_params = [{transform_indices = @transform_0, window_bounds = array<i64: 16, 50>}, {pipeline_mode = #tpu.pipeline_mode<synchronous>, transform_indices = @transform_1, window_bounds = array<i64: 50, 100>}, {pipeline_mode = #tpu.pipeline_mode<synchronous>, transform_indices = @transform_2, window_bounds = array<i64: 25, 100>}, {pipeline_mode = #tpu.pipeline_mode<synchronous>, transform_indices = @transform_3, window_bounds = array<i64: 1, 100>}, {pipeline_mode = #tpu.pipeline_mode<synchronous>, transform_indices = @transform_4, window_bounds = array<i64: 50, 100>}, {pipeline_mode = #tpu.pipeline_mode<synchronous>, transform_indices = @transform_5, window_bounds = array<i64: 25, 100>}, {pipeline_mode = #tpu.pipeline_mode<synchronous>, transform_indices = @transform_6, window_bounds = array<i64: 1, 100>}, {transform_indices = @transform_7, window_bounds = array<i64: 16, 50>}]} {
    %c0 = arith.constant 0 : index
    %c0_0 = arith.constant 0 : index
    %0 = vector.load %arg1[%c0, %c0_0] : memref<16x50xf32, #tpu.memory_space<vmem>>, vector<16x50xf32>
    %c0_1 = arith.constant 0 : index
    %c0_2 = arith.constant 0 : index
    %1 = vector.load %arg2[%c0_1, %c0_2] : memref<50x100xf32, #tpu.memory_space<vmem>>, vector<50x100xf32>
    %cst = arith.constant dense<0.000000e+00> : vector<16x100xf32>
    %2 = tpu.matmul %0, %1, %cst {dimension_numbers = #tpu.dot_dimension_numbers<[1], [0], [0], [1], [0, 0, 1, 1], [], []>} : vector<16x50xf32>, vector<50x100xf32>, vector<16x100xf32> -> vector<16x100xf32>
    %c0_3 = arith.constant 0 : index
    %c0_4 = arith.constant 0 : index
    %3 = vector.load %arg4[%c0_3, %c0_4] : memref<1x100xf32, #tpu.memory_space<vmem>>, vector<1x100xf32>
    %4 = vector.broadcast %3 : vector<1x100xf32> to vector<16x100xf32>
    %5 = arith.addf %2, %4 : vector<16x100xf32>
    %c0_5 = arith.constant 0 : index
    %c0_6 = arith.constant 0 : index
    %6 = vector.load %arg5[%c0_5, %c0_6] : memref<50x100xf32, #tpu.memory_space<vmem>>, vector<50x100xf32>
    %cst_7 = arith.constant dense<0.000000e+00> : vector<16x100xf32>
    %7 = tpu.matmul %0, %6, %cst_7 {dimension_numbers = #tpu.dot_dimension_numbers<[1], [0], [0], [1], [0, 0, 1, 1], [], []>} : vector<16x50xf32>, vector<50x100xf32>, vector<16x100xf32> -> vector<16x100xf32>
    %c0_8 = arith.constant 0 : index
    %c0_9 = arith.constant 0 : index
    %8 = vector.load %arg7[%c0_8, %c0_9] : memref<1x100xf32, #tpu.memory_space<vmem>>, vector<1x100xf32>
    %9 = vector.broadcast %8 : vector<1x100xf32> to vector<16x100xf32>
    %10 = arith.addf %7, %9 : vector<16x100xf32>
    %c0_10 = arith.constant 0 : index
    %c0_11 = arith.constant 0 : index
    %11 = vector.load %arg3[%c0_10, %c0_11] : memref<25x100xf32, #tpu.memory_space<vmem>>, vector<25x100xf32>
    %c0_12 = arith.constant 0 : index
    %c0_13 = arith.constant 0 : index
    %12 = vector.load %arg6[%c0_12, %c0_13] : memref<25x100xf32, #tpu.memory_space<vmem>>, vector<25x100xf32>
    %cst_14 = arith.constant 0.000000e+00 : f32
    %13 = vector.broadcast %cst_14 : f32 to vector<8x25xf32>
    %cst_15 = arith.constant 0.000000e+00 : f32
    %14 = vector.broadcast %cst_15 : f32 to vector<8x25xf32>
    %cst_16 = arith.constant 0.000000e+00 : f32
    %15 = vector.broadcast %cst_16 : f32 to vector<8x25xf32>
    %cst_17 = arith.constant 0.000000e+00 : f32
    %16 = vector.broadcast %cst_17 : f32 to vector<8x25xf32>
    %17 = vector.extract_strided_slice %5 {offsets = [0, 0], sizes = [8, 100], strides = [1, 1]} : vector<16x100xf32> to vector<8x100xf32>
    %cst_18 = arith.constant dense<0.000000e+00> : vector<8x100xf32>
    %18 = tpu.matmul %13, %11, %cst_18 {dimension_numbers = #tpu.dot_dimension_numbers<[1], [0], [0], [1], [0, 0, 1, 1], [], []>} : vector<8x25xf32>, vector<25x100xf32>, vector<8x100xf32> -> vector<8x100xf32>
    %19 = arith.addf %17, %18 : vector<8x100xf32>
    %20 = vector.extract_strided_slice %10 {offsets = [8, 0], sizes = [8, 100], strides = [1, 1]} : vector<16x100xf32> to vector<8x100xf32>
    %cst_19 = arith.constant dense<0.000000e+00> : vector<8x100xf32>
    %21 = tpu.matmul %15, %12, %cst_19 {dimension_numbers = #tpu.dot_dimension_numbers<[1], [0], [0], [1], [0, 0, 1, 1], [], []>} : vector<8x25xf32>, vector<25x100xf32>, vector<8x100xf32> -> vector<8x100xf32>
    %22 = arith.addf %20, %21 : vector<8x100xf32>
    %23 = arith.negf %19 : vector<8x100xf32>
    %24 = math.exp %23 : vector<8x100xf32>
    %cst_20 = arith.constant 1.000000e+00 : f32
    %25 = vector.broadcast %cst_20 : f32 to vector<8x100xf32>
    %26 = arith.addf %25, %24 : vector<8x100xf32>
    %27 = arith.divf %25, %26 : vector<8x100xf32>
    %28 = arith.negf %22 : vector<8x100xf32>
    %29 = math.exp %28 : vector<8x100xf32>
    %cst_21 = arith.constant 1.000000e+00 : f32
    %30 = vector.broadcast %cst_21 : f32 to vector<8x100xf32>
    %31 = arith.addf %30, %29 : vector<8x100xf32>
    %32 = arith.divf %30, %31 : vector<8x100xf32>
    %33 = vector.extract_strided_slice %27 {offsets = [0, 25], sizes = [8, 25], strides = [1, 1]} : vector<8x100xf32> to vector<8x25xf32>
    %34 = arith.mulf %33, %14 : vector<8x25xf32>
    %35 = vector.extract_strided_slice %27 {offsets = [0, 0], sizes = [8, 25], strides = [1, 1]} : vector<8x100xf32> to vector<8x25xf32>
    %36 = vector.extract_strided_slice %19 {offsets = [0, 50], sizes = [8, 25], strides = [1, 1]} : vector<8x100xf32> to vector<8x25xf32>
    %37 = math.tanh %36 : vector<8x25xf32>
    %38 = arith.mulf %35, %37 : vector<8x25xf32>
    %39 = arith.addf %34, %38 : vector<8x25xf32>
    %40 = vector.extract_strided_slice %32 {offsets = [0, 25], sizes = [8, 25], strides = [1, 1]} : vector<8x100xf32> to vector<8x25xf32>
    %41 = arith.mulf %40, %16 : vector<8x25xf32>
    %42 = vector.extract_strided_slice %32 {offsets = [0, 0], sizes = [8, 25], strides = [1, 1]} : vector<8x100xf32> to vector<8x25xf32>
    %43 = vector.extract_strided_slice %22 {offsets = [0, 50], sizes = [8, 25], strides = [1, 1]} : vector<8x100xf32> to vector<8x25xf32>
    %44 = math.tanh %43 : vector<8x25xf32>
    %45 = arith.mulf %42, %44 : vector<8x25xf32>
    %46 = arith.addf %41, %45 : vector<8x25xf32>
    %47 = vector.extract_strided_slice %27 {offsets = [0, 75], sizes = [8, 25], strides = [1, 1]} : vector<8x100xf32> to vector<8x25xf32>
    %48 = math.tanh %39 : vector<8x25xf32>
    %49 = arith.mulf %47, %48 : vector<8x25xf32>
    %50 = vector.extract_strided_slice %32 {offsets = [0, 75], sizes = [8, 25], strides = [1, 1]} : vector<8x100xf32> to vector<8x25xf32>
    %51 = math.tanh %46 : vector<8x25xf32>
    %52 = arith.mulf %50, %51 : vector<8x25xf32>
    %c0_22 = arith.constant 0 : index
    %c0_23 = arith.constant 0 : index
    %53 = vector.load %arg8[%c0_22, %c0_23] : memref<16x50xf32, #tpu.memory_space<vmem>>, vector<8x25xf32>
    tpu.vector_store %arg8[%c0_22, %c0_23], %49 {strides = array<i32>} : memref<16x50xf32, #tpu.memory_space<vmem>>, vector<8x25xf32>,
    %c8 = arith.constant 8 : index
    %c25 = arith.constant 25 : index
    %54 = vector.load %arg8[%c8, %c25] : memref<16x50xf32, #tpu.memory_space<vmem>>, vector<8x25xf32>
    tpu.vector_store %arg8[%c8, %c25], %52 {strides = array<i32>} : memref<16x50xf32, #tpu.memory_space<vmem>>, vector<8x25xf32>,
    %55 = vector.extract_strided_slice %5 {offsets = [8, 0], sizes = [8, 100], strides = [1, 1]} : vector<16x100xf32> to vector<8x100xf32>
    %cst_24 = arith.constant dense<0.000000e+00> : vector<8x100xf32>
    %56 = tpu.matmul %49, %11, %cst_24 {dimension_numbers = #tpu.dot_dimension_numbers<[1], [0], [0], [1], [0, 0, 1, 1], [], []>} : vector<8x25xf32>, vector<25x100xf32>, vector<8x100xf32> -> vector<8x100xf32>
    %57 = arith.addf %55, %56 : vector<8x100xf32>
    %58 = vector.extract_strided_slice %10 {offsets = [0, 0], sizes = [8, 100], strides = [1, 1]} : vector<16x100xf32> to vector<8x100xf32>
    %cst_25 = arith.constant dense<0.000000e+00> : vector<8x100xf32>
    %59 = tpu.matmul %52, %12, %cst_25 {dimension_numbers = #tpu.dot_dimension_numbers<[1], [0], [0], [1], [0, 0, 1, 1], [], []>} : vector<8x25xf32>, vector<25x100xf32>, vector<8x100xf32> -> vector<8x100xf32>
    %60 = arith.addf %58, %59 : vector<8x100xf32>
    %61 = arith.negf %57 : vector<8x100xf32>
    %62 = math.exp %61 : vector<8x100xf32>
    %cst_26 = arith.constant 1.000000e+00 : f32
    %63 = vector.broadcast %cst_26 : f32 to vector<8x100xf32>
    %64 = arith.addf %63, %62 : vector<8x100xf32>
    %65 = arith.divf %63, %64 : vector<8x100xf32>
    %66 = arith.negf %60 : vector<8x100xf32>
    %67 = math.exp %66 : vector<8x100xf32>
    %cst_27 = arith.constant 1.000000e+00 : f32
    %68 = vector.broadcast %cst_27 : f32 to vector<8x100xf32>
    %69 = arith.addf %68, %67 : vector<8x100xf32>
    %70 = arith.divf %68, %69 : vector<8x100xf32>
    %71 = vector.extract_strided_slice %65 {offsets = [0, 25], sizes = [8, 25], strides = [1, 1]} : vector<8x100xf32> to vector<8x25xf32>
    %72 = arith.mulf %71, %39 : vector<8x25xf32>
    %73 = vector.extract_strided_slice %65 {offsets = [0, 0], sizes = [8, 25], strides = [1, 1]} : vector<8x100xf32> to vector<8x25xf32>
    %74 = vector.extract_strided_slice %57 {offsets = [0, 50], sizes = [8, 25], strides = [1, 1]} : vector<8x100xf32> to vector<8x25xf32>
    %75 = math.tanh %74 : vector<8x25xf32>
    %76 = arith.mulf %73, %75 : vector<8x25xf32>
    %77 = arith.addf %72, %76 : vector<8x25xf32>
    %78 = vector.extract_strided_slice %70 {offsets = [0, 25], sizes = [8, 25], strides = [1, 1]} : vector<8x100xf32> to vector<8x25xf32>
    %79 = arith.mulf %78, %46 : vector<8x25xf32>
    %80 = vector.extract_strided_slice %70 {offsets = [0, 0], sizes = [8, 25], strides = [1, 1]} : vector<8x100xf32> to vector<8x25xf32>
    %81 = vector.extract_strided_slice %60 {offsets = [0, 50], sizes = [8, 25], strides = [1, 1]} : vector<8x100xf32> to vector<8x25xf32>
    %82 = math.tanh %81 : vector<8x25xf32>
    %83 = arith.mulf %80, %82 : vector<8x25xf32>
    %84 = arith.addf %79, %83 : vector<8x25xf32>
    %85 = vector.extract_strided_slice %65 {offsets = [0, 75], sizes = [8, 25], strides = [1, 1]} : vector<8x100xf32> to vector<8x25xf32>
    %86 = math.tanh %77 : vector<8x25xf32>
    %87 = arith.mulf %85, %86 : vector<8x25xf32>
    %88 = vector.extract_strided_slice %70 {offsets = [0, 75], sizes = [8, 25], strides = [1, 1]} : vector<8x100xf32> to vector<8x25xf32>
    %89 = math.tanh %84 : vector<8x25xf32>
    %90 = arith.mulf %88, %89 : vector<8x25xf32>
    %c8_28 = arith.constant 8 : index
    %c0_29 = arith.constant 0 : index
    %91 = vector.load %arg8[%c8_28, %c0_29] : memref<16x50xf32, #tpu.memory_space<vmem>>, vector<8x25xf32>
    tpu.vector_store %arg8[%c8_28, %c0_29], %87 {strides = array<i32>} : memref<16x50xf32, #tpu.memory_space<vmem>>, vector<8x25xf32>,
    %c0_30 = arith.constant 0 : index
    %c25_31 = arith.constant 25 : index
    %92 = vector.load %arg8[%c0_30, %c25_31] : memref<16x50xf32, #tpu.memory_space<vmem>>, vector<8x25xf32>
    tpu.vector_store %arg8[%c0_30, %c25_31], %90 {strides = array<i32>} : memref<16x50xf32, #tpu.memory_space<vmem>>, vector<8x25xf32>,
    return
  }
  func.func @transform_0(%arg0: i32) -> (i32, i32) {
    %c0_i32 = arith.constant 0 : i32
    %c0_i32_0 = arith.constant 0 : i32
    return %arg0, %c0_i32 : i32, i32
  }
  func.func @transform_1(%arg0: i32) -> (i32, i32) {
    %c0_i32 = arith.constant 0 : i32
    %c0_i32_0 = arith.constant 0 : i32
    %c0_i32_1 = arith.constant 0 : i32
    return %c0_i32, %c0_i32_0 : i32, i32
  }
  func.func @transform_2(%arg0: i32) -> (i32, i32) {
    %c0_i32 = arith.constant 0 : i32
    %c0_i32_0 = arith.constant 0 : i32
    %c0_i32_1 = arith.constant 0 : i32
    return %c0_i32, %c0_i32_0 : i32, i32
  }
  func.func @transform_3(%arg0: i32) -> (i32, i32) {
    %c0_i32 = arith.constant 0 : i32
    %c0_i32_0 = arith.constant 0 : i32
    %c0_i32_1 = arith.constant 0 : i32
    return %c0_i32, %c0_i32_0 : i32, i32
  }
  func.func @transform_4(%arg0: i32) -> (i32, i32) {
    %c0_i32 = arith.constant 0 : i32
    %c0_i32_0 = arith.constant 0 : i32
    %c0_i32_1 = arith.constant 0 : i32
    return %c0_i32, %c0_i32_0 : i32, i32
  }
  func.func @transform_5(%arg0: i32) -> (i32, i32) {
    %c0_i32 = arith.constant 0 : i32
    %c0_i32_0 = arith.constant 0 : i32
    %c0_i32_1 = arith.constant 0 : i32
    return %c0_i32, %c0_i32_0 : i32, i32
  }
  func.func @transform_6(%arg0: i32) -> (i32, i32) {
    %c0_i32 = arith.constant 0 : i32
    %c0_i32_0 = arith.constant 0 : i32
    %c0_i32_1 = arith.constant 0 : i32
    return %c0_i32, %c0_i32_0 : i32, i32
  }
  func.func @transform_7(%arg0: i32) -> (i32, i32) {
    %c0_i32 = arith.constant 0 : i32
    %c0_i32_0 = arith.constant 0 : i32
    return %arg0, %c0_i32 : i32, i32
  }
}

module attributes {stable_mosaic.version = 11 : i64} {
  func.func @kernel(%arg0: memref<32x50xf32, #tpu.memory_space<vmem>>, %arg1: memref<50x50xf32, #tpu.memory_space<vmem>>, %arg2: memref<1x50xf32, #tpu.memory_space<vmem>>, %arg3: memref<50x1xf32, #tpu.memory_space<vmem>>, %arg4: memref<8x50xf32, #tpu.memory_space<vmem>>) attributes {dimension_semantics = [], scalar_prefetch = 0 : i64, scratch_operands = 0 : i64, tpu.core_type = #tpu.core_type<tc>} {
    %c0 = arith.constant 0 : index
    %c0_0 = arith.constant 0 : index
    %0 = vector.load %arg0[%c0, %c0_0] : memref<32x50xf32, #tpu.memory_space<vmem>>, vector<32x50xf32>
    %c0_1 = arith.constant 0 : index
    %c0_2 = arith.constant 0 : index
    %1 = vector.load %arg1[%c0_1, %c0_2] : memref<50x50xf32, #tpu.memory_space<vmem>>, vector<50x50xf32>
    %c0_3 = arith.constant 0 : index
    %c0_4 = arith.constant 0 : index
    %2 = vector.load %arg2[%c0_3, %c0_4] : memref<1x50xf32, #tpu.memory_space<vmem>>, vector<1x50xf32>
    %c0_5 = arith.constant 0 : index
    %c0_6 = arith.constant 0 : index
    %3 = vector.load %arg3[%c0_5, %c0_6] : memref<50x1xf32, #tpu.memory_space<vmem>>, vector<50x1xf32>
    %cst = arith.constant dense<0.000000e+00> : vector<32x50xf32>
    %4 = tpu.matmul %0, %1, %cst {dimension_numbers = #tpu.dot_dimension_numbers<[1], [0], [0], [1], [0, 0, 1, 1], [], []>} : vector<32x50xf32>, vector<50x50xf32>, vector<32x50xf32> -> vector<32x50xf32>
    %5 = vector.broadcast %2 : vector<1x50xf32> to vector<32x50xf32>
    %6 = arith.addf %4, %5 : vector<32x50xf32>
    %7 = math.tanh %6 : vector<32x50xf32>
    %cst_7 = arith.constant dense<0.000000e+00> : vector<32x1xf32>
    %8 = tpu.matmul %7, %3, %cst_7 {dimension_numbers = #tpu.dot_dimension_numbers<[1], [0], [0], [1], [0, 0, 1, 1], [], []>} : vector<32x50xf32>, vector<50x1xf32>, vector<32x1xf32> -> vector<32x1xf32>
    %9 = vector.extract_strided_slice %8 {offsets = [0, 0], sizes = [8, 1], strides = [1, 1]} : vector<32x1xf32> to vector<8x1xf32>
    %10 = vector.extract_strided_slice %8 {offsets = [8, 0], sizes = [8, 1], strides = [1, 1]} : vector<32x1xf32> to vector<8x1xf32>
    %11 = vector.extract_strided_slice %8 {offsets = [16, 0], sizes = [8, 1], strides = [1, 1]} : vector<32x1xf32> to vector<8x1xf32>
    %12 = vector.extract_strided_slice %8 {offsets = [24, 0], sizes = [8, 1], strides = [1, 1]} : vector<32x1xf32> to vector<8x1xf32>
    %13 = arith.maximumf %9, %10 : vector<8x1xf32>
    %14 = arith.maximumf %13, %11 : vector<8x1xf32>
    %15 = arith.maximumf %14, %12 : vector<8x1xf32>
    %16 = arith.subf %9, %15 : vector<8x1xf32>
    %17 = math.exp %16 : vector<8x1xf32>
    %18 = arith.subf %10, %15 : vector<8x1xf32>
    %19 = math.exp %18 : vector<8x1xf32>
    %20 = arith.subf %11, %15 : vector<8x1xf32>
    %21 = math.exp %20 : vector<8x1xf32>
    %22 = arith.subf %12, %15 : vector<8x1xf32>
    %23 = math.exp %22 : vector<8x1xf32>
    %24 = arith.addf %17, %19 : vector<8x1xf32>
    %25 = arith.addf %24, %21 : vector<8x1xf32>
    %26 = arith.addf %25, %23 : vector<8x1xf32>
    %27 = tpu.reciprocal %26 {approx = true} : vector<8x1xf32> -> vector<8x1xf32>
    %28 = arith.mulf %17, %27 : vector<8x1xf32>
    %29 = vector.extract_strided_slice %0 {offsets = [0, 0], sizes = [8, 50], strides = [1, 1]} : vector<32x50xf32> to vector<8x50xf32>
    %30 = vector.broadcast %28 : vector<8x1xf32> to vector<8x50xf32>
    %31 = arith.mulf %30, %29 : vector<8x50xf32>
    %32 = arith.mulf %19, %27 : vector<8x1xf32>
    %33 = vector.extract_strided_slice %0 {offsets = [8, 0], sizes = [8, 50], strides = [1, 1]} : vector<32x50xf32> to vector<8x50xf32>
    %34 = vector.broadcast %32 : vector<8x1xf32> to vector<8x50xf32>
    %35 = arith.mulf %34, %33 : vector<8x50xf32>
    %36 = arith.addf %31, %35 : vector<8x50xf32>
    %37 = arith.mulf %21, %27 : vector<8x1xf32>
    %38 = vector.extract_strided_slice %0 {offsets = [16, 0], sizes = [8, 50], strides = [1, 1]} : vector<32x50xf32> to vector<8x50xf32>
    %39 = vector.broadcast %37 : vector<8x1xf32> to vector<8x50xf32>
    %40 = arith.mulf %39, %38 : vector<8x50xf32>
    %41 = arith.addf %36, %40 : vector<8x50xf32>
    %42 = arith.mulf %23, %27 : vector<8x1xf32>
    %43 = vector.extract_strided_slice %0 {offsets = [24, 0], sizes = [8, 50], strides = [1, 1]} : vector<32x50xf32> to vector<8x50xf32>
    %44 = vector.broadcast %42 : vector<8x1xf32> to vector<8x50xf32>
    %45 = arith.mulf %44, %43 : vector<8x50xf32>
    %46 = arith.addf %41, %45 : vector<8x50xf32>
    %c0_8 = arith.constant 0 : index
    %c0_9 = arith.constant 0 : index
    %47 = vector.load %arg4[%c0_8, %c0_9] : memref<8x50xf32, #tpu.memory_space<vmem>>, vector<8x50xf32>
    tpu.vector_store %arg4[%c0_8, %c0_9], %46 {strides = array<i32>} : memref<8x50xf32, #tpu.memory_space<vmem>>, vector<8x50xf32>,
    return
  }
}

module attributes {stable_mosaic.version = 11 : i64} {
  func.func @kernel(%arg0: i32, %arg1: memref<48x25xf32, #tpu.memory_space<vmem>>, %arg2: memref<25x100xf32, #tpu.memory_space<vmem>>, %arg3: memref<25x100xf32, #tpu.memory_space<vmem>>, %arg4: memref<1x100xf32, #tpu.memory_space<vmem>>, %arg5: memref<25x100xf32, #tpu.memory_space<vmem>>, %arg6: memref<25x100xf32, #tpu.memory_space<vmem>>, %arg7: memref<1x100xf32, #tpu.memory_space<vmem>>, %arg8: memref<50x50xf32, #tpu.memory_space<vmem>>, %arg9: memref<1x50xf32, #tpu.memory_space<vmem>>, %arg10: memref<50x1xf32, #tpu.memory_space<vmem>>, %arg11: memref<8x50xf32, #tpu.memory_space<vmem>>, %arg12: memref<48x50xf32, #tpu.memory_space<vmem>>) attributes {dimension_semantics = [#tpu.dimension_semantics<parallel>], iteration_bounds = array<i64: 1>, scalar_prefetch = 0 : i64, scratch_operands = 1 : i64, tpu.core_type = #tpu.core_type<tc>, window_params = [{transform_indices = @transform_0, window_bounds = array<i64: 48, 25>}, {pipeline_mode = #tpu.pipeline_mode<synchronous>, transform_indices = @transform_1, window_bounds = array<i64: 25, 100>}, {pipeline_mode = #tpu.pipeline_mode<synchronous>, transform_indices = @transform_2, window_bounds = array<i64: 25, 100>}, {pipeline_mode = #tpu.pipeline_mode<synchronous>, transform_indices = @transform_3, window_bounds = array<i64: 1, 100>}, {pipeline_mode = #tpu.pipeline_mode<synchronous>, transform_indices = @transform_4, window_bounds = array<i64: 25, 100>}, {pipeline_mode = #tpu.pipeline_mode<synchronous>, transform_indices = @transform_5, window_bounds = array<i64: 25, 100>}, {pipeline_mode = #tpu.pipeline_mode<synchronous>, transform_indices = @transform_6, window_bounds = array<i64: 1, 100>}, {pipeline_mode = #tpu.pipeline_mode<synchronous>, transform_indices = @transform_7, window_bounds = array<i64: 50, 50>}, {pipeline_mode = #tpu.pipeline_mode<synchronous>, transform_indices = @transform_8, window_bounds = array<i64: 1, 50>}, {pipeline_mode = #tpu.pipeline_mode<synchronous>, transform_indices = @transform_9, window_bounds = array<i64: 50, 1>}, {transform_indices = @transform_10, window_bounds = array<i64: 8, 50>}]} {
    %c0 = arith.constant 0 : index
    %c0_0 = arith.constant 0 : index
    %0 = vector.load %arg1[%c0, %c0_0] : memref<48x25xf32, #tpu.memory_space<vmem>>, vector<48x25xf32>
    %c0_1 = arith.constant 0 : index
    %c0_2 = arith.constant 0 : index
    %1 = vector.load %arg2[%c0_1, %c0_2] : memref<25x100xf32, #tpu.memory_space<vmem>>, vector<25x100xf32>
    %cst = arith.constant dense<0.000000e+00> : vector<48x100xf32>
    %2 = tpu.matmul %0, %1, %cst {dimension_numbers = #tpu.dot_dimension_numbers<[1], [0], [0], [1], [0, 0, 1, 1], [], []>} : vector<48x25xf32>, vector<25x100xf32>, vector<48x100xf32> -> vector<48x100xf32>
    %c0_3 = arith.constant 0 : index
    %c0_4 = arith.constant 0 : index
    %3 = vector.load %arg4[%c0_3, %c0_4] : memref<1x100xf32, #tpu.memory_space<vmem>>, vector<1x100xf32>
    %4 = vector.broadcast %3 : vector<1x100xf32> to vector<48x100xf32>
    %5 = arith.addf %2, %4 : vector<48x100xf32>
    %c0_5 = arith.constant 0 : index
    %c0_6 = arith.constant 0 : index
    %6 = vector.load %arg5[%c0_5, %c0_6] : memref<25x100xf32, #tpu.memory_space<vmem>>, vector<25x100xf32>
    %cst_7 = arith.constant dense<0.000000e+00> : vector<48x100xf32>
    %7 = tpu.matmul %0, %6, %cst_7 {dimension_numbers = #tpu.dot_dimension_numbers<[1], [0], [0], [1], [0, 0, 1, 1], [], []>} : vector<48x25xf32>, vector<25x100xf32>, vector<48x100xf32> -> vector<48x100xf32>
    %c0_8 = arith.constant 0 : index
    %c0_9 = arith.constant 0 : index
    %8 = vector.load %arg7[%c0_8, %c0_9] : memref<1x100xf32, #tpu.memory_space<vmem>>, vector<1x100xf32>
    %9 = vector.broadcast %8 : vector<1x100xf32> to vector<48x100xf32>
    %10 = arith.addf %7, %9 : vector<48x100xf32>
    %c0_10 = arith.constant 0 : index
    %c0_11 = arith.constant 0 : index
    %11 = vector.load %arg3[%c0_10, %c0_11] : memref<25x100xf32, #tpu.memory_space<vmem>>, vector<25x100xf32>
    %c0_12 = arith.constant 0 : index
    %c0_13 = arith.constant 0 : index
    %12 = vector.load %arg6[%c0_12, %c0_13] : memref<25x100xf32, #tpu.memory_space<vmem>>, vector<25x100xf32>
    %cst_14 = arith.constant 0.000000e+00 : f32
    %13 = vector.broadcast %cst_14 : f32 to vector<8x25xf32>
    %cst_15 = arith.constant 0.000000e+00 : f32
    %14 = vector.broadcast %cst_15 : f32 to vector<8x25xf32>
    %cst_16 = arith.constant 0.000000e+00 : f32
    %15 = vector.broadcast %cst_16 : f32 to vector<8x25xf32>
    %cst_17 = arith.constant 0.000000e+00 : f32
    %16 = vector.broadcast %cst_17 : f32 to vector<8x25xf32>
    %17 = vector.extract_strided_slice %5 {offsets = [0, 0], sizes = [8, 100], strides = [1, 1]} : vector<48x100xf32> to vector<8x100xf32>
    %cst_18 = arith.constant dense<0.000000e+00> : vector<8x100xf32>
    %18 = tpu.matmul %13, %11, %cst_18 {dimension_numbers = #tpu.dot_dimension_numbers<[1], [0], [0], [1], [0, 0, 1, 1], [], []>} : vector<8x25xf32>, vector<25x100xf32>, vector<8x100xf32> -> vector<8x100xf32>
    %19 = arith.addf %17, %18 : vector<8x100xf32>
    %20 = vector.extract_strided_slice %10 {offsets = [40, 0], sizes = [8, 100], strides = [1, 1]} : vector<48x100xf32> to vector<8x100xf32>
    %cst_19 = arith.constant dense<0.000000e+00> : vector<8x100xf32>
    %21 = tpu.matmul %15, %12, %cst_19 {dimension_numbers = #tpu.dot_dimension_numbers<[1], [0], [0], [1], [0, 0, 1, 1], [], []>} : vector<8x25xf32>, vector<25x100xf32>, vector<8x100xf32> -> vector<8x100xf32>
    %22 = arith.addf %20, %21 : vector<8x100xf32>
    %23 = arith.negf %19 : vector<8x100xf32>
    %24 = math.exp %23 : vector<8x100xf32>
    %cst_20 = arith.constant 1.000000e+00 : f32
    %25 = vector.broadcast %cst_20 : f32 to vector<8x100xf32>
    %26 = arith.addf %25, %24 : vector<8x100xf32>
    %27 = arith.divf %25, %26 : vector<8x100xf32>
    %28 = arith.negf %22 : vector<8x100xf32>
    %29 = math.exp %28 : vector<8x100xf32>
    %cst_21 = arith.constant 1.000000e+00 : f32
    %30 = vector.broadcast %cst_21 : f32 to vector<8x100xf32>
    %31 = arith.addf %30, %29 : vector<8x100xf32>
    %32 = arith.divf %30, %31 : vector<8x100xf32>
    %33 = vector.extract_strided_slice %27 {offsets = [0, 25], sizes = [8, 25], strides = [1, 1]} : vector<8x100xf32> to vector<8x25xf32>
    %34 = arith.mulf %33, %14 : vector<8x25xf32>
    %35 = vector.extract_strided_slice %27 {offsets = [0, 0], sizes = [8, 25], strides = [1, 1]} : vector<8x100xf32> to vector<8x25xf32>
    %36 = vector.extract_strided_slice %19 {offsets = [0, 50], sizes = [8, 25], strides = [1, 1]} : vector<8x100xf32> to vector<8x25xf32>
    %37 = math.tanh %36 : vector<8x25xf32>
    %38 = arith.mulf %35, %37 : vector<8x25xf32>
    %39 = arith.addf %34, %38 : vector<8x25xf32>
    %40 = vector.extract_strided_slice %32 {offsets = [0, 25], sizes = [8, 25], strides = [1, 1]} : vector<8x100xf32> to vector<8x25xf32>
    %41 = arith.mulf %40, %16 : vector<8x25xf32>
    %42 = vector.extract_strided_slice %32 {offsets = [0, 0], sizes = [8, 25], strides = [1, 1]} : vector<8x100xf32> to vector<8x25xf32>
    %43 = vector.extract_strided_slice %22 {offsets = [0, 50], sizes = [8, 25], strides = [1, 1]} : vector<8x100xf32> to vector<8x25xf32>
    %44 = math.tanh %43 : vector<8x25xf32>
    %45 = arith.mulf %42, %44 : vector<8x25xf32>
    %46 = arith.addf %41, %45 : vector<8x25xf32>
    %47 = vector.extract_strided_slice %27 {offsets = [0, 75], sizes = [8, 25], strides = [1, 1]} : vector<8x100xf32> to vector<8x25xf32>
    %48 = math.tanh %39 : vector<8x25xf32>
    %49 = arith.mulf %47, %48 : vector<8x25xf32>
    %50 = vector.extract_strided_slice %32 {offsets = [0, 75], sizes = [8, 25], strides = [1, 1]} : vector<8x100xf32> to vector<8x25xf32>
    %51 = math.tanh %46 : vector<8x25xf32>
    %52 = arith.mulf %50, %51 : vector<8x25xf32>
    %c0_22 = arith.constant 0 : index
    %c0_23 = arith.constant 0 : index
    %53 = vector.load %arg12[%c0_22, %c0_23] : memref<48x50xf32, #tpu.memory_space<vmem>>, vector<8x25xf32>
    tpu.vector_store %arg12[%c0_22, %c0_23], %49 {strides = array<i32>} : memref<48x50xf32, #tpu.memory_space<vmem>>, vector<8x25xf32>,
    %c40 = arith.constant 40 : index
    %c25 = arith.constant 25 : index
    %54 = vector.load %arg12[%c40, %c25] : memref<48x50xf32, #tpu.memory_space<vmem>>, vector<8x25xf32>
    tpu.vector_store %arg12[%c40, %c25], %52 {strides = array<i32>} : memref<48x50xf32, #tpu.memory_space<vmem>>, vector<8x25xf32>,
    %55 = vector.extract_strided_slice %5 {offsets = [8, 0], sizes = [8, 100], strides = [1, 1]} : vector<48x100xf32> to vector<8x100xf32>
    %cst_24 = arith.constant dense<0.000000e+00> : vector<8x100xf32>
    %56 = tpu.matmul %49, %11, %cst_24 {dimension_numbers = #tpu.dot_dimension_numbers<[1], [0], [0], [1], [0, 0, 1, 1], [], []>} : vector<8x25xf32>, vector<25x100xf32>, vector<8x100xf32> -> vector<8x100xf32>
    %57 = arith.addf %55, %56 : vector<8x100xf32>
    %58 = vector.extract_strided_slice %10 {offsets = [32, 0], sizes = [8, 100], strides = [1, 1]} : vector<48x100xf32> to vector<8x100xf32>
    %cst_25 = arith.constant dense<0.000000e+00> : vector<8x100xf32>
    %59 = tpu.matmul %52, %12, %cst_25 {dimension_numbers = #tpu.dot_dimension_numbers<[1], [0], [0], [1], [0, 0, 1, 1], [], []>} : vector<8x25xf32>, vector<25x100xf32>, vector<8x100xf32> -> vector<8x100xf32>
    %60 = arith.addf %58, %59 : vector<8x100xf32>
    %61 = arith.negf %57 : vector<8x100xf32>
    %62 = math.exp %61 : vector<8x100xf32>
    %cst_26 = arith.constant 1.000000e+00 : f32
    %63 = vector.broadcast %cst_26 : f32 to vector<8x100xf32>
    %64 = arith.addf %63, %62 : vector<8x100xf32>
    %65 = arith.divf %63, %64 : vector<8x100xf32>
    %66 = arith.negf %60 : vector<8x100xf32>
    %67 = math.exp %66 : vector<8x100xf32>
    %cst_27 = arith.constant 1.000000e+00 : f32
    %68 = vector.broadcast %cst_27 : f32 to vector<8x100xf32>
    %69 = arith.addf %68, %67 : vector<8x100xf32>
    %70 = arith.divf %68, %69 : vector<8x100xf32>
    %71 = vector.extract_strided_slice %65 {offsets = [0, 25], sizes = [8, 25], strides = [1, 1]} : vector<8x100xf32> to vector<8x25xf32>
    %72 = arith.mulf %71, %39 : vector<8x25xf32>
    %73 = vector.extract_strided_slice %65 {offsets = [0, 0], sizes = [8, 25], strides = [1, 1]} : vector<8x100xf32> to vector<8x25xf32>
    %74 = vector.extract_strided_slice %57 {offsets = [0, 50], sizes = [8, 25], strides = [1, 1]} : vector<8x100xf32> to vector<8x25xf32>
    %75 = math.tanh %74 : vector<8x25xf32>
    %76 = arith.mulf %73, %75 : vector<8x25xf32>
    %77 = arith.addf %72, %76 : vector<8x25xf32>
    %78 = vector.extract_strided_slice %70 {offsets = [0, 25], sizes = [8, 25], strides = [1, 1]} : vector<8x100xf32> to vector<8x25xf32>
    %79 = arith.mulf %78, %46 : vector<8x25xf32>
    %80 = vector.extract_strided_slice %70 {offsets = [0, 0], sizes = [8, 25], strides = [1, 1]} : vector<8x100xf32> to vector<8x25xf32>
    %81 = vector.extract_strided_slice %60 {offsets = [0, 50], sizes = [8, 25], strides = [1, 1]} : vector<8x100xf32> to vector<8x25xf32>
    %82 = math.tanh %81 : vector<8x25xf32>
    %83 = arith.mulf %80, %82 : vector<8x25xf32>
    %84 = arith.addf %79, %83 : vector<8x25xf32>
    %85 = vector.extract_strided_slice %65 {offsets = [0, 75], sizes = [8, 25], strides = [1, 1]} : vector<8x100xf32> to vector<8x25xf32>
    %86 = math.tanh %77 : vector<8x25xf32>
    %87 = arith.mulf %85, %86 : vector<8x25xf32>
    %88 = vector.extract_strided_slice %70 {offsets = [0, 75], sizes = [8, 25], strides = [1, 1]} : vector<8x100xf32> to vector<8x25xf32>
    %89 = math.tanh %84 : vector<8x25xf32>
    %90 = arith.mulf %88, %89 : vector<8x25xf32>
    %c8 = arith.constant 8 : index
    %c0_28 = arith.constant 0 : index
    %91 = vector.load %arg12[%c8, %c0_28] : memref<48x50xf32, #tpu.memory_space<vmem>>, vector<8x25xf32>
    tpu.vector_store %arg12[%c8, %c0_28], %87 {strides = array<i32>} : memref<48x50xf32, #tpu.memory_space<vmem>>, vector<8x25xf32>,
    %c32 = arith.constant 32 : index
    %c25_29 = arith.constant 25 : index
    %92 = vector.load %arg12[%c32, %c25_29] : memref<48x50xf32, #tpu.memory_space<vmem>>, vector<8x25xf32>
    tpu.vector_store %arg12[%c32, %c25_29], %90 {strides = array<i32>} : memref<48x50xf32, #tpu.memory_space<vmem>>, vector<8x25xf32>,
    %93 = vector.extract_strided_slice %5 {offsets = [16, 0], sizes = [8, 100], strides = [1, 1]} : vector<48x100xf32> to vector<8x100xf32>
    %cst_30 = arith.constant dense<0.000000e+00> : vector<8x100xf32>
    %94 = tpu.matmul %87, %11, %cst_30 {dimension_numbers = #tpu.dot_dimension_numbers<[1], [0], [0], [1], [0, 0, 1, 1], [], []>} : vector<8x25xf32>, vector<25x100xf32>, vector<8x100xf32> -> vector<8x100xf32>
    %95 = arith.addf %93, %94 : vector<8x100xf32>
    %96 = vector.extract_strided_slice %10 {offsets = [24, 0], sizes = [8, 100], strides = [1, 1]} : vector<48x100xf32> to vector<8x100xf32>
    %cst_31 = arith.constant dense<0.000000e+00> : vector<8x100xf32>
    %97 = tpu.matmul %90, %12, %cst_31 {dimension_numbers = #tpu.dot_dimension_numbers<[1], [0], [0], [1], [0, 0, 1, 1], [], []>} : vector<8x25xf32>, vector<25x100xf32>, vector<8x100xf32> -> vector<8x100xf32>
    %98 = arith.addf %96, %97 : vector<8x100xf32>
    %99 = arith.negf %95 : vector<8x100xf32>
    %100 = math.exp %99 : vector<8x100xf32>
    %cst_32 = arith.constant 1.000000e+00 : f32
    %101 = vector.broadcast %cst_32 : f32 to vector<8x100xf32>
    %102 = arith.addf %101, %100 : vector<8x100xf32>
    %103 = arith.divf %101, %102 : vector<8x100xf32>
    %104 = arith.negf %98 : vector<8x100xf32>
    %105 = math.exp %104 : vector<8x100xf32>
    %cst_33 = arith.constant 1.000000e+00 : f32
    %106 = vector.broadcast %cst_33 : f32 to vector<8x100xf32>
    %107 = arith.addf %106, %105 : vector<8x100xf32>
    %108 = arith.divf %106, %107 : vector<8x100xf32>
    %109 = vector.extract_strided_slice %103 {offsets = [0, 25], sizes = [8, 25], strides = [1, 1]} : vector<8x100xf32> to vector<8x25xf32>
    %110 = arith.mulf %109, %77 : vector<8x25xf32>
    %111 = vector.extract_strided_slice %103 {offsets = [0, 0], sizes = [8, 25], strides = [1, 1]} : vector<8x100xf32> to vector<8x25xf32>
    %112 = vector.extract_strided_slice %95 {offsets = [0, 50], sizes = [8, 25], strides = [1, 1]} : vector<8x100xf32> to vector<8x25xf32>
    %113 = math.tanh %112 : vector<8x25xf32>
    %114 = arith.mulf %111, %113 : vector<8x25xf32>
    %115 = arith.addf %110, %114 : vector<8x25xf32>
    %116 = vector.extract_strided_slice %108 {offsets = [0, 25], sizes = [8, 25], strides = [1, 1]} : vector<8x100xf32> to vector<8x25xf32>
    %117 = arith.mulf %116, %84 : vector<8x25xf32>
    %118 = vector.extract_strided_slice %108 {offsets = [0, 0], sizes = [8, 25], strides = [1, 1]} : vector<8x100xf32> to vector<8x25xf32>
    %119 = vector.extract_strided_slice %98 {offsets = [0, 50], sizes = [8, 25], strides = [1, 1]} : vector<8x100xf32> to vector<8x25xf32>
    %120 = math.tanh %119 : vector<8x25xf32>
    %121 = arith.mulf %118, %120 : vector<8x25xf32>
    %122 = arith.addf %117, %121 : vector<8x25xf32>
    %123 = vector.extract_strided_slice %103 {offsets = [0, 75], sizes = [8, 25], strides = [1, 1]} : vector<8x100xf32> to vector<8x25xf32>
    %124 = math.tanh %115 : vector<8x25xf32>
    %125 = arith.mulf %123, %124 : vector<8x25xf32>
    %126 = vector.extract_strided_slice %108 {offsets = [0, 75], sizes = [8, 25], strides = [1, 1]} : vector<8x100xf32> to vector<8x25xf32>
    %127 = math.tanh %122 : vector<8x25xf32>
    %128 = arith.mulf %126, %127 : vector<8x25xf32>
    %c16 = arith.constant 16 : index
    %c0_34 = arith.constant 0 : index
    %129 = vector.load %arg12[%c16, %c0_34] : memref<48x50xf32, #tpu.memory_space<vmem>>, vector<8x25xf32>
    tpu.vector_store %arg12[%c16, %c0_34], %125 {strides = array<i32>} : memref<48x50xf32, #tpu.memory_space<vmem>>, vector<8x25xf32>,
    %c24 = arith.constant 24 : index
    %c25_35 = arith.constant 25 : index
    %130 = vector.load %arg12[%c24, %c25_35] : memref<48x50xf32, #tpu.memory_space<vmem>>, vector<8x25xf32>
    tpu.vector_store %arg12[%c24, %c25_35], %128 {strides = array<i32>} : memref<48x50xf32, #tpu.memory_space<vmem>>, vector<8x25xf32>,
    %131 = vector.extract_strided_slice %5 {offsets = [24, 0], sizes = [8, 100], strides = [1, 1]} : vector<48x100xf32> to vector<8x100xf32>
    %cst_36 = arith.constant dense<0.000000e+00> : vector<8x100xf32>
    %132 = tpu.matmul %125, %11, %cst_36 {dimension_numbers = #tpu.dot_dimension_numbers<[1], [0], [0], [1], [0, 0, 1, 1], [], []>} : vector<8x25xf32>, vector<25x100xf32>, vector<8x100xf32> -> vector<8x100xf32>
    %133 = arith.addf %131, %132 : vector<8x100xf32>
    %134 = vector.extract_strided_slice %10 {offsets = [16, 0], sizes = [8, 100], strides = [1, 1]} : vector<48x100xf32> to vector<8x100xf32>
    %cst_37 = arith.constant dense<0.000000e+00> : vector<8x100xf32>
    %135 = tpu.matmul %128, %12, %cst_37 {dimension_numbers = #tpu.dot_dimension_numbers<[1], [0], [0], [1], [0, 0, 1, 1], [], []>} : vector<8x25xf32>, vector<25x100xf32>, vector<8x100xf32> -> vector<8x100xf32>
    %136 = arith.addf %134, %135 : vector<8x100xf32>
    %137 = arith.negf %133 : vector<8x100xf32>
    %138 = math.exp %137 : vector<8x100xf32>
    %cst_38 = arith.constant 1.000000e+00 : f32
    %139 = vector.broadcast %cst_38 : f32 to vector<8x100xf32>
    %140 = arith.addf %139, %138 : vector<8x100xf32>
    %141 = arith.divf %139, %140 : vector<8x100xf32>
    %142 = arith.negf %136 : vector<8x100xf32>
    %143 = math.exp %142 : vector<8x100xf32>
    %cst_39 = arith.constant 1.000000e+00 : f32
    %144 = vector.broadcast %cst_39 : f32 to vector<8x100xf32>
    %145 = arith.addf %144, %143 : vector<8x100xf32>
    %146 = arith.divf %144, %145 : vector<8x100xf32>
    %147 = vector.extract_strided_slice %141 {offsets = [0, 25], sizes = [8, 25], strides = [1, 1]} : vector<8x100xf32> to vector<8x25xf32>
    %148 = arith.mulf %147, %115 : vector<8x25xf32>
    %149 = vector.extract_strided_slice %141 {offsets = [0, 0], sizes = [8, 25], strides = [1, 1]} : vector<8x100xf32> to vector<8x25xf32>
    %150 = vector.extract_strided_slice %133 {offsets = [0, 50], sizes = [8, 25], strides = [1, 1]} : vector<8x100xf32> to vector<8x25xf32>
    %151 = math.tanh %150 : vector<8x25xf32>
    %152 = arith.mulf %149, %151 : vector<8x25xf32>
    %153 = arith.addf %148, %152 : vector<8x25xf32>
    %154 = vector.extract_strided_slice %146 {offsets = [0, 25], sizes = [8, 25], strides = [1, 1]} : vector<8x100xf32> to vector<8x25xf32>
    %155 = arith.mulf %154, %122 : vector<8x25xf32>
    %156 = vector.extract_strided_slice %146 {offsets = [0, 0], sizes = [8, 25], strides = [1, 1]} : vector<8x100xf32> to vector<8x25xf32>
    %157 = vector.extract_strided_slice %136 {offsets = [0, 50], sizes = [8, 25], strides = [1, 1]} : vector<8x100xf32> to vector<8x25xf32>
    %158 = math.tanh %157 : vector<8x25xf32>
    %159 = arith.mulf %156, %158 : vector<8x25xf32>
    %160 = arith.addf %155, %159 : vector<8x25xf32>
    %161 = vector.extract_strided_slice %141 {offsets = [0, 75], sizes = [8, 25], strides = [1, 1]} : vector<8x100xf32> to vector<8x25xf32>
    %162 = math.tanh %153 : vector<8x25xf32>
    %163 = arith.mulf %161, %162 : vector<8x25xf32>
    %164 = vector.extract_strided_slice %146 {offsets = [0, 75], sizes = [8, 25], strides = [1, 1]} : vector<8x100xf32> to vector<8x25xf32>
    %165 = math.tanh %160 : vector<8x25xf32>
    %166 = arith.mulf %164, %165 : vector<8x25xf32>
    %c24_40 = arith.constant 24 : index
    %c0_41 = arith.constant 0 : index
    %167 = vector.load %arg12[%c24_40, %c0_41] : memref<48x50xf32, #tpu.memory_space<vmem>>, vector<8x25xf32>
    tpu.vector_store %arg12[%c24_40, %c0_41], %163 {strides = array<i32>} : memref<48x50xf32, #tpu.memory_space<vmem>>, vector<8x25xf32>,
    %c16_42 = arith.constant 16 : index
    %c25_43 = arith.constant 25 : index
    %168 = vector.load %arg12[%c16_42, %c25_43] : memref<48x50xf32, #tpu.memory_space<vmem>>, vector<8x25xf32>
    tpu.vector_store %arg12[%c16_42, %c25_43], %166 {strides = array<i32>} : memref<48x50xf32, #tpu.memory_space<vmem>>, vector<8x25xf32>,
    %169 = vector.extract_strided_slice %5 {offsets = [32, 0], sizes = [8, 100], strides = [1, 1]} : vector<48x100xf32> to vector<8x100xf32>
    %cst_44 = arith.constant dense<0.000000e+00> : vector<8x100xf32>
    %170 = tpu.matmul %163, %11, %cst_44 {dimension_numbers = #tpu.dot_dimension_numbers<[1], [0], [0], [1], [0, 0, 1, 1], [], []>} : vector<8x25xf32>, vector<25x100xf32>, vector<8x100xf32> -> vector<8x100xf32>
    %171 = arith.addf %169, %170 : vector<8x100xf32>
    %172 = vector.extract_strided_slice %10 {offsets = [8, 0], sizes = [8, 100], strides = [1, 1]} : vector<48x100xf32> to vector<8x100xf32>
    %cst_45 = arith.constant dense<0.000000e+00> : vector<8x100xf32>
    %173 = tpu.matmul %166, %12, %cst_45 {dimension_numbers = #tpu.dot_dimension_numbers<[1], [0], [0], [1], [0, 0, 1, 1], [], []>} : vector<8x25xf32>, vector<25x100xf32>, vector<8x100xf32> -> vector<8x100xf32>
    %174 = arith.addf %172, %173 : vector<8x100xf32>
    %175 = arith.negf %171 : vector<8x100xf32>
    %176 = math.exp %175 : vector<8x100xf32>
    %cst_46 = arith.constant 1.000000e+00 : f32
    %177 = vector.broadcast %cst_46 : f32 to vector<8x100xf32>
    %178 = arith.addf %177, %176 : vector<8x100xf32>
    %179 = arith.divf %177, %178 : vector<8x100xf32>
    %180 = arith.negf %174 : vector<8x100xf32>
    %181 = math.exp %180 : vector<8x100xf32>
    %cst_47 = arith.constant 1.000000e+00 : f32
    %182 = vector.broadcast %cst_47 : f32 to vector<8x100xf32>
    %183 = arith.addf %182, %181 : vector<8x100xf32>
    %184 = arith.divf %182, %183 : vector<8x100xf32>
    %185 = vector.extract_strided_slice %179 {offsets = [0, 25], sizes = [8, 25], strides = [1, 1]} : vector<8x100xf32> to vector<8x25xf32>
    %186 = arith.mulf %185, %153 : vector<8x25xf32>
    %187 = vector.extract_strided_slice %179 {offsets = [0, 0], sizes = [8, 25], strides = [1, 1]} : vector<8x100xf32> to vector<8x25xf32>
    %188 = vector.extract_strided_slice %171 {offsets = [0, 50], sizes = [8, 25], strides = [1, 1]} : vector<8x100xf32> to vector<8x25xf32>
    %189 = math.tanh %188 : vector<8x25xf32>
    %190 = arith.mulf %187, %189 : vector<8x25xf32>
    %191 = arith.addf %186, %190 : vector<8x25xf32>
    %192 = vector.extract_strided_slice %184 {offsets = [0, 25], sizes = [8, 25], strides = [1, 1]} : vector<8x100xf32> to vector<8x25xf32>
    %193 = arith.mulf %192, %160 : vector<8x25xf32>
    %194 = vector.extract_strided_slice %184 {offsets = [0, 0], sizes = [8, 25], strides = [1, 1]} : vector<8x100xf32> to vector<8x25xf32>
    %195 = vector.extract_strided_slice %174 {offsets = [0, 50], sizes = [8, 25], strides = [1, 1]} : vector<8x100xf32> to vector<8x25xf32>
    %196 = math.tanh %195 : vector<8x25xf32>
    %197 = arith.mulf %194, %196 : vector<8x25xf32>
    %198 = arith.addf %193, %197 : vector<8x25xf32>
    %199 = vector.extract_strided_slice %179 {offsets = [0, 75], sizes = [8, 25], strides = [1, 1]} : vector<8x100xf32> to vector<8x25xf32>
    %200 = math.tanh %191 : vector<8x25xf32>
    %201 = arith.mulf %199, %200 : vector<8x25xf32>
    %202 = vector.extract_strided_slice %184 {offsets = [0, 75], sizes = [8, 25], strides = [1, 1]} : vector<8x100xf32> to vector<8x25xf32>
    %203 = math.tanh %198 : vector<8x25xf32>
    %204 = arith.mulf %202, %203 : vector<8x25xf32>
    %c32_48 = arith.constant 32 : index
    %c0_49 = arith.constant 0 : index
    %205 = vector.load %arg12[%c32_48, %c0_49] : memref<48x50xf32, #tpu.memory_space<vmem>>, vector<8x25xf32>
    tpu.vector_store %arg12[%c32_48, %c0_49], %201 {strides = array<i32>} : memref<48x50xf32, #tpu.memory_space<vmem>>, vector<8x25xf32>,
    %c8_50 = arith.constant 8 : index
    %c25_51 = arith.constant 25 : index
    %206 = vector.load %arg12[%c8_50, %c25_51] : memref<48x50xf32, #tpu.memory_space<vmem>>, vector<8x25xf32>
    tpu.vector_store %arg12[%c8_50, %c25_51], %204 {strides = array<i32>} : memref<48x50xf32, #tpu.memory_space<vmem>>, vector<8x25xf32>,
    %207 = vector.extract_strided_slice %5 {offsets = [40, 0], sizes = [8, 100], strides = [1, 1]} : vector<48x100xf32> to vector<8x100xf32>
    %cst_52 = arith.constant dense<0.000000e+00> : vector<8x100xf32>
    %208 = tpu.matmul %201, %11, %cst_52 {dimension_numbers = #tpu.dot_dimension_numbers<[1], [0], [0], [1], [0, 0, 1, 1], [], []>} : vector<8x25xf32>, vector<25x100xf32>, vector<8x100xf32> -> vector<8x100xf32>
    %209 = arith.addf %207, %208 : vector<8x100xf32>
    %210 = vector.extract_strided_slice %10 {offsets = [0, 0], sizes = [8, 100], strides = [1, 1]} : vector<48x100xf32> to vector<8x100xf32>
    %cst_53 = arith.constant dense<0.000000e+00> : vector<8x100xf32>
    %211 = tpu.matmul %204, %12, %cst_53 {dimension_numbers = #tpu.dot_dimension_numbers<[1], [0], [0], [1], [0, 0, 1, 1], [], []>} : vector<8x25xf32>, vector<25x100xf32>, vector<8x100xf32> -> vector<8x100xf32>
    %212 = arith.addf %210, %211 : vector<8x100xf32>
    %213 = arith.negf %209 : vector<8x100xf32>
    %214 = math.exp %213 : vector<8x100xf32>
    %cst_54 = arith.constant 1.000000e+00 : f32
    %215 = vector.broadcast %cst_54 : f32 to vector<8x100xf32>
    %216 = arith.addf %215, %214 : vector<8x100xf32>
    %217 = arith.divf %215, %216 : vector<8x100xf32>
    %218 = arith.negf %212 : vector<8x100xf32>
    %219 = math.exp %218 : vector<8x100xf32>
    %cst_55 = arith.constant 1.000000e+00 : f32
    %220 = vector.broadcast %cst_55 : f32 to vector<8x100xf32>
    %221 = arith.addf %220, %219 : vector<8x100xf32>
    %222 = arith.divf %220, %221 : vector<8x100xf32>
    %223 = vector.extract_strided_slice %217 {offsets = [0, 25], sizes = [8, 25], strides = [1, 1]} : vector<8x100xf32> to vector<8x25xf32>
    %224 = arith.mulf %223, %191 : vector<8x25xf32>
    %225 = vector.extract_strided_slice %217 {offsets = [0, 0], sizes = [8, 25], strides = [1, 1]} : vector<8x100xf32> to vector<8x25xf32>
    %226 = vector.extract_strided_slice %209 {offsets = [0, 50], sizes = [8, 25], strides = [1, 1]} : vector<8x100xf32> to vector<8x25xf32>
    %227 = math.tanh %226 : vector<8x25xf32>
    %228 = arith.mulf %225, %227 : vector<8x25xf32>
    %229 = arith.addf %224, %228 : vector<8x25xf32>
    %230 = vector.extract_strided_slice %222 {offsets = [0, 25], sizes = [8, 25], strides = [1, 1]} : vector<8x100xf32> to vector<8x25xf32>
    %231 = arith.mulf %230, %198 : vector<8x25xf32>
    %232 = vector.extract_strided_slice %222 {offsets = [0, 0], sizes = [8, 25], strides = [1, 1]} : vector<8x100xf32> to vector<8x25xf32>
    %233 = vector.extract_strided_slice %212 {offsets = [0, 50], sizes = [8, 25], strides = [1, 1]} : vector<8x100xf32> to vector<8x25xf32>
    %234 = math.tanh %233 : vector<8x25xf32>
    %235 = arith.mulf %232, %234 : vector<8x25xf32>
    %236 = arith.addf %231, %235 : vector<8x25xf32>
    %237 = vector.extract_strided_slice %217 {offsets = [0, 75], sizes = [8, 25], strides = [1, 1]} : vector<8x100xf32> to vector<8x25xf32>
    %238 = math.tanh %229 : vector<8x25xf32>
    %239 = arith.mulf %237, %238 : vector<8x25xf32>
    %240 = vector.extract_strided_slice %222 {offsets = [0, 75], sizes = [8, 25], strides = [1, 1]} : vector<8x100xf32> to vector<8x25xf32>
    %241 = math.tanh %236 : vector<8x25xf32>
    %242 = arith.mulf %240, %241 : vector<8x25xf32>
    %c40_56 = arith.constant 40 : index
    %c0_57 = arith.constant 0 : index
    %243 = vector.load %arg12[%c40_56, %c0_57] : memref<48x50xf32, #tpu.memory_space<vmem>>, vector<8x25xf32>
    tpu.vector_store %arg12[%c40_56, %c0_57], %239 {strides = array<i32>} : memref<48x50xf32, #tpu.memory_space<vmem>>, vector<8x25xf32>,
    %c0_58 = arith.constant 0 : index
    %c25_59 = arith.constant 25 : index
    %244 = vector.load %arg12[%c0_58, %c25_59] : memref<48x50xf32, #tpu.memory_space<vmem>>, vector<8x25xf32>
    tpu.vector_store %arg12[%c0_58, %c25_59], %242 {strides = array<i32>} : memref<48x50xf32, #tpu.memory_space<vmem>>, vector<8x25xf32>,
    %c0_60 = arith.constant 0 : index
    %c0_61 = arith.constant 0 : index
    %245 = vector.load %arg12[%c0_60, %c0_61] : memref<48x50xf32, #tpu.memory_space<vmem>>, vector<48x50xf32>
    %c0_62 = arith.constant 0 : index
    %c0_63 = arith.constant 0 : index
    %246 = vector.load %arg8[%c0_62, %c0_63] : memref<50x50xf32, #tpu.memory_space<vmem>>, vector<50x50xf32>
    %c0_64 = arith.constant 0 : index
    %c0_65 = arith.constant 0 : index
    %247 = vector.load %arg9[%c0_64, %c0_65] : memref<1x50xf32, #tpu.memory_space<vmem>>, vector<1x50xf32>
    %c0_66 = arith.constant 0 : index
    %c0_67 = arith.constant 0 : index
    %248 = vector.load %arg10[%c0_66, %c0_67] : memref<50x1xf32, #tpu.memory_space<vmem>>, vector<50x1xf32>
    %cst_68 = arith.constant dense<0.000000e+00> : vector<48x50xf32>
    %249 = tpu.matmul %245, %246, %cst_68 {dimension_numbers = #tpu.dot_dimension_numbers<[1], [0], [0], [1], [0, 0, 1, 1], [], []>} : vector<48x50xf32>, vector<50x50xf32>, vector<48x50xf32> -> vector<48x50xf32>
    %250 = vector.broadcast %247 : vector<1x50xf32> to vector<48x50xf32>
    %251 = arith.addf %249, %250 : vector<48x50xf32>
    %252 = math.tanh %251 : vector<48x50xf32>
    %cst_69 = arith.constant dense<0.000000e+00> : vector<48x1xf32>
    %253 = tpu.matmul %252, %248, %cst_69 {dimension_numbers = #tpu.dot_dimension_numbers<[1], [0], [0], [1], [0, 0, 1, 1], [], []>} : vector<48x50xf32>, vector<50x1xf32>, vector<48x1xf32> -> vector<48x1xf32>
    %254 = vector.extract_strided_slice %253 {offsets = [0, 0], sizes = [8, 1], strides = [1, 1]} : vector<48x1xf32> to vector<8x1xf32>
    %255 = vector.extract_strided_slice %253 {offsets = [8, 0], sizes = [8, 1], strides = [1, 1]} : vector<48x1xf32> to vector<8x1xf32>
    %256 = vector.extract_strided_slice %253 {offsets = [16, 0], sizes = [8, 1], strides = [1, 1]} : vector<48x1xf32> to vector<8x1xf32>
    %257 = vector.extract_strided_slice %253 {offsets = [24, 0], sizes = [8, 1], strides = [1, 1]} : vector<48x1xf32> to vector<8x1xf32>
    %258 = vector.extract_strided_slice %253 {offsets = [32, 0], sizes = [8, 1], strides = [1, 1]} : vector<48x1xf32> to vector<8x1xf32>
    %259 = vector.extract_strided_slice %253 {offsets = [40, 0], sizes = [8, 1], strides = [1, 1]} : vector<48x1xf32> to vector<8x1xf32>
    %260 = arith.maximumf %254, %255 : vector<8x1xf32>
    %261 = arith.maximumf %260, %256 : vector<8x1xf32>
    %262 = arith.maximumf %261, %257 : vector<8x1xf32>
    %263 = arith.maximumf %262, %258 : vector<8x1xf32>
    %264 = arith.maximumf %263, %259 : vector<8x1xf32>
    %265 = arith.subf %254, %264 : vector<8x1xf32>
    %266 = math.exp %265 : vector<8x1xf32>
    %267 = arith.subf %255, %264 : vector<8x1xf32>
    %268 = math.exp %267 : vector<8x1xf32>
    %269 = arith.subf %256, %264 : vector<8x1xf32>
    %270 = math.exp %269 : vector<8x1xf32>
    %271 = arith.subf %257, %264 : vector<8x1xf32>
    %272 = math.exp %271 : vector<8x1xf32>
    %273 = arith.subf %258, %264 : vector<8x1xf32>
    %274 = math.exp %273 : vector<8x1xf32>
    %275 = arith.subf %259, %264 : vector<8x1xf32>
    %276 = math.exp %275 : vector<8x1xf32>
    %277 = arith.addf %266, %268 : vector<8x1xf32>
    %278 = arith.addf %277, %270 : vector<8x1xf32>
    %279 = arith.addf %278, %272 : vector<8x1xf32>
    %280 = arith.addf %279, %274 : vector<8x1xf32>
    %281 = arith.addf %280, %276 : vector<8x1xf32>
    %282 = tpu.reciprocal %281 {approx = true} : vector<8x1xf32> -> vector<8x1xf32>
    %283 = arith.mulf %266, %282 : vector<8x1xf32>
    %284 = vector.extract_strided_slice %245 {offsets = [0, 0], sizes = [8, 50], strides = [1, 1]} : vector<48x50xf32> to vector<8x50xf32>
    %285 = vector.broadcast %283 : vector<8x1xf32> to vector<8x50xf32>
    %286 = arith.mulf %285, %284 : vector<8x50xf32>
    %287 = arith.mulf %268, %282 : vector<8x1xf32>
    %288 = vector.extract_strided_slice %245 {offsets = [8, 0], sizes = [8, 50], strides = [1, 1]} : vector<48x50xf32> to vector<8x50xf32>
    %289 = vector.broadcast %287 : vector<8x1xf32> to vector<8x50xf32>
    %290 = arith.mulf %289, %288 : vector<8x50xf32>
    %291 = arith.addf %286, %290 : vector<8x50xf32>
    %292 = arith.mulf %270, %282 : vector<8x1xf32>
    %293 = vector.extract_strided_slice %245 {offsets = [16, 0], sizes = [8, 50], strides = [1, 1]} : vector<48x50xf32> to vector<8x50xf32>
    %294 = vector.broadcast %292 : vector<8x1xf32> to vector<8x50xf32>
    %295 = arith.mulf %294, %293 : vector<8x50xf32>
    %296 = arith.addf %291, %295 : vector<8x50xf32>
    %297 = arith.mulf %272, %282 : vector<8x1xf32>
    %298 = vector.extract_strided_slice %245 {offsets = [24, 0], sizes = [8, 50], strides = [1, 1]} : vector<48x50xf32> to vector<8x50xf32>
    %299 = vector.broadcast %297 : vector<8x1xf32> to vector<8x50xf32>
    %300 = arith.mulf %299, %298 : vector<8x50xf32>
    %301 = arith.addf %296, %300 : vector<8x50xf32>
    %302 = arith.mulf %274, %282 : vector<8x1xf32>
    %303 = vector.extract_strided_slice %245 {offsets = [32, 0], sizes = [8, 50], strides = [1, 1]} : vector<48x50xf32> to vector<8x50xf32>
    %304 = vector.broadcast %302 : vector<8x1xf32> to vector<8x50xf32>
    %305 = arith.mulf %304, %303 : vector<8x50xf32>
    %306 = arith.addf %301, %305 : vector<8x50xf32>
    %307 = arith.mulf %276, %282 : vector<8x1xf32>
    %308 = vector.extract_strided_slice %245 {offsets = [40, 0], sizes = [8, 50], strides = [1, 1]} : vector<48x50xf32> to vector<8x50xf32>
    %309 = vector.broadcast %307 : vector<8x1xf32> to vector<8x50xf32>
    %310 = arith.mulf %309, %308 : vector<8x50xf32>
    %311 = arith.addf %306, %310 : vector<8x50xf32>
    %c0_70 = arith.constant 0 : index
    %c0_71 = arith.constant 0 : index
    %312 = vector.load %arg11[%c0_70, %c0_71] : memref<8x50xf32, #tpu.memory_space<vmem>>, vector<8x50xf32>
    tpu.vector_store %arg11[%c0_70, %c0_71], %311 {strides = array<i32>} : memref<8x50xf32, #tpu.memory_space<vmem>>, vector<8x50xf32>,
    return
  }
  func.func @transform_0(%arg0: i32) -> (i32, i32) {
    %c0_i32 = arith.constant 0 : i32
    %c0_i32_0 = arith.constant 0 : i32
    return %arg0, %c0_i32 : i32, i32
  }
  func.func @transform_1(%arg0: i32) -> (i32, i32) {
    %c0_i32 = arith.constant 0 : i32
    %c0_i32_0 = arith.constant 0 : i32
    %c0_i32_1 = arith.constant 0 : i32
    return %c0_i32, %c0_i32_0 : i32, i32
  }
  func.func @transform_2(%arg0: i32) -> (i32, i32) {
    %c0_i32 = arith.constant 0 : i32
    %c0_i32_0 = arith.constant 0 : i32
    %c0_i32_1 = arith.constant 0 : i32
    return %c0_i32, %c0_i32_0 : i32, i32
  }
  func.func @transform_3(%arg0: i32) -> (i32, i32) {
    %c0_i32 = arith.constant 0 : i32
    %c0_i32_0 = arith.constant 0 : i32
    %c0_i32_1 = arith.constant 0 : i32
    return %c0_i32, %c0_i32_0 : i32, i32
  }
  func.func @transform_4(%arg0: i32) -> (i32, i32) {
    %c0_i32 = arith.constant 0 : i32
    %c0_i32_0 = arith.constant 0 : i32
    %c0_i32_1 = arith.constant 0 : i32
    return %c0_i32, %c0_i32_0 : i32, i32
  }
  func.func @transform_5(%arg0: i32) -> (i32, i32) {
    %c0_i32 = arith.constant 0 : i32
    %c0_i32_0 = arith.constant 0 : i32
    %c0_i32_1 = arith.constant 0 : i32
    return %c0_i32, %c0_i32_0 : i32, i32
  }
  func.func @transform_6(%arg0: i32) -> (i32, i32) {
    %c0_i32 = arith.constant 0 : i32
    %c0_i32_0 = arith.constant 0 : i32
    %c0_i32_1 = arith.constant 0 : i32
    return %c0_i32, %c0_i32_0 : i32, i32
  }
  func.func @transform_7(%arg0: i32) -> (i32, i32) {
    %c0_i32 = arith.constant 0 : i32
    %c0_i32_0 = arith.constant 0 : i32
    %c0_i32_1 = arith.constant 0 : i32
    return %c0_i32, %c0_i32_0 : i32, i32
  }
  func.func @transform_8(%arg0: i32) -> (i32, i32) {
    %c0_i32 = arith.constant 0 : i32
    %c0_i32_0 = arith.constant 0 : i32
    %c0_i32_1 = arith.constant 0 : i32
    return %c0_i32, %c0_i32_0 : i32, i32
  }
  func.func @transform_9(%arg0: i32) -> (i32, i32) {
    %c0_i32 = arith.constant 0 : i32
    %c0_i32_0 = arith.constant 0 : i32
    %c0_i32_1 = arith.constant 0 : i32
    return %c0_i32, %c0_i32_0 : i32, i32
  }
  func.func @transform_10(%arg0: i32) -> (i32, i32) {
    %c0_i32 = arith.constant 0 : i32
    %c0_i32_0 = arith.constant 0 : i32
    return %arg0, %c0_i32 : i32, i32
  }
}

module attributes {stable_mosaic.version = 11 : i64} {
  func.func @kernel(%arg0: memref<16x50xf32, #tpu.memory_space<vmem>>, %arg1: memref<50x50xf32, #tpu.memory_space<vmem>>, %arg2: memref<1x50xf32, #tpu.memory_space<vmem>>, %arg3: memref<50x1xf32, #tpu.memory_space<vmem>>, %arg4: memref<50x1xf32, #tpu.memory_space<vmem>>, %arg5: memref<1x1xf32, #tpu.memory_space<vmem>>, %arg6: memref<8x50xf32, #tpu.memory_space<vmem>>, %arg7: memref<8x1xf32, #tpu.memory_space<vmem>>) attributes {dimension_semantics = [], scalar_prefetch = 0 : i64, scratch_operands = 0 : i64, tpu.core_type = #tpu.core_type<tc>} {
    %c0 = arith.constant 0 : index
    %c0_0 = arith.constant 0 : index
    %0 = vector.load %arg0[%c0, %c0_0] : memref<16x50xf32, #tpu.memory_space<vmem>>, vector<16x50xf32>
    %c0_1 = arith.constant 0 : index
    %c0_2 = arith.constant 0 : index
    %1 = vector.load %arg1[%c0_1, %c0_2] : memref<50x50xf32, #tpu.memory_space<vmem>>, vector<50x50xf32>
    %c0_3 = arith.constant 0 : index
    %c0_4 = arith.constant 0 : index
    %2 = vector.load %arg2[%c0_3, %c0_4] : memref<1x50xf32, #tpu.memory_space<vmem>>, vector<1x50xf32>
    %c0_5 = arith.constant 0 : index
    %c0_6 = arith.constant 0 : index
    %3 = vector.load %arg3[%c0_5, %c0_6] : memref<50x1xf32, #tpu.memory_space<vmem>>, vector<50x1xf32>
    %cst = arith.constant dense<0.000000e+00> : vector<16x50xf32>
    %4 = tpu.matmul %0, %1, %cst {dimension_numbers = #tpu.dot_dimension_numbers<[1], [0], [0], [1], [0, 0, 1, 1], [], []>} : vector<16x50xf32>, vector<50x50xf32>, vector<16x50xf32> -> vector<16x50xf32>
    %5 = vector.broadcast %2 : vector<1x50xf32> to vector<16x50xf32>
    %6 = arith.addf %4, %5 : vector<16x50xf32>
    %7 = math.tanh %6 : vector<16x50xf32>
    %cst_7 = arith.constant dense<0.000000e+00> : vector<16x1xf32>
    %8 = tpu.matmul %7, %3, %cst_7 {dimension_numbers = #tpu.dot_dimension_numbers<[1], [0], [0], [1], [0, 0, 1, 1], [], []>} : vector<16x50xf32>, vector<50x1xf32>, vector<16x1xf32> -> vector<16x1xf32>
    %9 = vector.extract_strided_slice %8 {offsets = [0, 0], sizes = [8, 1], strides = [1, 1]} : vector<16x1xf32> to vector<8x1xf32>
    %10 = vector.extract_strided_slice %8 {offsets = [8, 0], sizes = [8, 1], strides = [1, 1]} : vector<16x1xf32> to vector<8x1xf32>
    %11 = arith.maximumf %9, %10 : vector<8x1xf32>
    %12 = arith.subf %9, %11 : vector<8x1xf32>
    %13 = math.exp %12 : vector<8x1xf32>
    %14 = arith.subf %10, %11 : vector<8x1xf32>
    %15 = math.exp %14 : vector<8x1xf32>
    %16 = arith.addf %13, %15 : vector<8x1xf32>
    %17 = tpu.reciprocal %16 {approx = true} : vector<8x1xf32> -> vector<8x1xf32>
    %18 = arith.mulf %13, %17 : vector<8x1xf32>
    %19 = vector.extract_strided_slice %0 {offsets = [0, 0], sizes = [8, 50], strides = [1, 1]} : vector<16x50xf32> to vector<8x50xf32>
    %20 = vector.broadcast %18 : vector<8x1xf32> to vector<8x50xf32>
    %21 = arith.mulf %20, %19 : vector<8x50xf32>
    %22 = arith.mulf %15, %17 : vector<8x1xf32>
    %23 = vector.extract_strided_slice %0 {offsets = [8, 0], sizes = [8, 50], strides = [1, 1]} : vector<16x50xf32> to vector<8x50xf32>
    %24 = vector.broadcast %22 : vector<8x1xf32> to vector<8x50xf32>
    %25 = arith.mulf %24, %23 : vector<8x50xf32>
    %26 = arith.addf %21, %25 : vector<8x50xf32>
    %c0_8 = arith.constant 0 : index
    %c0_9 = arith.constant 0 : index
    %27 = vector.load %arg6[%c0_8, %c0_9] : memref<8x50xf32, #tpu.memory_space<vmem>>, vector<8x50xf32>
    tpu.vector_store %arg6[%c0_8, %c0_9], %26 {strides = array<i32>} : memref<8x50xf32, #tpu.memory_space<vmem>>, vector<8x50xf32>,
    %c0_10 = arith.constant 0 : index
    %c0_11 = arith.constant 0 : index
    %28 = vector.load %arg4[%c0_10, %c0_11] : memref<50x1xf32, #tpu.memory_space<vmem>>, vector<50x1xf32>
    %cst_12 = arith.constant dense<0.000000e+00> : vector<8x1xf32>
    %29 = tpu.matmul %26, %28, %cst_12 {dimension_numbers = #tpu.dot_dimension_numbers<[1], [0], [0], [1], [0, 0, 1, 1], [], []>} : vector<8x50xf32>, vector<50x1xf32>, vector<8x1xf32> -> vector<8x1xf32>
    %c0_13 = arith.constant 0 : index
    %c0_14 = arith.constant 0 : index
    %30 = vector.load %arg5[%c0_13, %c0_14] : memref<1x1xf32, #tpu.memory_space<vmem>>, vector<1x1xf32>
    %31 = vector.broadcast %30 : vector<1x1xf32> to vector<8x1xf32>
    %32 = arith.addf %29, %31 : vector<8x1xf32>
    %33 = arith.negf %32 : vector<8x1xf32>
    %34 = math.exp %33 : vector<8x1xf32>
    %cst_15 = arith.constant 1.000000e+00 : f32
    %35 = vector.broadcast %cst_15 : f32 to vector<8x1xf32>
    %36 = arith.addf %35, %34 : vector<8x1xf32>
    %37 = arith.divf %35, %36 : vector<8x1xf32>
    %c0_16 = arith.constant 0 : index
    %c0_17 = arith.constant 0 : index
    %38 = vector.load %arg7[%c0_16, %c0_17] : memref<8x1xf32, #tpu.memory_space<vmem>>, vector<8x1xf32>
    tpu.vector_store %arg7[%c0_16, %c0_17], %37 {strides = array<i32>} : memref<8x1xf32, #tpu.memory_space<vmem>>, vector<8x1xf32>,
    return
  }
}

</mosaic_0001>

<llo_original>
// kernel: forward.8
$region0: #{forward.8}
  #allocation0 [shape = 'u32[]', space=smem, size = 0x4, offset = 0x4, fixed_abs, tag = 'smem constant byte address 0x4 - core index']
  #allocation1 [shape = 'u32[72,128]{1,0:T(1,128)}', space=vmem, size = 0x9000, scoped, tag = 'internal scratch']
  %s0 = inlined_call_operand.vmem [shape: f32[32,50], index: 0, kind: input, shape index: {}]
  %s1 = inlined_call_operand.vmem [shape: f32[50,50], index: 1, kind: input, shape index: {}]
  %s2 = inlined_call_operand.vmem [shape: f32[1,50], index: 2, kind: input, shape index: {}]
  %s3 = inlined_call_operand.vmem [shape: f32[50,1], index: 3, kind: input, shape index: {}]
  %s4 = inlined_call_operand.vmem [shape: f32[8,50], index: 4, kind: output, shape index: {}]
  %s5 = sld [smem:[#allocation0]]
  $region26: #{forward.8} parent=0
    _
  %s7 = ssub.s32 1, %s5
  %s8 = scalar_select 0, %s7, %s5
  // Predicated region
  $region2: #{forward.8} parent=0 // pred_check
    _
  $region3: #{forward.8} parent=0 // pred_check_branch
    %10 = sbr.rel (0) target = $region5
  $region4: #{forward.8} parent=0 // pred_region
    _
  $region5: #{forward.8} parent=0 // pred_fallthru
    _
  // Predicated region
  $region6: #{forward.8} parent=0 // pred_check
    _
  $region7: #{forward.8} parent=0 // pred_check_branch
    %12 = sbr.rel (0) target = $region9
  $region8: #{forward.8} parent=0 // pred_region
    _
  $region9: #{forward.8} parent=0 // pred_fallthru
    _
  // Predicated region
  $region10: #{forward.8} parent=0 // pred_check
    _
  $region11: #{forward.8} parent=0 // pred_check_branch
    %14 = sbr.rel (0) target = $region13
  $region12: #{forward.8} parent=0 // pred_region
    _
  $region13: #{forward.8} parent=0 // pred_fallthru
    _
  // Predicated region
  $region14: #{forward.8} parent=0 // pred_check
    _
  $region15: #{forward.8} parent=0 // pred_check_branch
    %16 = sbr.rel (0) target = $region17
  $region16: #{forward.8} parent=0 // pred_region
    _
  $region17: #{forward.8} parent=0 // pred_fallthru
    _
  %v17 = vld [vmem:[%s0] sm:$0xff]
  %v18 = vld [vmem:[%s0 + $0x8] sm:$0xff]
  %v19 = vld [vmem:[%s0 + $0x10] sm:$0xff]
  %v20 = vld [vmem:[%s0 + $0x18] sm:$0xff]
  %v21 = vld [vmem:[%s1] sm:$0xff]
  %v22 = vld [vmem:[%s1 + $0x8] sm:$0xff]
  %v23 = vld [vmem:[%s1 + $0x10] sm:$0xff]
  %v24 = vld [vmem:[%s1 + $0x18] sm:$0xff]
  %v25 = vld [vmem:[%s1 + $0x20] sm:$0xff]
  %v26 = vld [vmem:[%s1 + $0x28] sm:$0xff]
  %v27 = vld [vmem:[%s1 + $0x30] sm:$0x3]
  %v28 = vld [vmem:[%s2] sm:$0x1]
  %v29 = vld [vmem:[%s3] sm:$0xff]
  %v30 = vld [vmem:[%s3 + $0x8] sm:$0xff]
  %v31 = vld [vmem:[%s3 + $0x10] sm:$0xff]
  %v32 = vld [vmem:[%s3 + $0x18] sm:$0xff]
  %v33 = vld [vmem:[%s3 + $0x20] sm:$0xff]
  %v34 = vld [vmem:[%s3 + $0x28] sm:$0xff]
  %v35 = vld [vmem:[%s3 + $0x30] sm:$0x3]
  %v37 = vperm.slane %v28, 0
  %vm39 = vcmask 408576
  %v41 = vsel %vm39, %v17, 0
  %v44 = vsel %vm39, %v18, 0
  %v47 = vsel %vm39, %v19, 0
  %v50 = vsel %vm39, %v20, 0
  %vm52 = vcmask 1041408
  %v54 = vsel %vm52, %v27, 0
  %56 = vmatpush.msra.mxu0 0.0
  %57 = vmatpush.msra.mxu0 0.0
  %58 = vmatpush.msra.mxu0 0.0
  %59 = vmatpush.msra.mxu0 0.0
  %60 = vmatpush.msra.mxu0 0.0
  %61 = vmatpush.msra.mxu0 0.0
  %62 = vmatpush.msra.mxu0 0.0
  %63 = vmatpush.msra.mxu0 0.0
  %64 = vmatpush.msra.mxu0 0.0
  %65 = vmatpush.msra.mxu0 %v54
  %66 = vmatpush.msra.mxu0 %v26
  %67 = vmatpush.msra.mxu0 %v25
  %68 = vmatpush.msra.mxu0 %v24
  %69 = vmatpush.msra.mxu0 %v23
  %70 = vmatpush.msra.mxu0 %v22
  %71 = vmatpush.msra.mxu0 %v21
  %72 = vmatmul.f32.gmra.mxu0 %v41
  %v73 = vpop.f32.mrf.mxu0
  %v74 = vadd.f32 %v37, %v73
  %75 = vmatmul.f32.gmra.mxu0 %v44
  %v76 = vpop.f32.mrf.mxu0
  %v77 = vadd.f32 %v37, %v76
  %78 = vmatmul.f32.gmra.mxu0 %v47
  %v79 = vpop.f32.mrf.mxu0
  %v80 = vadd.f32 %v37, %v79
  %81 = vmatmul.f32.gmra.mxu0 %v50
  %v82 = vpop.f32.mrf.mxu0
  %v83 = vadd.f32 %v37, %v82
  %84 = vdwg.mxu0
  %v85 = vtanh.pop %v74
  %v86 = vtanh.pop %v77
  %v87 = vtanh.pop %v80
  %v88 = vtanh.pop %v83
  %v90 = vsel %vm39, %v85, 0
  %v93 = vsel %vm39, %v86, 0
  %v96 = vsel %vm39, %v87, 0
  %v99 = vsel %vm39, %v88, 0
  %v102 = vsel %vm52, %v35, 0
  %104 = vmatpush.msra.mxu0 0.0
  %105 = vmatpush.msra.mxu0 0.0
  %106 = vmatpush.msra.mxu0 0.0
  %107 = vmatpush.msra.mxu0 0.0
  %108 = vmatpush.msra.mxu0 0.0
  %109 = vmatpush.msra.mxu0 0.0
  %110 = vmatpush.msra.mxu0 0.0
  %111 = vmatpush.msra.mxu0 0.0
  %112 = vmatpush.msra.mxu0 0.0
  %113 = vmatpush.msra.mxu0 %v102
  %114 = vmatpush.msra.mxu0 %v34
  %115 = vmatpush.msra.mxu0 %v33
  %116 = vmatpush.msra.mxu0 %v32
  %117 = vmatpush.msra.mxu0 %v31
  %118 = vmatpush.msra.mxu0 %v30
  %119 = vmatpush.msra.mxu0 %v29
  %120 = vmatmul.f32.gmra.mxu0 %v90
  %v121 = vpop.f32.mrf.mxu0
  %v122 = vadd.f32 0.0, %v121
  %123 = vmatmul.f32.gmra.mxu0 %v93
  %v124 = vpop.f32.mrf.mxu0
  %v125 = vadd.f32 0.0, %v124
  %126 = vmatmul.f32.gmra.mxu0 %v96
  %v127 = vpop.f32.mrf.mxu0
  %v128 = vadd.f32 0.0, %v127
  %129 = vmatmul.f32.gmra.mxu0 %v99
  %v130 = vpop.f32.mrf.mxu0
  %v131 = vadd.f32 0.0, %v130
  %132 = vdwg.mxu0
  %v133 = vmax.f32 %v122, %v125
  %v134 = vmax.f32 %v133, %v128
  %v135 = vmax.f32 %v134, %v131
  %v136 = vsub.f32 %v122, %v135
  %v137 = vmul.f32 %v136, 1.442695
  %v138 = vpow.pop %v137
  %v139 = vsub.f32 %v125, %v135
  %v140 = vmul.f32 %v139, 1.442695
  %v141 = vpow.pop %v140
  %v142 = vsub.f32 %v128, %v135
  %v143 = vmul.f32 %v142, 1.442695
  %v144 = vpow.pop %v143
  %v145 = vsub.f32 %v131, %v135
  %v146 = vmul.f32 %v145, 1.442695
  %v147 = vpow.pop %v146
  %v148 = vadd.f32 %v138, %v141
  %v149 = vadd.f32 %v148, %v144
  %v150 = vadd.f32 %v149, %v147
  %v151 = vrcp.pop %v150
  %v152 = vmul.f32 %v138, %v151
  %154 = vset.pattern.permute.xlu0 0
  %155 = vperm.xlu0 %154, %v152
  %v156 = vpop.permute.xlu0 %155
  %v158 = vmul.f32 %v156, %v17
  %v159 = vmul.f32 %v141, %v151
  %161 = vset.pattern.permute.xlu0 0
  %162 = vperm.xlu0 %161, %v159
  %v163 = vpop.permute.xlu0 %162
  %v165 = vmul.f32 %v163, %v18
  %v166 = vadd.f32 %v158, %v165
  %v167 = vmul.f32 %v144, %v151
  %169 = vset.pattern.permute.xlu0 0
  %170 = vperm.xlu0 %169, %v167
  %v171 = vpop.permute.xlu0 %170
  %v173 = vmul.f32 %v171, %v19
  %v174 = vadd.f32 %v166, %v173
  %v175 = vmul.f32 %v147, %v151
  %177 = vset.pattern.permute.xlu0 0
  %178 = vperm.xlu0 %177, %v175
  %v179 = vpop.permute.xlu0 %178
  %v181 = vmul.f32 %v179, %v20
  %v182 = vadd.f32 %v174, %v181
  %183 = vst.msk [vmem:[%s4] sm:$0xff] %vm39, %v182
  // Predicated region
  $region18: #{forward.8} parent=0 // pred_check
    _
  $region19: #{forward.8} parent=0 // pred_check_branch
    %185 = sbr.rel (0) target = $region21
  $region20: #{forward.8} parent=0 // pred_region
    _
  $region21: #{forward.8} parent=0 // pred_fallthru
    _
  // Predicated region
  $region22: #{forward.8} parent=0 // pred_check
    _
  $region23: #{forward.8} parent=0 // pred_check_branch
    %187 = sbr.rel (0) target = $region25
  $region24: #{forward.8} parent=0 // pred_region
    _
  $region25: #{forward.8} parent=0 // pred_fallthru
    _

// kernel: forward.7
$region0: #{forward.7}
  #allocation0 [shape = 'u32[]', space=smem, size = 0x4, offset = 0x4, fixed_abs, tag = 'smem constant byte address 0x4 - core index']
  #allocation1 [shape = 'u32[72,128]{1,0:T(1,128)}', space=vmem, size = 0x9000, scoped, tag = 'internal scratch']
  %s0 = inlined_call_operand.vmem [shape: f32[32,50], index: 0, kind: input, shape index: {}]
  %s1 = inlined_call_operand.vmem [shape: f32[50,100], index: 1, kind: input, shape index: {}]
  %s2 = inlined_call_operand.vmem [shape: f32[25,100], index: 2, kind: input, shape index: {}]
  %s3 = inlined_call_operand.vmem [shape: f32[1,100], index: 3, kind: input, shape index: {}]
  %s4 = inlined_call_operand.vmem [shape: f32[50,100], index: 4, kind: input, shape index: {}]
  %s5 = inlined_call_operand.vmem [shape: f32[25,100], index: 5, kind: input, shape index: {}]
  %s6 = inlined_call_operand.vmem [shape: f32[1,100], index: 6, kind: input, shape index: {}]
  %s7 = inlined_call_operand.vmem [shape: f32[32,50], index: 7, kind: output, shape index: {}]
  %s8 = sld [smem:[#allocation0]]
  $region61: #{forward.7} parent=0
    _
  %s10 = ssub.s32 1, %s8
  %s11 = scalar_select 0, %s10, %s8
  loop: start=0, step=1, limit=4
  $region2: #{forward.7} parent=0 // loop_pre_header
    _
  $region3: #{forward.7} parent=0 // loop_header
    %s13 = sphi 0, %s17
    %p14 = scmp.ge.s32.totalorder %s13, 4
    %s23 = sphi 0, %s25
    %s26 = sphi 0, %s23
    %s27 = sphi 0, %s26
    %s43 = sphi 0, %s27
    %s47 = sphi 0, %s47
    %s49 = sphi 0, %s47
    %s50 = sphi 0, %s49
    %s64 = sphi 0, %s50
    %s68 = sphi 0, %s68
    %s70 = sphi 0, %s68
    %s71 = sphi 0, %s70
    %s85 = sphi 0, %s71
    %s89 = sphi 0, %s89
    %s91 = sphi 0, %s89
    %s92 = sphi 0, %s91
    %s106 = sphi 0, %s92
    %s110 = sphi 0, %s110
    %s112 = sphi 0, %s110
    %s113 = sphi 0, %s112
    %s127 = sphi 0, %s113
    %s131 = sphi 0, %s131
    %s133 = sphi 0, %s131
    %s134 = sphi 0, %s133
    %s148 = sphi 0, %s134
    %s152 = sphi 0, %s152
    %s154 = sphi 0, %s152
    %s155 = sphi 0, %s154
    %s169 = sphi 0, %s155
    %s175 = sphi 0, %s177
    %s178 = sphi 0, %s175
    %s179 = sphi 0, %s178
    %s195 = sphi 0, %s179
  $region4: #{forward.7} parent=0 // loop_header_branch
    %16 = sbr.rel (%p14) target = $region8
  $region5: #{forward.7} parent=0 // loop_body
    %s18 = ssub.s32 %s13, 1
    %s19 = ssub.s32 %s13, 2
    %s20 = sadd.s32 %s13, 1
    %s21 = ssub.s32 %s13, %s20
    %p22 = scmp.eq.s32.totalorder %s21, 0
    %s24 = sadd.s32 %s23, 1
    %s25 = scalar_select %p22, %s23, %s24
    %p28 = pneg %p22
    %p29 = scmp.eq.s32.totalorder %s13, 1
    %p30 = por %p28, %p29
    %p31 = scmp.ne.s32.totalorder %s23, %s26
    %p32 = scmp.eq.s32.totalorder %s13, 0
    %p33 = por %p31, %p32
    %p34 = scmp.ne.s32.totalorder %s23, %s26
    %p35 = scmp.eq.s32.totalorder %s18, 1
    %p36 = por %p34, %p35
    %p37 = scmp.ne.s32.totalorder %s26, %s27
    %p38 = scmp.eq.s32.totalorder %s18, 0
    %p39 = por %p37, %p38
    %p40 = scmp.ne.s32.totalorder %s26, %s27
    %p41 = scmp.eq.s32.totalorder %s19, 1
    %p42 = por %p40, %p41
    %p44 = scmp.ne.s32.totalorder %s27, %s43
    %p45 = scmp.eq.s32.totalorder %s19, 0
    %p46 = por %p44, %p45
    %s48 = sadd.s32 %s47, 1
    %p51 = scmp.eq.s32.totalorder %s13, 1
    %p52 = scmp.ne.s32.totalorder %s47, %s49
    %p53 = scmp.eq.s32.totalorder %s13, 0
    %p54 = por %p52, %p53
    %p55 = scmp.ne.s32.totalorder %s47, %s49
    %p56 = scmp.eq.s32.totalorder %s18, 1
    %p57 = por %p55, %p56
    %p58 = scmp.ne.s32.totalorder %s49, %s50
    %p59 = scmp.eq.s32.totalorder %s18, 0
    %p60 = por %p58, %p59
    %p61 = scmp.ne.s32.totalorder %s49, %s50
    %p62 = scmp.eq.s32.totalorder %s19, 1
    %p63 = por %p61, %p62
    %p65 = scmp.ne.s32.totalorder %s50, %s64
    %p66 = scmp.eq.s32.totalorder %s19, 0
    %p67 = por %p65, %p66
    %s69 = sadd.s32 %s68, 1
    %p72 = scmp.eq.s32.totalorder %s13, 1
    %p73 = scmp.ne.s32.totalorder %s68, %s70
    %p74 = scmp.eq.s32.totalorder %s13, 0
    %p75 = por %p73, %p74
    %p76 = scmp.ne.s32.totalorder %s68, %s70
    %p77 = scmp.eq.s32.totalorder %s18, 1
    %p78 = por %p76, %p77
    %p79 = scmp.ne.s32.totalorder %s70, %s71
    %p80 = scmp.eq.s32.totalorder %s18, 0
    %p81 = por %p79, %p80
    %p82 = scmp.ne.s32.totalorder %s70, %s71
    %p83 = scmp.eq.s32.totalorder %s19, 1
    %p84 = por %p82, %p83
    %p86 = scmp.ne.s32.totalorder %s71, %s85
    %p87 = scmp.eq.s32.totalorder %s19, 0
    %p88 = por %p86, %p87
    %s90 = sadd.s32 %s89, 1
    %p93 = scmp.eq.s32.totalorder %s13, 1
    %p94 = scmp.ne.s32.totalorder %s89, %s91
    %p95 = scmp.eq.s32.totalorder %s13, 0
    %p96 = por %p94, %p95
    %p97 = scmp.ne.s32.totalorder %s89, %s91
    %p98 = scmp.eq.s32.totalorder %s18, 1
    %p99 = por %p97, %p98
    %p100 = scmp.ne.s32.totalorder %s91, %s92
    %p101 = scmp.eq.s32.totalorder %s18, 0
    %p102 = por %p100, %p101
    %p103 = scmp.ne.s32.totalorder %s91, %s92
    %p104 = scmp.eq.s32.totalorder %s19, 1
    %p105 = por %p103, %p104
    %p107 = scmp.ne.s32.totalorder %s92, %s106
    %p108 = scmp.eq.s32.totalorder %s19, 0
    %p109 = por %p107, %p108
    %s111 = sadd.s32 %s110, 1
    %p114 = scmp.eq.s32.totalorder %s13, 1
    %p115 = scmp.ne.s32.totalorder %s110, %s112
    %p116 = scmp.eq.s32.totalorder %s13, 0
    %p117 = por %p115, %p116
    %p118 = scmp.ne.s32.totalorder %s110, %s112
    %p119 = scmp.eq.s32.totalorder %s18, 1
    %p120 = por %p118, %p119
    %p121 = scmp.ne.s32.totalorder %s112, %s113
    %p122 = scmp.eq.s32.totalorder %s18, 0
    %p123 = por %p121, %p122
    %p124 = scmp.ne.s32.totalorder %s112, %s113
    %p125 = scmp.eq.s32.totalorder %s19, 1
    %p126 = por %p124, %p125
    %p128 = scmp.ne.s32.totalorder %s113, %s127
    %p129 = scmp.eq.s32.totalorder %s19, 0
    %p130 = por %p128, %p129
    %s132 = sadd.s32 %s131, 1
    %p135 = scmp.eq.s32.totalorder %s13, 1
    %p136 = scmp.ne.s32.totalorder %s131, %s133
    %p137 = scmp.eq.s32.totalorder %s13, 0
    %p138 = por %p136, %p137
    %p139 = scmp.ne.s32.totalorder %s131, %s133
    %p140 = scmp.eq.s32.totalorder %s18, 1
    %p141 = por %p139, %p140
    %p142 = scmp.ne.s32.totalorder %s133, %s134
    %p143 = scmp.eq.s32.totalorder %s18, 0
    %p144 = por %p142, %p143
    %p145 = scmp.ne.s32.totalorder %s133, %s134
    %p146 = scmp.eq.s32.totalorder %s19, 1
    %p147 = por %p145, %p146
    %p149 = scmp.ne.s32.totalorder %s134, %s148
    %p150 = scmp.eq.s32.totalorder %s19, 0
    %p151 = por %p149, %p150
    %s153 = sadd.s32 %s152, 1
    %p156 = scmp.eq.s32.totalorder %s13, 1
    %p157 = scmp.ne.s32.totalorder %s152, %s154
    %p158 = scmp.eq.s32.totalorder %s13, 0
    %p159 = por %p157, %p158
    %p160 = scmp.ne.s32.totalorder %s152, %s154
    %p161 = scmp.eq.s32.totalorder %s18, 1
    %p162 = por %p160, %p161
    %p163 = scmp.ne.s32.totalorder %s154, %s155
    %p164 = scmp.eq.s32.totalorder %s18, 0
    %p165 = por %p163, %p164
    %p166 = scmp.ne.s32.totalorder %s154, %s155
    %p167 = scmp.eq.s32.totalorder %s19, 1
    %p168 = por %p166, %p167
    %p170 = scmp.ne.s32.totalorder %s155, %s169
    %p171 = scmp.eq.s32.totalorder %s19, 0
    %p172 = por %p170, %p171
    %s173 = ssub.s32 %s13, %s20
    %p174 = scmp.eq.s32.totalorder %s173, 0
    %s176 = sadd.s32 %s175, 1
    %s177 = scalar_select %p174, %s175, %s176
    %p180 = pneg %p174
    %p181 = scmp.eq.s32.totalorder %s13, 1
    %p182 = por %p180, %p181
    %p183 = scmp.ne.s32.totalorder %s175, %s178
    %p184 = scmp.eq.s32.totalorder %s13, 0
    %p185 = por %p183, %p184
    %p186 = scmp.ne.s32.totalorder %s175, %s178
    %p187 = scmp.eq.s32.totalorder %s18, 1
    %p188 = por %p186, %p187
    %p189 = scmp.ne.s32.totalorder %s178, %s179
    %p190 = scmp.eq.s32.totalorder %s18, 0
    %p191 = por %p189, %p190
    %p192 = scmp.ne.s32.totalorder %s178, %s179
    %p193 = scmp.eq.s32.totalorder %s19, 1
    %p194 = por %p192, %p193
    %p196 = scmp.ne.s32.totalorder %s179, %s195
    %p197 = scmp.eq.s32.totalorder %s19, 0
    %p198 = por %p196, %p197
    %p199 = scmp.le.s32.totalorder 1, %s13
    %p200 = scmp.lt.s32.totalorder %s13, 3
    %p201 = pnand %p199, %p200
    %p202 = pneg %p201
    // Predicated region
    $region9: #{forward.7} parent=5 // pred_check
      _
    $region10: #{forward.7} parent=5 // pred_check_branch
      %204 = sbr.rel (%p201) target = $region12
    $region11: #{forward.7} parent=5 // pred_region
      %s205 = ssub.s32 %s13, 1
      // Predicated region
      $region13: #{forward.7} parent=11 // pred_check
        %p206 = pneg %p60
      $region14: #{forward.7} parent=11 // pred_check_branch
        %208 = sbr.rel (%p206) target = $region16
      $region15: #{forward.7} parent=11 // pred_region
        _
      $region16: #{forward.7} parent=11 // pred_fallthru
        _
      // Predicated region
      $region17: #{forward.7} parent=11 // pred_check
        %p209 = pneg %p81
      $region18: #{forward.7} parent=11 // pred_check_branch
        %211 = sbr.rel (%p209) target = $region20
      $region19: #{forward.7} parent=11 // pred_region
        _
      $region20: #{forward.7} parent=11 // pred_fallthru
        _
      // Predicated region
      $region21: #{forward.7} parent=11 // pred_check
        %p212 = pneg %p102
      $region22: #{forward.7} parent=11 // pred_check_branch
        %214 = sbr.rel (%p212) target = $region24
      $region23: #{forward.7} parent=11 // pred_region
        _
      $region24: #{forward.7} parent=11 // pred_fallthru
        _
      // Predicated region
      $region25: #{forward.7} parent=11 // pred_check
        %p215 = pneg %p123
      $region26: #{forward.7} parent=11 // pred_check_branch
        %217 = sbr.rel (%p215) target = $region28
      $region27: #{forward.7} parent=11 // pred_region
        _
      $region28: #{forward.7} parent=11 // pred_fallthru
        _
      // Predicated region
      $region29: #{forward.7} parent=11 // pred_check
        %p218 = pneg %p144
      $region30: #{forward.7} parent=11 // pred_check_branch
        %220 = sbr.rel (%p218) target = $region32
      $region31: #{forward.7} parent=11 // pred_region
        _
      $region32: #{forward.7} parent=11 // pred_fallthru
        _
      // Predicated region
      $region33: #{forward.7} parent=11 // pred_check
        %p221 = pneg %p165
      $region34: #{forward.7} parent=11 // pred_check_branch
        %223 = sbr.rel (%p221) target = $region36
      $region35: #{forward.7} parent=11 // pred_region
        _
      $region36: #{forward.7} parent=11 // pred_fallthru
        _
    $region12: #{forward.7} parent=5 // pred_fallthru
      _
    %p224 = scmp.lt.s32.totalorder %s13, 2
    // Predicated region
    $region37: #{forward.7} parent=5 // pred_check
      %p225 = pneg %p224
    $region38: #{forward.7} parent=5 // pred_check_branch
      %227 = sbr.rel (%p225) target = $region40
    $region39: #{forward.7} parent=5 // pred_region
      // Predicated region
      $region41: #{forward.7} parent=39 // pred_check
        %p228 = pneg %p33
      $region42: #{forward.7} parent=39 // pred_check_branch
        %230 = sbr.rel (%p228) target = $region44
      $region43: #{forward.7} parent=39 // pred_region
        %s231 = smul.u32 2, %s13
        %p232 = scmp.lt.s32.totalorder %s231, 3
        %s233 = scalar_select %p232, %s231, 3
        %s234 = smul.addr %s233, 8
        %s235 = scalar_lea.vmem %s0, %s234
        %s236 = smul.u32 2, %s13
      $region44: #{forward.7} parent=39 // pred_fallthru
        _
    $region40: #{forward.7} parent=5 // pred_fallthru
      _
    %p237 = scmp.le.s32.totalorder 1, %s13
    %p238 = scmp.lt.s32.totalorder %s13, 3
    %p239 = pnand %p237, %p238
    %p240 = pneg %p239
    // Predicated region
    $region45: #{forward.7} parent=5 // pred_check
      _
    $region46: #{forward.7} parent=5 // pred_check_branch
      %242 = sbr.rel (%p239) target = $region48
    $region47: #{forward.7} parent=5 // pred_region
      %s243 = ssub.s32 %s13, 1
      %s244 = smul.u32 2, %s18
      %p245 = scmp.lt.s32.totalorder %s244, 3
      %s246 = scalar_select %p245, %s244, 3
      %s247 = smul.addr %s246, 8
      %s248 = scalar_lea.vmem %s0, %s247
      %p249 = pneg %p39
      %p250 = pneg %p36
      %p251 = pneg %p60
      %p252 = pneg %p57
      %p253 = pneg %p81
      %p254 = pneg %p78
      %p255 = pneg %p102
      %p256 = pneg %p99
      %p257 = pneg %p123
      %p258 = pneg %p120
      %p259 = pneg %p144
      %p260 = pneg %p141
      %p261 = pneg %p165
      %p262 = pneg %p162
      %p263 = pneg %p191
      %p264 = pneg %p188
      %s265 = smul.u32 2, %s18
      %p266 = scmp.lt.s32.totalorder %s265, 3
      %s267 = scalar_select %p266, %s265, 3
      %s268 = smul.addr %s267, 8
      %s269 = scalar_lea.vmem %s7, %s268
      %s270 = smul.u32 2, %s18
      %p271 = scmp.lt.s32.totalorder %s270, 3
      %s272 = scalar_select %p271, %s270, 3
      %s273 = smul.addr %s272, 8
      %s274 = scalar_lea.vmem %s0, %s273
      %s275 = smul.u32 2, %s18
      %s276 = smul.u32 2, %s18
      %p277 = scmp.lt.s32.totalorder %s276, 3
      %s278 = scalar_select %p277, %s276, 3
      %s279 = smul.addr %s278, 8
      %s280 = scalar_lea.vmem %s7, %s279
      %s281 = smul.u32 2, %s18
      %v282 = vld [vmem:[%s274] sm:$0xff]
      %v283 = vld [vmem:[%s274 + $0x8] sm:$0xff]
      %v284 = vld [vmem:[%s1] sm:$0xff]
      %v285 = vld [vmem:[%s1 + $0x8] sm:$0xff]
      %v286 = vld [vmem:[%s1 + $0x10] sm:$0xff]
      %v287 = vld [vmem:[%s1 + $0x18] sm:$0xff]
      %v288 = vld [vmem:[%s1 + $0x20] sm:$0xff]
      %v289 = vld [vmem:[%s1 + $0x28] sm:$0xff]
      %v290 = vld [vmem:[%s1 + $0x30] sm:$0x3]
      %v291 = vld [vmem:[%s3] sm:$0x1]
      %v293 = vperm.slane %v291, 0
      %vm295 = vcmask 408576
      %v297 = vsel %vm295, %v282, 0
      %v300 = vsel %vm295, %v283, 0
      %vm302 = vcmask 1041408
      %v304 = vsel %vm302, %v290, 0
      %306 = vmatpush.msra.mxu0 0.0
      %307 = vmatpush.msra.mxu0 0.0
      %308 = vmatpush.msra.mxu0 0.0
      %309 = vmatpush.msra.mxu0 0.0
      %310 = vmatpush.msra.mxu0 0.0
      %311 = vmatpush.msra.mxu0 0.0
      %312 = vmatpush.msra.mxu0 0.0
      %313 = vmatpush.msra.mxu0 0.0
      %314 = vmatpush.msra.mxu0 0.0
      %315 = vmatpush.msra.mxu0 %v304
      %316 = vmatpush.msra.mxu0 %v289
      %317 = vmatpush.msra.mxu0 %v288
      %318 = vmatpush.msra.mxu0 %v287
      %319 = vmatpush.msra.mxu0 %v286
      %320 = vmatpush.msra.mxu0 %v285
      %321 = vmatpush.msra.mxu0 %v284
      %322 = vmatmul.f32.gmra.mxu0 %v297
      %v323 = vpop.f32.mrf.mxu0
      %v324 = vadd.f32 %v293, %v323
      %325 = vmatmul.f32.gmra.mxu0 %v300
      %v326 = vpop.f32.mrf.mxu0
      %v327 = vadd.f32 %v293, %v326
      %328 = vdwg.mxu0
      %v329 = vld [vmem:[%s4] sm:$0xff]
      %v330 = vld [vmem:[%s4 + $0x8] sm:$0xff]
      %v331 = vld [vmem:[%s4 + $0x10] sm:$0xff]
      %v332 = vld [vmem:[%s4 + $0x18] sm:$0xff]
      %v333 = vld [vmem:[%s4 + $0x20] sm:$0xff]
      %v334 = vld [vmem:[%s4 + $0x28] sm:$0xff]
      %v335 = vld [vmem:[%s4 + $0x30] sm:$0x3]
      %v336 = vld [vmem:[%s6] sm:$0x1]
      %v338 = vperm.slane %v336, 0
      %v341 = vsel %vm302, %v335, 0
      %343 = vmatpush.msra.mxu0 0.0
      %344 = vmatpush.msra.mxu0 0.0
      %345 = vmatpush.msra.mxu0 0.0
      %346 = vmatpush.msra.mxu0 0.0
      %347 = vmatpush.msra.mxu0 0.0
      %348 = vmatpush.msra.mxu0 0.0
      %349 = vmatpush.msra.mxu0 0.0
      %350 = vmatpush.msra.mxu0 0.0
      %351 = vmatpush.msra.mxu0 0.0
      %352 = vmatpush.msra.mxu0 %v341
      %353 = vmatpush.msra.mxu0 %v334
      %354 = vmatpush.msra.mxu0 %v333
      %355 = vmatpush.msra.mxu0 %v332
      %356 = vmatpush.msra.mxu0 %v331
      %357 = vmatpush.msra.mxu0 %v330
      %358 = vmatpush.msra.mxu0 %v329
      %359 = vmatmul.f32.gmra.mxu0 %v297
      %v360 = vpop.f32.mrf.mxu0
      %v361 = vadd.f32 %v338, %v360
      %362 = vmatmul.f32.gmra.mxu0 %v300
      %v363 = vpop.f32.mrf.mxu0
      %v364 = vadd.f32 %v338, %v363
      %365 = vdwg.mxu0
      %v366 = vld [vmem:[%s2] sm:$0xff]
      %v367 = vld [vmem:[%s2 + $0x8] sm:$0xff]
      %v368 = vld [vmem:[%s2 + $0x10] sm:$0xff]
      %v369 = vld [vmem:[%s2 + $0x18] sm:$0x1]
      %v370 = vld [vmem:[%s5] sm:$0xff]
      %v371 = vld [vmem:[%s5 + $0x8] sm:$0xff]
      %v372 = vld [vmem:[%s5 + $0x10] sm:$0xff]
      %v373 = vld [vmem:[%s5 + $0x18] sm:$0x1]
      %vm374 = vcmask 203776
      %v376 = vsel %vm374, 0.0, 0
      %vm378 = vcmask 1040384
      %v380 = vsel %vm378, %v369, 0
      %382 = vmatpush.msra.mxu0 0.0
      %383 = vmatpush.msra.mxu0 0.0
      %384 = vmatpush.msra.mxu0 0.0
      %385 = vmatpush.msra.mxu0 0.0
      %386 = vmatpush.msra.mxu0 0.0
      %387 = vmatpush.msra.mxu0 0.0
      %388 = vmatpush.msra.mxu0 0.0
      %389 = vmatpush.msra.mxu0 0.0
      %390 = vmatpush.msra.mxu0 0.0
      %391 = vmatpush.msra.mxu0 0.0
      %392 = vmatpush.msra.mxu0 0.0
      %393 = vmatpush.msra.mxu0 0.0
      %394 = vmatpush.msra.mxu0 %v380
      %395 = vmatpush.msra.mxu0 %v368
      %396 = vmatpush.msra.mxu0 %v367
      %397 = vmatpush.msra.mxu0 %v366
      %398 = vmatmul.f32.gmra.mxu0 %v376
      %v399 = vpop.f32.mrf.mxu0
      %v400 = vadd.f32 0.0, %v399
      %401 = vdwg.mxu0
      %v402 = vadd.f32 %v324, %v400
      %v404 = vsel %vm378, %v373, 0
      %406 = vmatpush.msra.mxu0 0.0
      %407 = vmatpush.msra.mxu0 0.0
      %408 = vmatpush.msra.mxu0 0.0
      %409 = vmatpush.msra.mxu0 0.0
      %410 = vmatpush.msra.mxu0 0.0
      %411 = vmatpush.msra.mxu0 0.0
      %412 = vmatpush.msra.mxu0 0.0
      %413 = vmatpush.msra.mxu0 0.0
      %414 = vmatpush.msra.mxu0 0.0
      %415 = vmatpush.msra.mxu0 0.0
      %416 = vmatpush.msra.mxu0 0.0
      %417 = vmatpush.msra.mxu0 0.0
      %418 = vmatpush.msra.mxu0 %v404
      %419 = vmatpush.msra.mxu0 %v372
      %420 = vmatpush.msra.mxu0 %v371
      %421 = vmatpush.msra.mxu0 %v370
      %422 = vmatmul.f32.gmra.mxu0 %v376
      %v423 = vpop.f32.mrf.mxu0
      %v424 = vadd.f32 0.0, %v423
      %425 = vdwg.mxu0
      %v426 = vadd.f32 %v364, %v424
      %v427 = vxor.u32 %v402, 2147483648
      %v428 = vmul.f32 %v427, 1.442695
      %v429 = vpow.pop %v428
      %v430 = vadd.f32 %v429, 1.0
      %v431 = vrcp.pop %v430
      %v432 = vmul.f32 %v430, %v431
      %v433 = vsub.f32 1.0, %v432
      %v434 = vmul.f32 %v431, %v433
      %v435 = vadd.f32 %v431, %v434
      %vm436 = vweird.f32 %v430
      %vm437 = vweird.f32 %v431
      %vm438 = vmor %vm436, %vm437
      %v439 = vsel %vm438, %v431, %v435
      %v440 = vand.u32 2147483647, %v430
      %vm441 = vcmp.eq.f32.partialorder %v440, 8.507059e+37
      %v442 = vand.u32 %v430, 2147483648
      %v443 = vor.u32 1.1754944e-38, %v442
      %v444 = vsel %vm441, %v443, %v439
      %v445 = vmul.f32 1.0, %v444
      %v446 = vxor.u32 %v426, 2147483648
      %v447 = vmul.f32 %v446, 1.442695
      %v448 = vpow.pop %v447
      %v449 = vadd.f32 %v448, 1.0
      %v450 = vrcp.pop %v449
      %v451 = vmul.f32 %v449, %v450
      %v452 = vsub.f32 1.0, %v451
      %v453 = vmul.f32 %v450, %v452
      %v454 = vadd.f32 %v450, %v453
      %vm455 = vweird.f32 %v449
      %vm456 = vweird.f32 %v450
      %vm457 = vmor %vm455, %vm456
      %v458 = vsel %vm457, %v450, %v454
      %v459 = vand.u32 2147483647, %v449
      %vm460 = vcmp.eq.f32.partialorder %v459, 8.507059e+37
      %v461 = vand.u32 %v449, 2147483648
      %v462 = vor.u32 1.1754944e-38, %v461
      %v463 = vsel %vm460, %v462, %v458
      %v464 = vmul.f32 1.0, %v463
      %v465 = vmul.f32 %v445, 0.0
      %v466 = vtanh.pop %v402
      %468 = vrot.lane.b32.xlu0 %v466, 78
      %v469 = vpop.permute.xlu0 %468
      %v471 = vmul.f32 %v445, %v469
      %473 = vrot.lane.b32.xlu0 %v471, 25
      %v474 = vpop.permute.xlu0 %473
      %v476 = vadd.f32 %v465, %v474
      %v477 = vmul.f32 %v464, 0.0
      %v478 = vtanh.pop %v426
      %480 = vrot.lane.b32.xlu0 %v478, 78
      %v481 = vpop.permute.xlu0 %480
      %v483 = vmul.f32 %v464, %v481
      %485 = vrot.lane.b32.xlu0 %v483, 25
      %v486 = vpop.permute.xlu0 %485
      %v488 = vadd.f32 %v477, %v486
      %v489 = vtanh.pop %v476
      %491 = vrot.lane.b32.xlu0 %v489, 50
      %v492 = vpop.permute.xlu0 %491
      %v494 = vmul.f32 %v445, %v492
      %v495 = vtanh.pop %v488
      %497 = vrot.lane.b32.xlu0 %v495, 50
      %v498 = vpop.permute.xlu0 %497
      %v500 = vmul.f32 %v464, %v498
      %502 = vrot.lane.b32.xlu0 %v494, 53
      %v503 = vpop.permute.xlu0 %502
      %505 = vst.msk [vmem:[%s280] sm:$0xff] %vm374, %v503
      %507 = vrot.lane.b32.xlu0 %v500, 78
      %v508 = vpop.permute.xlu0 %507
      %vm510 = vcmask 408776
      %511 = vst.msk [vmem:[%s280 + $0x8] sm:$0xff] %vm510, %v508
      %v512 = vsel %vm374, %v503, 0
      %514 = vmatpush.msra.mxu0 0.0
      %515 = vmatpush.msra.mxu0 0.0
      %516 = vmatpush.msra.mxu0 0.0
      %517 = vmatpush.msra.mxu0 0.0
      %518 = vmatpush.msra.mxu0 0.0
      %519 = vmatpush.msra.mxu0 0.0
      %520 = vmatpush.msra.mxu0 0.0
      %521 = vmatpush.msra.mxu0 0.0
      %522 = vmatpush.msra.mxu0 0.0
      %523 = vmatpush.msra.mxu0 0.0
      %524 = vmatpush.msra.mxu0 0.0
      %525 = vmatpush.msra.mxu0 0.0
      %526 = vmatpush.msra.mxu0 %v380
      %527 = vmatpush.msra.mxu0 %v368
      %528 = vmatpush.msra.mxu0 %v367
      %529 = vmatpush.msra.mxu0 %v366
      %530 = vmatmul.f32.gmra.mxu0 %v512
      %v531 = vpop.f32.mrf.mxu0
      %v532 = vadd.f32 0.0, %v531
      %533 = vdwg.mxu0
      %v534 = vadd.f32 %v327, %v532
      %535 = vrot.lane.b32.xlu0 %v500, 53
      %v536 = vpop.permute.xlu0 %535
      %v537 = vsel %vm374, %v536, 0
      %539 = vmatpush.msra.mxu0 0.0
      %540 = vmatpush.msra.mxu0 0.0
      %541 = vmatpush.msra.mxu0 0.0
      %542 = vmatpush.msra.mxu0 0.0
      %543 = vmatpush.msra.mxu0 0.0
      %544 = vmatpush.msra.mxu0 0.0
      %545 = vmatpush.msra.mxu0 0.0
      %546 = vmatpush.msra.mxu0 0.0
      %547 = vmatpush.msra.mxu0 0.0
      %548 = vmatpush.msra.mxu0 0.0
      %549 = vmatpush.msra.mxu0 0.0
      %550 = vmatpush.msra.mxu0 0.0
      %551 = vmatpush.msra.mxu0 %v404
      %552 = vmatpush.msra.mxu0 %v372
      %553 = vmatpush.msra.mxu0 %v371
      %554 = vmatpush.msra.mxu0 %v370
      %555 = vmatmul.f32.gmra.mxu0 %v537
      %v556 = vpop.f32.mrf.mxu0
      %v557 = vadd.f32 0.0, %v556
      %558 = vdwg.mxu0
      %v559 = vadd.f32 %v361, %v557
      %v560 = vxor.u32 %v534, 2147483648
      %v561 = vmul.f32 %v560, 1.442695
      %v562 = vpow.pop %v561
      %v563 = vadd.f32 %v562, 1.0
      %v564 = vrcp.pop %v563
      %v565 = vmul.f32 %v563, %v564
      %v566 = vsub.f32 1.0, %v565
      %v567 = vmul.f32 %v564, %v566
      %v568 = vadd.f32 %v564, %v567
      %vm569 = vweird.f32 %v563
      %vm570 = vweird.f32 %v564
      %vm571 = vmor %vm569, %vm570
      %v572 = vsel %vm571, %v564, %v568
      %v573 = vand.u32 2147483647, %v563
      %vm574 = vcmp.eq.f32.partialorder %v573, 8.507059e+37
      %v575 = vand.u32 %v563, 2147483648
      %v576 = vor.u32 1.1754944e-38, %v575
      %v577 = vsel %vm574, %v576, %v572
      %v578 = vmul.f32 1.0, %v577
      %v579 = vxor.u32 %v559, 2147483648
      %v580 = vmul.f32 %v579, 1.442695
      %v581 = vpow.pop %v580
      %v582 = vadd.f32 %v581, 1.0
      %v583 = vrcp.pop %v582
      %v584 = vmul.f32 %v582, %v583
      %v585 = vsub.f32 1.0, %v584
      %v586 = vmul.f32 %v583, %v585
      %v587 = vadd.f32 %v583, %v586
      %vm588 = vweird.f32 %v582
      %vm589 = vweird.f32 %v583
      %vm590 = vmor %vm588, %vm589
      %v591 = vsel %vm590, %v583, %v587
      %v592 = vand.u32 2147483647, %v582
      %vm593 = vcmp.eq.f32.partialorder %v592, 8.507059e+37
      %v594 = vand.u32 %v582, 2147483648
      %v595 = vor.u32 1.1754944e-38, %v594
      %v596 = vsel %vm593, %v595, %v591
      %v597 = vmul.f32 1.0, %v596
      %v598 = vmul.f32 %v578, %v476
      %v599 = vtanh.pop %v534
      %601 = vrot.lane.b32.xlu0 %v599, 78
      %v602 = vpop.permute.xlu0 %601
      %v604 = vmul.f32 %v578, %v602
      %606 = vrot.lane.b32.xlu0 %v604, 25
      %v607 = vpop.permute.xlu0 %606
      %v609 = vadd.f32 %v598, %v607
      %v610 = vmul.f32 %v597, %v488
      %v611 = vtanh.pop %v559
      %613 = vrot.lane.b32.xlu0 %v611, 78
      %v614 = vpop.permute.xlu0 %613
      %v616 = vmul.f32 %v597, %v614
      %618 = vrot.lane.b32.xlu0 %v616, 25
      %v619 = vpop.permute.xlu0 %618
      %v621 = vadd.f32 %v610, %v619
      %v622 = vtanh.pop %v609
      %624 = vrot.lane.b32.xlu0 %v622, 50
      %v625 = vpop.permute.xlu0 %624
      %v627 = vmul.f32 %v578, %v625
      %v628 = vtanh.pop %v621
      %630 = vrot.lane.b32.xlu0 %v628, 50
      %v631 = vpop.permute.xlu0 %630
      %v633 = vmul.f32 %v597, %v631
      %635 = vrot.lane.b32.xlu0 %v627, 53
      %v636 = vpop.permute.xlu0 %635
      %638 = vst.msk [vmem:[%s280 + $0x8] sm:$0xff] %vm374, %v636
      %640 = vrot.lane.b32.xlu0 %v633, 78
      %v641 = vpop.permute.xlu0 %640
      %643 = vst.msk [vmem:[%s280] sm:$0xff] %vm510, %v641
      %s644 = smul.u32 2, %s18
      %p645 = scmp.lt.s32.totalorder %s644, 3
      %s646 = scalar_select %p645, %s644, 3
      %s647 = smul.addr %s646, 8
      %s648 = scalar_lea.vmem %s7, %s647
      // Predicated region
      $region49: #{forward.7} parent=47 // pred_check
        %p649 = pneg %p188
      $region50: #{forward.7} parent=47 // pred_check_branch
        %651 = sbr.rel (%p649) target = $region52
      $region51: #{forward.7} parent=47 // pred_region
        %s652 = smul.u32 2, %s18
      $region52: #{forward.7} parent=47 // pred_fallthru
        _
    $region48: #{forward.7} parent=5 // pred_fallthru
      _
    %p653 = scmp.le.s32.totalorder 2, %s13
    // Predicated region
    $region53: #{forward.7} parent=5 // pred_check
      %p654 = pneg %p653
    $region54: #{forward.7} parent=5 // pred_check_branch
      %656 = sbr.rel (%p654) target = $region56
    $region55: #{forward.7} parent=5 // pred_region
      %s657 = ssub.s32 %s13, 2
      // Predicated region
      $region57: #{forward.7} parent=55 // pred_check
        %p658 = pneg %p194
      $region58: #{forward.7} parent=55 // pred_check_branch
        %660 = sbr.rel (%p658) target = $region60
      $region59: #{forward.7} parent=55 // pred_region
        %s661 = smul.u32 2, %s19
        %p662 = scmp.lt.s32.totalorder %s661, 3
        %s663 = scalar_select %p662, %s661, 3
        %s664 = smul.addr %s663, 8
        %s665 = scalar_lea.vmem %s7, %s664
      $region60: #{forward.7} parent=55 // pred_fallthru
        _
    $region56: #{forward.7} parent=5 // pred_fallthru
      _
  $region6: #{forward.7} parent=0 // loop_footer
    %s17 = sadd.s32 1, %s13
  $region7: #{forward.7} parent=0 // loop_footer_branch
    %12 = sbr.rel target = $region3
  $region8: #{forward.7} parent=0 // loop_exit
    _

// kernel: forward.6
$region0: #{forward.6}
  #allocation0 [shape = 'u32[]', space=smem, size = 0x4, offset = 0x4, fixed_abs, tag = 'smem constant byte address 0x4 - core index']
  #allocation1 [shape = 'u32[72,128]{1,0:T(1,128)}', space=vmem, size = 0x9000, scoped, tag = 'internal scratch']
  #allocation2 [shape = 'f32[80,50]{1,0:T(8,128)}', space=vmem, size = 0xa000, scoped, tag = 'scratch operand']
  #allocation3 [shape = 'f32[1,1]{1,0:T(1,128)S(1)}', space=vmem, size = 0x200, scoped, tag = 'scoped memory for forward.6']
  %s0 = inlined_call_operand.vmem [shape: f32[160,25], index: 0, kind: input, shape index: {}]
  %s1 = inlined_call_operand.vmem [shape: f32[25,100], index: 1, kind: input, shape index: {}]
  %s2 = inlined_call_operand.vmem [shape: f32[25,100], index: 2, kind: input, shape index: {}]
  %s3 = inlined_call_operand.vmem [shape: f32[1,100], index: 3, kind: input, shape index: {}]
  %s4 = inlined_call_operand.vmem [shape: f32[25,100], index: 4, kind: input, shape index: {}]
  %s5 = inlined_call_operand.vmem [shape: f32[25,100], index: 5, kind: input, shape index: {}]
  %s6 = inlined_call_operand.vmem [shape: f32[1,100], index: 6, kind: input, shape index: {}]
  %s7 = inlined_call_operand.vmem [shape: f32[50,50], index: 7, kind: input, shape index: {}]
  %s8 = inlined_call_operand.vmem [shape: f32[1,50], index: 8, kind: input, shape index: {}]
  %s9 = inlined_call_operand.vmem [shape: f32[50,1], index: 9, kind: input, shape index: {}]
  %s10 = inlined_call_operand.vmem [shape: f32[50,1], index: 10, kind: input, shape index: {}]
  %s11 = inlined_call_operand.<no memory space> [shape: f32[1,1], index: 11, kind: input, shape index: {}]
  %s12 = inlined_call_operand.vmem [shape: f32[32,50], index: 12, kind: output, shape index: {0}]
  %s13 = inlined_call_operand.vmem [shape: f32[32,1], index: 13, kind: output, shape index: {1}]
  %14 = xla_tuple %s12, %s13
  %s15 = sld [smem:[#allocation0]]
  $region89: #{forward.6} parent=0
    _
  %s17 = ssub.s32 1, %s15
  %s18 = scalar_select 0, %s17, %s15
  %v19 = vstv %s11
  %20 = vst [vmem:[#allocation3] sm:$0x1] %v19
  loop: start=0, step=1, limit=4
  $region2: #{forward.6} parent=0 // loop_pre_header
    _
  $region3: #{forward.6} parent=0 // loop_header
    %s22 = sphi 0, %s26
    %p23 = scmp.ge.s32.totalorder %s22, 4
    %s32 = sphi 0, %s34
    %s35 = sphi 0, %s32
    %s36 = sphi 0, %s35
    %s52 = sphi 0, %s36
    %s56 = sphi 0, %s56
    %s58 = sphi 0, %s56
    %s59 = sphi 0, %s58
    %s73 = sphi 0, %s59
    %s77 = sphi 0, %s77
    %s79 = sphi 0, %s77
    %s80 = sphi 0, %s79
    %s94 = sphi 0, %s80
    %s98 = sphi 0, %s98
    %s100 = sphi 0, %s98
    %s101 = sphi 0, %s100
    %s115 = sphi 0, %s101
    %s119 = sphi 0, %s119
    %s121 = sphi 0, %s119
    %s122 = sphi 0, %s121
    %s136 = sphi 0, %s122
    %s140 = sphi 0, %s140
    %s142 = sphi 0, %s140
    %s143 = sphi 0, %s142
    %s157 = sphi 0, %s143
    %s161 = sphi 0, %s161
    %s163 = sphi 0, %s161
    %s164 = sphi 0, %s163
    %s178 = sphi 0, %s164
    %s182 = sphi 0, %s182
    %s184 = sphi 0, %s182
    %s185 = sphi 0, %s184
    %s199 = sphi 0, %s185
    %s203 = sphi 0, %s203
    %s205 = sphi 0, %s203
    %s206 = sphi 0, %s205
    %s220 = sphi 0, %s206
    %s224 = sphi 0, %s224
    %s226 = sphi 0, %s224
    %s227 = sphi 0, %s226
    %s241 = sphi 0, %s227
    %s245 = sphi 0, %s245
    %s247 = sphi 0, %s245
    %s248 = sphi 0, %s247
    %s262 = sphi 0, %s248
    %s266 = sphi 0, %s266
    %s268 = sphi 0, %s266
    %s269 = sphi 0, %s268
    %s283 = sphi 0, %s269
    %s289 = sphi 0, %s291
    %s292 = sphi 0, %s289
    %s293 = sphi 0, %s292
    %s309 = sphi 0, %s293
    %s315 = sphi 0, %s317
    %s318 = sphi 0, %s315
    %s319 = sphi 0, %s318
    %s335 = sphi 0, %s319
  $region4: #{forward.6} parent=0 // loop_header_branch
    %25 = sbr.rel (%p23) target = $region8
  $region5: #{forward.6} parent=0 // loop_body
    %s27 = ssub.s32 %s22, 1
    %s28 = ssub.s32 %s22, 2
    %s29 = sadd.s32 %s22, 1
    %s30 = ssub.s32 %s22, %s29
    %p31 = scmp.eq.s32.totalorder %s30, 0
    %s33 = sadd.s32 %s32, 1
    %s34 = scalar_select %p31, %s32, %s33
    %p37 = pneg %p31
    %p38 = scmp.eq.s32.totalorder %s22, 1
    %p39 = por %p37, %p38
    %p40 = scmp.ne.s32.totalorder %s32, %s35
    %p41 = scmp.eq.s32.totalorder %s22, 0
    %p42 = por %p40, %p41
    %p43 = scmp.ne.s32.totalorder %s32, %s35
    %p44 = scmp.eq.s32.totalorder %s27, 1
    %p45 = por %p43, %p44
    %p46 = scmp.ne.s32.totalorder %s35, %s36
    %p47 = scmp.eq.s32.totalorder %s27, 0
    %p48 = por %p46, %p47
    %p49 = scmp.ne.s32.totalorder %s35, %s36
    %p50 = scmp.eq.s32.totalorder %s28, 1
    %p51 = por %p49, %p50
    %p53 = scmp.ne.s32.totalorder %s36, %s52
    %p54 = scmp.eq.s32.totalorder %s28, 0
    %p55 = por %p53, %p54
    %s57 = sadd.s32 %s56, 1
    %p60 = scmp.eq.s32.totalorder %s22, 1
    %p61 = scmp.ne.s32.totalorder %s56, %s58
    %p62 = scmp.eq.s32.totalorder %s22, 0
    %p63 = por %p61, %p62
    %p64 = scmp.ne.s32.totalorder %s56, %s58
    %p65 = scmp.eq.s32.totalorder %s27, 1
    %p66 = por %p64, %p65
    %p67 = scmp.ne.s32.totalorder %s58, %s59
    %p68 = scmp.eq.s32.totalorder %s27, 0
    %p69 = por %p67, %p68
    %p70 = scmp.ne.s32.totalorder %s58, %s59
    %p71 = scmp.eq.s32.totalorder %s28, 1
    %p72 = por %p70, %p71
    %p74 = scmp.ne.s32.totalorder %s59, %s73
    %p75 = scmp.eq.s32.totalorder %s28, 0
    %p76 = por %p74, %p75
    %s78 = sadd.s32 %s77, 1
    %p81 = scmp.eq.s32.totalorder %s22, 1
    %p82 = scmp.ne.s32.totalorder %s77, %s79
    %p83 = scmp.eq.s32.totalorder %s22, 0
    %p84 = por %p82, %p83
    %p85 = scmp.ne.s32.totalorder %s77, %s79
    %p86 = scmp.eq.s32.totalorder %s27, 1
    %p87 = por %p85, %p86
    %p88 = scmp.ne.s32.totalorder %s79, %s80
    %p89 = scmp.eq.s32.totalorder %s27, 0
    %p90 = por %p88, %p89
    %p91 = scmp.ne.s32.totalorder %s79, %s80
    %p92 = scmp.eq.s32.totalorder %s28, 1
    %p93 = por %p91, %p92
    %p95 = scmp.ne.s32.totalorder %s80, %s94
    %p96 = scmp.eq.s32.totalorder %s28, 0
    %p97 = por %p95, %p96
    %s99 = sadd.s32 %s98, 1
    %p102 = scmp.eq.s32.totalorder %s22, 1
    %p103 = scmp.ne.s32.totalorder %s98, %s100
    %p104 = scmp.eq.s32.totalorder %s22, 0
    %p105 = por %p103, %p104
    %p106 = scmp.ne.s32.totalorder %s98, %s100
    %p107 = scmp.eq.s32.totalorder %s27, 1
    %p108 = por %p106, %p107
    %p109 = scmp.ne.s32.totalorder %s100, %s101
    %p110 = scmp.eq.s32.totalorder %s27, 0
    %p111 = por %p109, %p110
    %p112 = scmp.ne.s32.totalorder %s100, %s101
    %p113 = scmp.eq.s32.totalorder %s28, 1
    %p114 = por %p112, %p113
    %p116 = scmp.ne.s32.totalorder %s101, %s115
    %p117 = scmp.eq.s32.totalorder %s28, 0
    %p118 = por %p116, %p117
    %s120 = sadd.s32 %s119, 1
    %p123 = scmp.eq.s32.totalorder %s22, 1
    %p124 = scmp.ne.s32.totalorder %s119, %s121
    %p125 = scmp.eq.s32.totalorder %s22, 0
    %p126 = por %p124, %p125
    %p127 = scmp.ne.s32.totalorder %s119, %s121
    %p128 = scmp.eq.s32.totalorder %s27, 1
    %p129 = por %p127, %p128
    %p130 = scmp.ne.s32.totalorder %s121, %s122
    %p131 = scmp.eq.s32.totalorder %s27, 0
    %p132 = por %p130, %p131
    %p133 = scmp.ne.s32.totalorder %s121, %s122
    %p134 = scmp.eq.s32.totalorder %s28, 1
    %p135 = por %p133, %p134
    %p137 = scmp.ne.s32.totalorder %s122, %s136
    %p138 = scmp.eq.s32.totalorder %s28, 0
    %p139 = por %p137, %p138
    %s141 = sadd.s32 %s140, 1
    %p144 = scmp.eq.s32.totalorder %s22, 1
    %p145 = scmp.ne.s32.totalorder %s140, %s142
    %p146 = scmp.eq.s32.totalorder %s22, 0
    %p147 = por %p145, %p146
    %p148 = scmp.ne.s32.totalorder %s140, %s142
    %p149 = scmp.eq.s32.totalorder %s27, 1
    %p150 = por %p148, %p149
    %p151 = scmp.ne.s32.totalorder %s142, %s143
    %p152 = scmp.eq.s32.totalorder %s27, 0
    %p153 = por %p151, %p152
    %p154 = scmp.ne.s32.totalorder %s142, %s143
    %p155 = scmp.eq.s32.totalorder %s28, 1
    %p156 = por %p154, %p155
    %p158 = scmp.ne.s32.totalorder %s143, %s157
    %p159 = scmp.eq.s32.totalorder %s28, 0
    %p160 = por %p158, %p159
    %s162 = sadd.s32 %s161, 1
    %p165 = scmp.eq.s32.totalorder %s22, 1
    %p166 = scmp.ne.s32.totalorder %s161, %s163
    %p167 = scmp.eq.s32.totalorder %s22, 0
    %p168 = por %p166, %p167
    %p169 = scmp.ne.s32.totalorder %s161, %s163
    %p170 = scmp.eq.s32.totalorder %s27, 1
    %p171 = por %p169, %p170
    %p172 = scmp.ne.s32.totalorder %s163, %s164
    %p173 = scmp.eq.s32.totalorder %s27, 0
    %p174 = por %p172, %p173
    %p175 = scmp.ne.s32.totalorder %s163, %s164
    %p176 = scmp.eq.s32.totalorder %s28, 1
    %p177 = por %p175, %p176
    %p179 = scmp.ne.s32.totalorder %s164, %s178
    %p180 = scmp.eq.s32.totalorder %s28, 0
    %p181 = por %p179, %p180
    %s183 = sadd.s32 %s182, 1
    %p186 = scmp.eq.s32.totalorder %s22, 1
    %p187 = scmp.ne.s32.totalorder %s182, %s184
    %p188 = scmp.eq.s32.totalorder %s22, 0
    %p189 = por %p187, %p188
    %p190 = scmp.ne.s32.totalorder %s182, %s184
    %p191 = scmp.eq.s32.totalorder %s27, 1
    %p192 = por %p190, %p191
    %p193 = scmp.ne.s32.totalorder %s184, %s185
    %p194 = scmp.eq.s32.totalorder %s27, 0
    %p195 = por %p193, %p194
    %p196 = scmp.ne.s32.totalorder %s184, %s185
    %p197 = scmp.eq.s32.totalorder %s28, 1
    %p198 = por %p196, %p197
    %p200 = scmp.ne.s32.totalorder %s185, %s199
    %p201 = scmp.eq.s32.totalorder %s28, 0
    %p202 = por %p200, %p201
    %s204 = sadd.s32 %s203, 1
    %p207 = scmp.eq.s32.totalorder %s22, 1
    %p208 = scmp.ne.s32.totalorder %s203, %s205
    %p209 = scmp.eq.s32.totalorder %s22, 0
    %p210 = por %p208, %p209
    %p211 = scmp.ne.s32.totalorder %s203, %s205
    %p212 = scmp.eq.s32.totalorder %s27, 1
    %p213 = por %p211, %p212
    %p214 = scmp.ne.s32.totalorder %s205, %s206
    %p215 = scmp.eq.s32.totalorder %s27, 0
    %p216 = por %p214, %p215
    %p217 = scmp.ne.s32.totalorder %s205, %s206
    %p218 = scmp.eq.s32.totalorder %s28, 1
    %p219 = por %p217, %p218
    %p221 = scmp.ne.s32.totalorder %s206, %s220
    %p222 = scmp.eq.s32.totalorder %s28, 0
    %p223 = por %p221, %p222
    %s225 = sadd.s32 %s224, 1
    %p228 = scmp.eq.s32.totalorder %s22, 1
    %p229 = scmp.ne.s32.totalorder %s224, %s226
    %p230 = scmp.eq.s32.totalorder %s22, 0
    %p231 = por %p229, %p230
    %p232 = scmp.ne.s32.totalorder %s224, %s226
    %p233 = scmp.eq.s32.totalorder %s27, 1
    %p234 = por %p232, %p233
    %p235 = scmp.ne.s32.totalorder %s226, %s227
    %p236 = scmp.eq.s32.totalorder %s27, 0
    %p237 = por %p235, %p236
    %p238 = scmp.ne.s32.totalorder %s226, %s227
    %p239 = scmp.eq.s32.totalorder %s28, 1
    %p240 = por %p238, %p239
    %p242 = scmp.ne.s32.totalorder %s227, %s241
    %p243 = scmp.eq.s32.totalorder %s28, 0
    %p244 = por %p242, %p243
    %s246 = sadd.s32 %s245, 1
    %p249 = scmp.eq.s32.totalorder %s22, 1
    %p250 = scmp.ne.s32.totalorder %s245, %s247
    %p251 = scmp.eq.s32.totalorder %s22, 0
    %p252 = por %p250, %p251
    %p253 = scmp.ne.s32.totalorder %s245, %s247
    %p254 = scmp.eq.s32.totalorder %s27, 1
    %p255 = por %p253, %p254
    %p256 = scmp.ne.s32.totalorder %s247, %s248
    %p257 = scmp.eq.s32.totalorder %s27, 0
    %p258 = por %p256, %p257
    %p259 = scmp.ne.s32.totalorder %s247, %s248
    %p260 = scmp.eq.s32.totalorder %s28, 1
    %p261 = por %p259, %p260
    %p263 = scmp.ne.s32.totalorder %s248, %s262
    %p264 = scmp.eq.s32.totalorder %s28, 0
    %p265 = por %p263, %p264
    %s267 = sadd.s32 %s266, 1
    %p270 = scmp.eq.s32.totalorder %s22, 1
    %p271 = scmp.ne.s32.totalorder %s266, %s268
    %p272 = scmp.eq.s32.totalorder %s22, 0
    %p273 = por %p271, %p272
    %p274 = scmp.ne.s32.totalorder %s266, %s268
    %p275 = scmp.eq.s32.totalorder %s27, 1
    %p276 = por %p274, %p275
    %p277 = scmp.ne.s32.totalorder %s268, %s269
    %p278 = scmp.eq.s32.totalorder %s27, 0
    %p279 = por %p277, %p278
    %p280 = scmp.ne.s32.totalorder %s268, %s269
    %p281 = scmp.eq.s32.totalorder %s28, 1
    %p282 = por %p280, %p281
    %p284 = scmp.ne.s32.totalorder %s269, %s283
    %p285 = scmp.eq.s32.totalorder %s28, 0
    %p286 = por %p284, %p285
    %s287 = ssub.s32 %s22, %s29
    %p288 = scmp.eq.s32.totalorder %s287, 0
    %s290 = sadd.s32 %s289, 1
    %s291 = scalar_select %p288, %s289, %s290
    %p294 = pneg %p288
    %p295 = scmp.eq.s32.totalorder %s22, 1
    %p296 = por %p294, %p295
    %p297 = scmp.ne.s32.totalorder %s289, %s292
    %p298 = scmp.eq.s32.totalorder %s22, 0
    %p299 = por %p297, %p298
    %p300 = scmp.ne.s32.totalorder %s289, %s292
    %p301 = scmp.eq.s32.totalorder %s27, 1
    %p302 = por %p300, %p301
    %p303 = scmp.ne.s32.totalorder %s292, %s293
    %p304 = scmp.eq.s32.totalorder %s27, 0
    %p305 = por %p303, %p304
    %p306 = scmp.ne.s32.totalorder %s292, %s293
    %p307 = scmp.eq.s32.totalorder %s28, 1
    %p308 = por %p306, %p307
    %p310 = scmp.ne.s32.totalorder %s293, %s309
    %p311 = scmp.eq.s32.totalorder %s28, 0
    %p312 = por %p310, %p311
    %s313 = ssub.s32 %s22, %s29
    %p314 = scmp.eq.s32.totalorder %s313, 0
    %s316 = sadd.s32 %s315, 1
    %s317 = scalar_select %p314, %s315, %s316
    %p320 = pneg %p314
    %p321 = scmp.eq.s32.totalorder %s22, 1
    %p322 = por %p320, %p321
    %p323 = scmp.ne.s32.totalorder %s315, %s318
    %p324 = scmp.eq.s32.totalorder %s22, 0
    %p325 = por %p323, %p324
    %p326 = scmp.ne.s32.totalorder %s315, %s318
    %p327 = scmp.eq.s32.totalorder %s27, 1
    %p328 = por %p326, %p327
    %p329 = scmp.ne.s32.totalorder %s318, %s319
    %p330 = scmp.eq.s32.totalorder %s27, 0
    %p331 = por %p329, %p330
    %p332 = scmp.ne.s32.totalorder %s318, %s319
    %p333 = scmp.eq.s32.totalorder %s28, 1
    %p334 = por %p332, %p333
    %p336 = scmp.ne.s32.totalorder %s319, %s335
    %p337 = scmp.eq.s32.totalorder %s28, 0
    %p338 = por %p336, %p337
    %p339 = scmp.le.s32.totalorder 1, %s22
    %p340 = scmp.lt.s32.totalorder %s22, 3
    %p341 = pnand %p339, %p340
    %p342 = pneg %p341
    // Predicated region
    $region9: #{forward.6} parent=5 // pred_check
      _
    $region10: #{forward.6} parent=5 // pred_check_branch
      %344 = sbr.rel (%p341) target = $region12
    $region11: #{forward.6} parent=5 // pred_region
      %s345 = ssub.s32 %s22, 1
      // Predicated region
      $region13: #{forward.6} parent=11 // pred_check
        %p346 = pneg %p69
      $region14: #{forward.6} parent=11 // pred_check_branch
        %348 = sbr.rel (%p346) target = $region16
      $region15: #{forward.6} parent=11 // pred_region
        _
      $region16: #{forward.6} parent=11 // pred_fallthru
        _
      // Predicated region
      $region17: #{forward.6} parent=11 // pred_check
        %p349 = pneg %p90
      $region18: #{forward.6} parent=11 // pred_check_branch
        %351 = sbr.rel (%p349) target = $region20
      $region19: #{forward.6} parent=11 // pred_region
        _
      $region20: #{forward.6} parent=11 // pred_fallthru
        _
      // Predicated region
      $region21: #{forward.6} parent=11 // pred_check
        %p352 = pneg %p111
      $region22: #{forward.6} parent=11 // pred_check_branch
        %354 = sbr.rel (%p352) target = $region24
      $region23: #{forward.6} parent=11 // pred_region
        _
      $region24: #{forward.6} parent=11 // pred_fallthru
        _
      // Predicated region
      $region25: #{forward.6} parent=11 // pred_check
        %p355 = pneg %p132
      $region26: #{forward.6} parent=11 // pred_check_branch
        %357 = sbr.rel (%p355) target = $region28
      $region27: #{forward.6} parent=11 // pred_region
        _
      $region28: #{forward.6} parent=11 // pred_fallthru
        _
      // Predicated region
      $region29: #{forward.6} parent=11 // pred_check
        %p358 = pneg %p153
      $region30: #{forward.6} parent=11 // pred_check_branch
        %360 = sbr.rel (%p358) target = $region32
      $region31: #{forward.6} parent=11 // pred_region
        _
      $region32: #{forward.6} parent=11 // pred_fallthru
        _
      // Predicated region
      $region33: #{forward.6} parent=11 // pred_check
        %p361 = pneg %p174
      $region34: #{forward.6} parent=11 // pred_check_branch
        %363 = sbr.rel (%p361) target = $region36
      $region35: #{forward.6} parent=11 // pred_region
        _
      $region36: #{forward.6} parent=11 // pred_fallthru
        _
      // Predicated region
      $region37: #{forward.6} parent=11 // pred_check
        %p364 = pneg %p195
      $region38: #{forward.6} parent=11 // pred_check_branch
        %366 = sbr.rel (%p364) target = $region40
      $region39: #{forward.6} parent=11 // pred_region
        _
      $region40: #{forward.6} parent=11 // pred_fallthru
        _
      // Predicated region
      $region41: #{forward.6} parent=11 // pred_check
        %p367 = pneg %p216
      $region42: #{forward.6} parent=11 // pred_check_branch
        %369 = sbr.rel (%p367) target = $region44
      $region43: #{forward.6} parent=11 // pred_region
        _
      $region44: #{forward.6} parent=11 // pred_fallthru
        _
      // Predicated region
      $region45: #{forward.6} parent=11 // pred_check
        %p370 = pneg %p237
      $region46: #{forward.6} parent=11 // pred_check_branch
        %372 = sbr.rel (%p370) target = $region48
      $region47: #{forward.6} parent=11 // pred_region
        _
      $region48: #{forward.6} parent=11 // pred_fallthru
        _
      // Predicated region
      $region49: #{forward.6} parent=11 // pred_check
        %p373 = pneg %p258
      $region50: #{forward.6} parent=11 // pred_check_branch
        %375 = sbr.rel (%p373) target = $region52
      $region51: #{forward.6} parent=11 // pred_region
        _
      $region52: #{forward.6} parent=11 // pred_fallthru
        _
      // Predicated region
      $region53: #{forward.6} parent=11 // pred_check
        %p376 = pneg %p279
      $region54: #{forward.6} parent=11 // pred_check_branch
        %378 = sbr.rel (%p376) target = $region56
      $region55: #{forward.6} parent=11 // pred_region
        _
      $region56: #{forward.6} parent=11 // pred_fallthru
        _
    $region12: #{forward.6} parent=5 // pred_fallthru
      _
    %p379 = scmp.lt.s32.totalorder %s22, 2
    // Predicated region
    $region57: #{forward.6} parent=5 // pred_check
      %p380 = pneg %p379
    $region58: #{forward.6} parent=5 // pred_check_branch
      %382 = sbr.rel (%p380) target = $region60
    $region59: #{forward.6} parent=5 // pred_region
      // Predicated region
      $region61: #{forward.6} parent=59 // pred_check
        %p383 = pneg %p42
      $region62: #{forward.6} parent=59 // pred_check_branch
        %385 = sbr.rel (%p383) target = $region64
      $region63: #{forward.6} parent=59 // pred_region
        %s386 = smul.u32 10, %s22
        %p387 = scmp.lt.s32.totalorder %s386, 19
        %s388 = scalar_select %p387, %s386, 19
        %s389 = smul.addr %s388, 8
        %s390 = scalar_lea.vmem %s0, %s389
        %s391 = smul.u32 10, %s22
      $region64: #{forward.6} parent=59 // pred_fallthru
        _
    $region60: #{forward.6} parent=5 // pred_fallthru
      _
    %p392 = scmp.le.s32.totalorder 1, %s22
    %p393 = scmp.lt.s32.totalorder %s22, 3
    %p394 = pnand %p392, %p393
    %p395 = pneg %p394
    // Predicated region
    $region65: #{forward.6} parent=5 // pred_check
      _
    $region66: #{forward.6} parent=5 // pred_check_branch
      %397 = sbr.rel (%p394) target = $region68
    $region67: #{forward.6} parent=5 // pred_region
      %s398 = ssub.s32 %s22, 1
      %s399 = smul.u32 10, %s27
      %p400 = scmp.lt.s32.totalorder %s399, 19
      %s401 = scalar_select %p400, %s399, 19
      %s402 = smul.addr %s401, 8
      %s403 = scalar_lea.vmem %s0, %s402
      %p404 = pneg %p48
      %p405 = pneg %p45
      %p406 = pneg %p69
      %p407 = pneg %p66
      %p408 = pneg %p90
      %p409 = pneg %p87
      %p410 = pneg %p111
      %p411 = pneg %p108
      %p412 = pneg %p132
      %p413 = pneg %p129
      %p414 = pneg %p153
      %p415 = pneg %p150
      %p416 = pneg %p174
      %p417 = pneg %p171
      %p418 = pneg %p195
      %p419 = pneg %p192
      %p420 = pneg %p216
      %p421 = pneg %p213
      %p422 = pneg %p237
      %p423 = pneg %p234
      %p424 = pneg %p258
      %p425 = pneg %p255
      %p426 = pneg %p279
      %p427 = pneg %p276
      %p428 = pneg %p305
      %p429 = pneg %p302
      %s430 = smul.u32 2, %s27
      %p431 = scmp.lt.s32.totalorder %s430, 3
      %s432 = scalar_select %p431, %s430, 3
      %s433 = smul.addr %s432, 8
      %s434 = scalar_lea.vmem %s12, %s433
      %p435 = pneg %p331
      %p436 = pneg %p328
      %s437 = smul.u32 2, %s27
      %p438 = scmp.lt.s32.totalorder %s437, 3
      %s439 = scalar_select %p438, %s437, 3
      %s440 = smul.addr %s439, 8
      %s441 = scalar_lea.vmem %s13, %s440
      %s442 = smul.u32 10, %s27
      %p443 = scmp.lt.s32.totalorder %s442, 19
      %s444 = scalar_select %p443, %s442, 19
      %s445 = smul.addr %s444, 8
      %s446 = scalar_lea.vmem %s0, %s445
      %s447 = smul.u32 10, %s27
      %s448 = smul.u32 2, %s27
      %p449 = scmp.lt.s32.totalorder %s448, 3
      %s450 = scalar_select %p449, %s448, 3
      %s451 = smul.addr %s450, 8
      %s452 = scalar_lea.vmem %s12, %s451
      %s453 = smul.u32 2, %s27
      %s454 = smul.u32 2, %s27
      %p455 = scmp.lt.s32.totalorder %s454, 3
      %s456 = scalar_select %p455, %s454, 3
      %s457 = smul.addr %s456, 8
      %s458 = scalar_lea.vmem %s13, %s457
      %s459 = smul.u32 2, %s27
      %v460 = vld [vmem:[%s446] sm:$0xff]
      %v461 = vld [vmem:[%s446 + $0x8] sm:$0xff]
      %v462 = vld [vmem:[%s446 + $0x10] sm:$0xff]
      %v463 = vld [vmem:[%s446 + $0x18] sm:$0xff]
      %v464 = vld [vmem:[%s446 + $0x20] sm:$0xff]
      %v465 = vld [vmem:[%s446 + $0x28] sm:$0xff]
      %v466 = vld [vmem:[%s446 + $0x30] sm:$0xff]
      %v467 = vld [vmem:[%s446 + $0x38] sm:$0xff]
      %v468 = vld [vmem:[%s446 + $0x40] sm:$0xff]
      %v469 = vld [vmem:[%s446 + $0x48] sm:$0xff]
      %v470 = vld [vmem:[%s1] sm:$0xff]
      %v471 = vld [vmem:[%s1 + $0x8] sm:$0xff]
      %v472 = vld [vmem:[%s1 + $0x10] sm:$0xff]
      %v473 = vld [vmem:[%s1 + $0x18] sm:$0x1]
      %v474 = vld [vmem:[%s3] sm:$0x1]
      %v476 = vperm.slane %v474, 0
      %vm478 = vcmask 203776
      %v480 = vsel %vm478, %v460, 0
      %v483 = vsel %vm478, %v461, 0
      %v486 = vsel %vm478, %v462, 0
      %v489 = vsel %vm478, %v463, 0
      %v492 = vsel %vm478, %v464, 0
      %v495 = vsel %vm478, %v465, 0
      %v498 = vsel %vm478, %v466, 0
      %v501 = vsel %vm478, %v467, 0
      %v504 = vsel %vm478, %v468, 0
      %v507 = vsel %vm478, %v469, 0
      %vm509 = vcmask 1040384
      %v511 = vsel %vm509, %v473, 0
      %513 = vmatpush.msra.mxu0 0.0
      %514 = vmatpush.msra.mxu0 0.0
      %515 = vmatpush.msra.mxu0 0.0
      %516 = vmatpush.msra.mxu0 0.0
      %517 = vmatpush.msra.mxu0 0.0
      %518 = vmatpush.msra.mxu0 0.0
      %519 = vmatpush.msra.mxu0 0.0
      %520 = vmatpush.msra.mxu0 0.0
      %521 = vmatpush.msra.mxu0 0.0
      %522 = vmatpush.msra.mxu0 0.0
      %523 = vmatpush.msra.mxu0 0.0
      %524 = vmatpush.msra.mxu0 0.0
      %525 = vmatpush.msra.mxu0 %v511
      %526 = vmatpush.msra.mxu0 %v472
      %527 = vmatpush.msra.mxu0 %v471
      %528 = vmatpush.msra.mxu0 %v470
      %529 = vmatmul.f32.gmra.mxu0 %v480
      %v530 = vpop.f32.mrf.mxu0
      %v531 = vadd.f32 %v476, %v530
      %532 = vmatmul.f32.gmra.mxu0 %v483
      %v533 = vpop.f32.mrf.mxu0
      %v534 = vadd.f32 %v476, %v533
      %535 = vmatmul.f32.gmra.mxu0 %v486
      %v536 = vpop.f32.mrf.mxu0
      %v537 = vadd.f32 %v476, %v536
      %538 = vmatmul.f32.gmra.mxu0 %v489
      %v539 = vpop.f32.mrf.mxu0
      %v540 = vadd.f32 %v476, %v539
      %541 = vmatmul.f32.gmra.mxu0 %v492
      %v542 = vpop.f32.mrf.mxu0
      %v543 = vadd.f32 %v476, %v542
      %544 = vmatmul.f32.gmra.mxu0 %v495
      %v545 = vpop.f32.mrf.mxu0
      %v546 = vadd.f32 %v476, %v545
      %547 = vmatmul.f32.gmra.mxu0 %v498
      %v548 = vpop.f32.mrf.mxu0
      %v549 = vadd.f32 %v476, %v548
      %550 = vmatmul.f32.gmra.mxu0 %v501
      %v551 = vpop.f32.mrf.mxu0
      %v552 = vadd.f32 %v476, %v551
      %553 = vmatmul.f32.gmra.mxu0 %v504
      %v554 = vpop.f32.mrf.mxu0
      %v555 = vadd.f32 %v476, %v554
      %556 = vmatmul.f32.gmra.mxu0 %v507
      %v557 = vpop.f32.mrf.mxu0
      %v558 = vadd.f32 %v476, %v557
      %559 = vdwg.mxu0
      %v560 = vld [vmem:[%s4] sm:$0xff]
      %v561 = vld [vmem:[%s4 + $0x8] sm:$0xff]
      %v562 = vld [vmem:[%s4 + $0x10] sm:$0xff]
      %v563 = vld [vmem:[%s4 + $0x18] sm:$0x1]
      %v564 = vld [vmem:[%s6] sm:$0x1]
      %v566 = vperm.slane %v564, 0
      %v569 = vsel %vm509, %v563, 0
      %571 = vmatpush.msra.mxu0 0.0
      %572 = vmatpush.msra.mxu0 0.0
      %573 = vmatpush.msra.mxu0 0.0
      %574 = vmatpush.msra.mxu0 0.0
      %575 = vmatpush.msra.mxu0 0.0
      %576 = vmatpush.msra.mxu0 0.0
      %577 = vmatpush.msra.mxu0 0.0
      %578 = vmatpush.msra.mxu0 0.0
      %579 = vmatpush.msra.mxu0 0.0
      %580 = vmatpush.msra.mxu0 0.0
      %581 = vmatpush.msra.mxu0 0.0
      %582 = vmatpush.msra.mxu0 0.0
      %583 = vmatpush.msra.mxu0 %v569
      %584 = vmatpush.msra.mxu0 %v562
      %585 = vmatpush.msra.mxu0 %v561
      %586 = vmatpush.msra.mxu0 %v560
      %587 = vmatmul.f32.gmra.mxu0 %v480
      %v588 = vpop.f32.mrf.mxu0
      %v589 = vadd.f32 %v566, %v588
      %590 = vmatmul.f32.gmra.mxu0 %v483
      %v591 = vpop.f32.mrf.mxu0
      %v592 = vadd.f32 %v566, %v591
      %593 = vmatmul.f32.gmra.mxu0 %v486
      %v594 = vpop.f32.mrf.mxu0
      %v595 = vadd.f32 %v566, %v594
      %596 = vmatmul.f32.gmra.mxu0 %v489
      %v597 = vpop.f32.mrf.mxu0
      %v598 = vadd.f32 %v566, %v597
      %599 = vmatmul.f32.gmra.mxu0 %v492
      %v600 = vpop.f32.mrf.mxu0
      %v601 = vadd.f32 %v566, %v600
      %602 = vmatmul.f32.gmra.mxu0 %v495
      %v603 = vpop.f32.mrf.mxu0
      %v604 = vadd.f32 %v566, %v603
      %605 = vmatmul.f32.gmra.mxu0 %v498
      %v606 = vpop.f32.mrf.mxu0
      %v607 = vadd.f32 %v566, %v606
      %608 = vmatmul.f32.gmra.mxu0 %v501
      %v609 = vpop.f32.mrf.mxu0
      %v610 = vadd.f32 %v566, %v609
      %611 = vmatmul.f32.gmra.mxu0 %v504
      %v612 = vpop.f32.mrf.mxu0
      %v613 = vadd.f32 %v566, %v612
      %614 = vmatmul.f32.gmra.mxu0 %v507
      %v615 = vpop.f32.mrf.mxu0
      %v616 = vadd.f32 %v566, %v615
      %617 = vdwg.mxu0
      %v618 = vld [vmem:[%s2] sm:$0xff]
      %v619 = vld [vmem:[%s2 + $0x8] sm:$0xff]
      %v620 = vld [vmem:[%s2 + $0x10] sm:$0xff]
      %v621 = vld [vmem:[%s2 + $0x18] sm:$0x1]
      %v622 = vld [vmem:[%s5] sm:$0xff]
      %v623 = vld [vmem:[%s5 + $0x8] sm:$0xff]
      %v624 = vld [vmem:[%s5 + $0x10] sm:$0xff]
      %v625 = vld [vmem:[%s5 + $0x18] sm:$0x1]
      %v627 = vsel %vm478, 0.0, 0
      %v630 = vsel %vm509, %v621, 0
      %632 = vmatpush.msra.mxu0 0.0
      %633 = vmatpush.msra.mxu0 0.0
      %634 = vmatpush.msra.mxu0 0.0
      %635 = vmatpush.msra.mxu0 0.0
      %636 = vmatpush.msra.mxu0 0.0
      %637 = vmatpush.msra.mxu0 0.0
      %638 = vmatpush.msra.mxu0 0.0
      %639 = vmatpush.msra.mxu0 0.0
      %640 = vmatpush.msra.mxu0 0.0
      %641 = vmatpush.msra.mxu0 0.0
      %642 = vmatpush.msra.mxu0 0.0
      %643 = vmatpush.msra.mxu0 0.0
      %644 = vmatpush.msra.mxu0 %v630
      %645 = vmatpush.msra.mxu0 %v620
      %646 = vmatpush.msra.mxu0 %v619
      %647 = vmatpush.msra.mxu0 %v618
      %648 = vmatmul.f32.gmra.mxu0 %v627
      %v649 = vpop.f32.mrf.mxu0
      %v650 = vadd.f32 0.0, %v649
      %651 = vmatmul.f32.gmra.mxu0 %v627
      %v652 = vpop.f32.mrf.mxu0
      %v653 = vadd.f32 0.0, %v652
      %654 = vdwg.mxu0
      %v655 = vadd.f32 %v531, %v650
      %v656 = vadd.f32 %v534, %v653
      %v658 = vsel %vm509, %v625, 0
      %660 = vmatpush.msra.mxu0 0.0
      %661 = vmatpush.msra.mxu0 0.0
      %662 = vmatpush.msra.mxu0 0.0
      %663 = vmatpush.msra.mxu0 0.0
      %664 = vmatpush.msra.mxu0 0.0
      %665 = vmatpush.msra.mxu0 0.0
      %666 = vmatpush.msra.mxu0 0.0
      %667 = vmatpush.msra.mxu0 0.0
      %668 = vmatpush.msra.mxu0 0.0
      %669 = vmatpush.msra.mxu0 0.0
      %670 = vmatpush.msra.mxu0 0.0
      %671 = vmatpush.msra.mxu0 0.0
      %672 = vmatpush.msra.mxu0 %v658
      %673 = vmatpush.msra.mxu0 %v624
      %674 = vmatpush.msra.mxu0 %v623
      %675 = vmatpush.msra.mxu0 %v622
      %676 = vmatmul.f32.gmra.mxu0 %v627
      %v677 = vpop.f32.mrf.mxu0
      %v678 = vadd.f32 0.0, %v677
      %679 = vmatmul.f32.gmra.mxu0 %v627
      %v680 = vpop.f32.mrf.mxu0
      %v681 = vadd.f32 0.0, %v680
      %682 = vdwg.mxu0
      %v683 = vadd.f32 %v613, %v678
      %v684 = vadd.f32 %v616, %v681
      %v685 = vxor.u32 %v655, 2147483648
      %v686 = vxor.u32 %v656, 2147483648
      %v687 = vmul.f32 %v685, 1.442695
      %v688 = vpow.pop %v687
      %v689 = vmul.f32 %v686, 1.442695
      %v690 = vpow.pop %v689
      %v691 = vadd.f32 %v688, 1.0
      %v692 = vadd.f32 %v690, 1.0
      %v693 = vrcp.pop %v691
      %v694 = vmul.f32 %v691, %v693
      %v695 = vsub.f32 1.0, %v694
      %v696 = vmul.f32 %v693, %v695
      %v697 = vadd.f32 %v693, %v696
      %vm698 = vweird.f32 %v691
      %vm699 = vweird.f32 %v693
      %vm700 = vmor %vm698, %vm699
      %v701 = vsel %vm700, %v693, %v697
      %v702 = vand.u32 2147483647, %v691
      %vm703 = vcmp.eq.f32.partialorder %v702, 8.507059e+37
      %v704 = vand.u32 %v691, 2147483648
      %v705 = vor.u32 1.1754944e-38, %v704
      %v706 = vsel %vm703, %v705, %v701
      %v707 = vmul.f32 1.0, %v706
      %v708 = vrcp.pop %v692
      %v709 = vmul.f32 %v692, %v708
      %v710 = vsub.f32 1.0, %v709
      %v711 = vmul.f32 %v708, %v710
      %v712 = vadd.f32 %v708, %v711
      %vm713 = vweird.f32 %v692
      %vm714 = vweird.f32 %v708
      %vm715 = vmor %vm713, %vm714
      %v716 = vsel %vm715, %v708, %v712
      %v717 = vand.u32 2147483647, %v692
      %vm718 = vcmp.eq.f32.partialorder %v717, 8.507059e+37
      %v719 = vand.u32 %v692, 2147483648
      %v720 = vor.u32 1.1754944e-38, %v719
      %v721 = vsel %vm718, %v720, %v716
      %v722 = vmul.f32 1.0, %v721
      %v723 = vxor.u32 %v683, 2147483648
      %v724 = vxor.u32 %v684, 2147483648
      %v725 = vmul.f32 %v723, 1.442695
      %v726 = vpow.pop %v725
      %v727 = vmul.f32 %v724, 1.442695
      %v728 = vpow.pop %v727
      %v729 = vadd.f32 %v726, 1.0
      %v730 = vadd.f32 %v728, 1.0
      %v731 = vrcp.pop %v729
      %v732 = vmul.f32 %v729, %v731
      %v733 = vsub.f32 1.0, %v732
      %v734 = vmul.f32 %v731, %v733
      %v735 = vadd.f32 %v731, %v734
      %vm736 = vweird.f32 %v729
      %vm737 = vweird.f32 %v731
      %vm738 = vmor %vm736, %vm737
      %v739 = vsel %vm738, %v731, %v735
      %v740 = vand.u32 2147483647, %v729
      %vm741 = vcmp.eq.f32.partialorder %v740, 8.507059e+37
      %v742 = vand.u32 %v729, 2147483648
      %v743 = vor.u32 1.1754944e-38, %v742
      %v744 = vsel %vm741, %v743, %v739
      %v745 = vmul.f32 1.0, %v744
      %v746 = vrcp.pop %v730
      %v747 = vmul.f32 %v730, %v746
      %v748 = vsub.f32 1.0, %v747
      %v749 = vmul.f32 %v746, %v748
      %v750 = vadd.f32 %v746, %v749
      %vm751 = vweird.f32 %v730
      %vm752 = vweird.f32 %v746
      %vm753 = vmor %vm751, %vm752
      %v754 = vsel %vm753, %v746, %v750
      %v755 = vand.u32 2147483647, %v730
      %vm756 = vcmp.eq.f32.partialorder %v755, 8.507059e+37
      %v757 = vand.u32 %v730, 2147483648
      %v758 = vor.u32 1.1754944e-38, %v757
      %v759 = vsel %vm756, %v758, %v754
      %v760 = vmul.f32 1.0, %v759
      %v761 = vmul.f32 %v707, 0.0
      %v762 = vmul.f32 %v722, 0.0
      %v763 = vtanh.pop %v655
      %v764 = vtanh.pop %v656
      %767 = vrot.lane.b32.xlu0 %v763, 78
      %v768 = vpop.permute.xlu0 %767
      %769 = vrot.lane.b32.xlu0 %v764, 78
      %v770 = vpop.permute.xlu0 %769
      %v773 = vmul.f32 %v707, %v768
      %v774 = vmul.f32 %v722, %v770
      %777 = vrot.lane.b32.xlu0 %v773, 25
      %v778 = vpop.permute.xlu0 %777
      %779 = vrot.lane.b32.xlu0 %v774, 25
      %v780 = vpop.permute.xlu0 %779
      %v783 = vadd.f32 %v761, %v778
      %v784 = vadd.f32 %v762, %v780
      %v785 = vmul.f32 %v745, 0.0
      %v786 = vmul.f32 %v760, 0.0
      %v787 = vtanh.pop %v683
      %v788 = vtanh.pop %v684
      %791 = vrot.lane.b32.xlu0 %v787, 78
      %v792 = vpop.permute.xlu0 %791
      %793 = vrot.lane.b32.xlu0 %v788, 78
      %v794 = vpop.permute.xlu0 %793
      %v797 = vmul.f32 %v745, %v792
      %v798 = vmul.f32 %v760, %v794
      %801 = vrot.lane.b32.xlu0 %v797, 25
      %v802 = vpop.permute.xlu0 %801
      %803 = vrot.lane.b32.xlu0 %v798, 25
      %v804 = vpop.permute.xlu0 %803
      %v807 = vadd.f32 %v785, %v802
      %v808 = vadd.f32 %v786, %v804
      %v809 = vtanh.pop %v783
      %v810 = vtanh.pop %v784
      %813 = vrot.lane.b32.xlu0 %v809, 50
      %v814 = vpop.permute.xlu0 %813
      %815 = vrot.lane.b32.xlu0 %v810, 50
      %v816 = vpop.permute.xlu0 %815
      %v819 = vmul.f32 %v707, %v814
      %v820 = vmul.f32 %v722, %v816
      %v821 = vtanh.pop %v807
      %v822 = vtanh.pop %v808
      %825 = vrot.lane.b32.xlu0 %v821, 50
      %v826 = vpop.permute.xlu0 %825
      %827 = vrot.lane.b32.xlu0 %v822, 50
      %v828 = vpop.permute.xlu0 %827
      %v831 = vmul.f32 %v745, %v826
      %v832 = vmul.f32 %v760, %v828
      %835 = vrot.lane.b32.xlu0 %v819, 53
      %v836 = vpop.permute.xlu0 %835
      %837 = vrot.lane.b32.xlu0 %v820, 53
      %v838 = vpop.permute.xlu0 %837
      %841 = vst.msk [vmem:[#allocation2] sm:$0xff] %vm478, %v836
      %842 = vst.msk [vmem:[#allocation2 + $0x8] sm:$0xff] %vm478, %v838
      %845 = vrot.lane.b32.xlu0 %v831, 78
      %v846 = vpop.permute.xlu0 %845
      %847 = vrot.lane.b32.xlu0 %v832, 78
      %v848 = vpop.permute.xlu0 %847
      %vm851 = vcmask 408776
      %852 = vst.msk [vmem:[#allocation2 + $0x40] sm:$0xff] %vm851, %v846
      %853 = vst.msk [vmem:[#allocation2 + $0x48] sm:$0xff] %vm851, %v848
      %v854 = vsel %vm478, %v836, 0
      %v856 = vsel %vm478, %v838, 0
      %858 = vmatpush.msra.mxu0 0.0
      %859 = vmatpush.msra.mxu0 0.0
      %860 = vmatpush.msra.mxu0 0.0
      %861 = vmatpush.msra.mxu0 0.0
      %862 = vmatpush.msra.mxu0 0.0
      %863 = vmatpush.msra.mxu0 0.0
      %864 = vmatpush.msra.mxu0 0.0
      %865 = vmatpush.msra.mxu0 0.0
      %866 = vmatpush.msra.mxu0 0.0
      %867 = vmatpush.msra.mxu0 0.0
      %868 = vmatpush.msra.mxu0 0.0
      %869 = vmatpush.msra.mxu0 0.0
      %870 = vmatpush.msra.mxu0 %v630
      %871 = vmatpush.msra.mxu0 %v620
      %872 = vmatpush.msra.mxu0 %v619
      %873 = vmatpush.msra.mxu0 %v618
      %874 = vmatmul.f32.gmra.mxu0 %v854
      %v875 = vpop.f32.mrf.mxu0
      %v876 = vadd.f32 0.0, %v875
      %877 = vmatmul.f32.gmra.mxu0 %v856
      %v878 = vpop.f32.mrf.mxu0
      %v879 = vadd.f32 0.0, %v878
      %880 = vdwg.mxu0
      %v881 = vadd.f32 %v537, %v876
      %v882 = vadd.f32 %v540, %v879
      %883 = vrot.lane.b32.xlu0 %v831, 53
      %v884 = vpop.permute.xlu0 %883
      %885 = vrot.lane.b32.xlu0 %v832, 53
      %v886 = vpop.permute.xlu0 %885
      %v887 = vsel %vm478, %v884, 0
      %v889 = vsel %vm478, %v886, 0
      %891 = vmatpush.msra.mxu0 0.0
      %892 = vmatpush.msra.mxu0 0.0
      %893 = vmatpush.msra.mxu0 0.0
      %894 = vmatpush.msra.mxu0 0.0
      %895 = vmatpush.msra.mxu0 0.0
      %896 = vmatpush.msra.mxu0 0.0
      %897 = vmatpush.msra.mxu0 0.0
      %898 = vmatpush.msra.mxu0 0.0
      %899 = vmatpush.msra.mxu0 0.0
      %900 = vmatpush.msra.mxu0 0.0
      %901 = vmatpush.msra.mxu0 0.0
      %902 = vmatpush.msra.mxu0 0.0
      %903 = vmatpush.msra.mxu0 %v658
      %904 = vmatpush.msra.mxu0 %v624
      %905 = vmatpush.msra.mxu0 %v623
      %906 = vmatpush.msra.mxu0 %v622
      %907 = vmatmul.f32.gmra.mxu0 %v887
      %v908 = vpop.f32.mrf.mxu0
      %v909 = vadd.f32 0.0, %v908
      %910 = vmatmul.f32.gmra.mxu0 %v889
      %v911 = vpop.f32.mrf.mxu0
      %v912 = vadd.f32 0.0, %v911
      %913 = vdwg.mxu0
      %v914 = vadd.f32 %v607, %v909
      %v915 = vadd.f32 %v610, %v912
      %v916 = vxor.u32 %v881, 2147483648
      %v917 = vxor.u32 %v882, 2147483648
      %v918 = vmul.f32 %v916, 1.442695
      %v919 = vpow.pop %v918
      %v920 = vmul.f32 %v917, 1.442695
      %v921 = vpow.pop %v920
      %v922 = vadd.f32 %v919, 1.0
      %v923 = vadd.f32 %v921, 1.0
      %v924 = vrcp.pop %v922
      %v925 = vmul.f32 %v922, %v924
      %v926 = vsub.f32 1.0, %v925
      %v927 = vmul.f32 %v924, %v926
      %v928 = vadd.f32 %v924, %v927
      %vm929 = vweird.f32 %v922
      %vm930 = vweird.f32 %v924
      %vm931 = vmor %vm929, %vm930
      %v932 = vsel %vm931, %v924, %v928
      %v933 = vand.u32 2147483647, %v922
      %vm934 = vcmp.eq.f32.partialorder %v933, 8.507059e+37
      %v935 = vand.u32 %v922, 2147483648
      %v936 = vor.u32 1.1754944e-38, %v935
      %v937 = vsel %vm934, %v936, %v932
      %v938 = vmul.f32 1.0, %v937
      %v939 = vrcp.pop %v923
      %v940 = vmul.f32 %v923, %v939
      %v941 = vsub.f32 1.0, %v940
      %v942 = vmul.f32 %v939, %v941
      %v943 = vadd.f32 %v939, %v942
      %vm944 = vweird.f32 %v923
      %vm945 = vweird.f32 %v939
      %vm946 = vmor %vm944, %vm945
      %v947 = vsel %vm946, %v939, %v943
      %v948 = vand.u32 2147483647, %v923
      %vm949 = vcmp.eq.f32.partialorder %v948, 8.507059e+37
      %v950 = vand.u32 %v923, 2147483648
      %v951 = vor.u32 1.1754944e-38, %v950
      %v952 = vsel %vm949, %v951, %v947
      %v953 = vmul.f32 1.0, %v952
      %v954 = vxor.u32 %v914, 2147483648
      %v955 = vxor.u32 %v915, 2147483648
      %v956 = vmul.f32 %v954, 1.442695
      %v957 = vpow.pop %v956
      %v958 = vmul.f32 %v955, 1.442695
      %v959 = vpow.pop %v958
      %v960 = vadd.f32 %v957, 1.0
      %v961 = vadd.f32 %v959, 1.0
      %v962 = vrcp.pop %v960
      %v963 = vmul.f32 %v960, %v962
      %v964 = vsub.f32 1.0, %v963
      %v965 = vmul.f32 %v962, %v964
      %v966 = vadd.f32 %v962, %v965
      %vm967 = vweird.f32 %v960
      %vm968 = vweird.f32 %v962
      %vm969 = vmor %vm967, %vm968
      %v970 = vsel %vm969, %v962, %v966
      %v971 = vand.u32 2147483647, %v960
      %vm972 = vcmp.eq.f32.partialorder %v971, 8.507059e+37
      %v973 = vand.u32 %v960, 2147483648
      %v974 = vor.u32 1.1754944e-38, %v973
      %v975 = vsel %vm972, %v974, %v970
      %v976 = vmul.f32 1.0, %v975
      %v977 = vrcp.pop %v961
      %v978 = vmul.f32 %v961, %v977
      %v979 = vsub.f32 1.0, %v978
      %v980 = vmul.f32 %v977, %v979
      %v981 = vadd.f32 %v977, %v980
      %vm982 = vweird.f32 %v961
      %vm983 = vweird.f32 %v977
      %vm984 = vmor %vm982, %vm983
      %v985 = vsel %vm984, %v977, %v981
      %v986 = vand.u32 2147483647, %v961
      %vm987 = vcmp.eq.f32.partialorder %v986, 8.507059e+37
      %v988 = vand.u32 %v961, 2147483648
      %v989 = vor.u32 1.1754944e-38, %v988
      %v990 = vsel %vm987, %v989, %v985
      %v991 = vmul.f32 1.0, %v990
      %v992 = vmul.f32 %v938, %v783
      %v993 = vmul.f32 %v953, %v784
      %v994 = vtanh.pop %v881
      %v995 = vtanh.pop %v882
      %998 = vrot.lane.b32.xlu0 %v994, 78
      %v999 = vpop.permute.xlu0 %998
      %1000 = vrot.lane.b32.xlu0 %v995, 78
      %v1001 = vpop.permute.xlu0 %1000
      %v1004 = vmul.f32 %v938, %v999
      %v1005 = vmul.f32 %v953, %v1001
      %1008 = vrot.lane.b32.xlu0 %v1004, 25
      %v1009 = vpop.permute.xlu0 %1008
      %1010 = vrot.lane.b32.xlu0 %v1005, 25
      %v1011 = vpop.permute.xlu0 %1010
      %v1014 = vadd.f32 %v992, %v1009
      %v1015 = vadd.f32 %v993, %v1011
      %v1016 = vmul.f32 %v976, %v807
      %v1017 = vmul.f32 %v991, %v808
      %v1018 = vtanh.pop %v914
      %v1019 = vtanh.pop %v915
      %1022 = vrot.lane.b32.xlu0 %v1018, 78
      %v1023 = vpop.permute.xlu0 %1022
      %1024 = vrot.lane.b32.xlu0 %v1019, 78
      %v1025 = vpop.permute.xlu0 %1024
      %v1028 = vmul.f32 %v976, %v1023
      %v1029 = vmul.f32 %v991, %v1025
      %1032 = vrot.lane.b32.xlu0 %v1028, 25
      %v1033 = vpop.permute.xlu0 %1032
      %1034 = vrot.lane.b32.xlu0 %v1029, 25
      %v1035 = vpop.permute.xlu0 %1034
      %v1038 = vadd.f32 %v1016, %v1033
      %v1039 = vadd.f32 %v1017, %v1035
      %v1040 = vtanh.pop %v1014
      %v1041 = vtanh.pop %v1015
      %1044 = vrot.lane.b32.xlu0 %v1040, 50
      %v1045 = vpop.permute.xlu0 %1044
      %1046 = vrot.lane.b32.xlu0 %v1041, 50
      %v1047 = vpop.permute.xlu0 %1046
      %v1050 = vmul.f32 %v938, %v1045
      %v1051 = vmul.f32 %v953, %v1047
      %v1052 = vtanh.pop %v1038
      %v1053 = vtanh.pop %v1039
      %1056 = vrot.lane.b32.xlu0 %v1052, 50
      %v1057 = vpop.permute.xlu0 %1056
      %1058 = vrot.lane.b32.xlu0 %v1053, 50
      %v1059 = vpop.permute.xlu0 %1058
      %v1062 = vmul.f32 %v976, %v1057
      %v1063 = vmul.f32 %v991, %v1059
      %1066 = vrot.lane.b32.xlu0 %v1050, 53
      %v1067 = vpop.permute.xlu0 %1066
      %1068 = vrot.lane.b32.xlu0 %v1051, 53
      %v1069 = vpop.permute.xlu0 %1068
      %1072 = vst.msk [vmem:[#allocation2 + $0x10] sm:$0xff] %vm478, %v1067
      %1073 = vst.msk [vmem:[#allocation2 + $0x18] sm:$0xff] %vm478, %v1069
      %1076 = vrot.lane.b32.xlu0 %v1062, 78
      %v1077 = vpop.permute.xlu0 %1076
      %1078 = vrot.lane.b32.xlu0 %v1063, 78
      %v1079 = vpop.permute.xlu0 %1078
      %1082 = vst.msk [vmem:[#allocation2 + $0x30] sm:$0xff] %vm851, %v1077
      %1083 = vst.msk [vmem:[#allocation2 + $0x38] sm:$0xff] %vm851, %v1079
      %v1084 = vsel %vm478, %v1067, 0
      %v1086 = vsel %vm478, %v1069, 0
      %1088 = vmatpush.msra.mxu0 0.0
      %1089 = vmatpush.msra.mxu0 0.0
      %1090 = vmatpush.msra.mxu0 0.0
      %1091 = vmatpush.msra.mxu0 0.0
      %1092 = vmatpush.msra.mxu0 0.0
      %1093 = vmatpush.msra.mxu0 0.0
      %1094 = vmatpush.msra.mxu0 0.0
      %1095 = vmatpush.msra.mxu0 0.0
      %1096 = vmatpush.msra.mxu0 0.0
      %1097 = vmatpush.msra.mxu0 0.0
      %1098 = vmatpush.msra.mxu0 0.0
      %1099 = vmatpush.msra.mxu0 0.0
      %1100 = vmatpush.msra.mxu0 %v630
      %1101 = vmatpush.msra.mxu0 %v620
      %1102 = vmatpush.msra.mxu0 %v619
      %1103 = vmatpush.msra.mxu0 %v618
      %1104 = vmatmul.f32.gmra.mxu0 %v1084
      %v1105 = vpop.f32.mrf.mxu0
      %v1106 = vadd.f32 0.0, %v1105
      %1107 = vmatmul.f32.gmra.mxu0 %v1086
      %v1108 = vpop.f32.mrf.mxu0
      %v1109 = vadd.f32 0.0, %v1108
      %1110 = vdwg.mxu0
      %v1111 = vadd.f32 %v543, %v1106
      %v1112 = vadd.f32 %v546, %v1109
      %1113 = vrot.lane.b32.xlu0 %v1062, 53
      %v1114 = vpop.permute.xlu0 %1113
      %1115 = vrot.lane.b32.xlu0 %v1063, 53
      %v1116 = vpop.permute.xlu0 %1115
      %v1117 = vsel %vm478, %v1114, 0
      %v1119 = vsel %vm478, %v1116, 0
      %1121 = vmatpush.msra.mxu0 0.0
      %1122 = vmatpush.msra.mxu0 0.0
      %1123 = vmatpush.msra.mxu0 0.0
      %1124 = vmatpush.msra.mxu0 0.0
      %1125 = vmatpush.msra.mxu0 0.0
      %1126 = vmatpush.msra.mxu0 0.0
      %1127 = vmatpush.msra.mxu0 0.0
      %1128 = vmatpush.msra.mxu0 0.0
      %1129 = vmatpush.msra.mxu0 0.0
      %1130 = vmatpush.msra.mxu0 0.0
      %1131 = vmatpush.msra.mxu0 0.0
      %1132 = vmatpush.msra.mxu0 0.0
      %1133 = vmatpush.msra.mxu0 %v658
      %1134 = vmatpush.msra.mxu0 %v624
      %1135 = vmatpush.msra.mxu0 %v623
      %1136 = vmatpush.msra.mxu0 %v622
      %1137 = vmatmul.f32.gmra.mxu0 %v1117
      %v1138 = vpop.f32.mrf.mxu0
      %v1139 = vadd.f32 0.0, %v1138
      %1140 = vmatmul.f32.gmra.mxu0 %v1119
      %v1141 = vpop.f32.mrf.mxu0
      %v1142 = vadd.f32 0.0, %v1141
      %1143 = vdwg.mxu0
      %v1144 = vadd.f32 %v601, %v1139
      %v1145 = vadd.f32 %v604, %v1142
      %v1146 = vxor.u32 %v1111, 2147483648
      %v1147 = vxor.u32 %v1112, 2147483648
      %v1148 = vmul.f32 %v1146, 1.442695
      %v1149 = vpow.pop %v1148
      %v1150 = vmul.f32 %v1147, 1.442695
      %v1151 = vpow.pop %v1150
      %v1152 = vadd.f32 %v1149, 1.0
      %v1153 = vadd.f32 %v1151, 1.0
      %v1154 = vrcp.pop %v1152
      %v1155 = vmul.f32 %v1152, %v1154
      %v1156 = vsub.f32 1.0, %v1155
      %v1157 = vmul.f32 %v1154, %v1156
      %v1158 = vadd.f32 %v1154, %v1157
      %vm1159 = vweird.f32 %v1152
      %vm1160 = vweird.f32 %v1154
      %vm1161 = vmor %vm1159, %vm1160
      %v1162 = vsel %vm1161, %v1154, %v1158
      %v1163 = vand.u32 2147483647, %v1152
      %vm1164 = vcmp.eq.f32.partialorder %v1163, 8.507059e+37
      %v1165 = vand.u32 %v1152, 2147483648
      %v1166 = vor.u32 1.1754944e-38, %v1165
      %v1167 = vsel %vm1164, %v1166, %v1162
      %v1168 = vmul.f32 1.0, %v1167
      %v1169 = vrcp.pop %v1153
      %v1170 = vmul.f32 %v1153, %v1169
      %v1171 = vsub.f32 1.0, %v1170
      %v1172 = vmul.f32 %v1169, %v1171
      %v1173 = vadd.f32 %v1169, %v1172
      %vm1174 = vweird.f32 %v1153
      %vm1175 = vweird.f32 %v1169
      %vm1176 = vmor %vm1174, %vm1175
      %v1177 = vsel %vm1176, %v1169, %v1173
      %v1178 = vand.u32 2147483647, %v1153
      %vm1179 = vcmp.eq.f32.partialorder %v1178, 8.507059e+37
      %v1180 = vand.u32 %v1153, 2147483648
      %v1181 = vor.u32 1.1754944e-38, %v1180
      %v1182 = vsel %vm1179, %v1181, %v1177
      %v1183 = vmul.f32 1.0, %v1182
      %v1184 = vxor.u32 %v1144, 2147483648
      %v1185 = vxor.u32 %v1145, 2147483648
      %v1186 = vmul.f32 %v1184, 1.442695
      %v1187 = vpow.pop %v1186
      %v1188 = vmul.f32 %v1185, 1.442695
      %v1189 = vpow.pop %v1188
      %v1190 = vadd.f32 %v1187, 1.0
      %v1191 = vadd.f32 %v1189, 1.0
      %v1192 = vrcp.pop %v1190
      %v1193 = vmul.f32 %v1190, %v1192
      %v1194 = vsub.f32 1.0, %v1193
      %v1195 = vmul.f32 %v1192, %v1194
      %v1196 = vadd.f32 %v1192, %v1195
      %vm1197 = vweird.f32 %v1190
      %vm1198 = vweird.f32 %v1192
      %vm1199 = vmor %vm1197, %vm1198
      %v1200 = vsel %vm1199, %v1192, %v1196
      %v1201 = vand.u32 2147483647, %v1190
      %vm1202 = vcmp.eq.f32.partialorder %v1201, 8.507059e+37
      %v1203 = vand.u32 %v1190, 2147483648
      %v1204 = vor.u32 1.1754944e-38, %v1203
      %v1205 = vsel %vm1202, %v1204, %v1200
      %v1206 = vmul.f32 1.0, %v1205
      %v1207 = vrcp.pop %v1191
      %v1208 = vmul.f32 %v1191, %v1207
      %v1209 = vsub.f32 1.0, %v1208
      %v1210 = vmul.f32 %v1207, %v1209
      %v1211 = vadd.f32 %v1207, %v1210
      %vm1212 = vweird.f32 %v1191
      %vm1213 = vweird.f32 %v1207
      %vm1214 = vmor %vm1212, %vm1213
      %v1215 = vsel %vm1214, %v1207, %v1211
      %v1216 = vand.u32 2147483647, %v1191
      %vm1217 = vcmp.eq.f32.partialorder %v1216, 8.507059e+37
      %v1218 = vand.u32 %v1191, 2147483648
      %v1219 = vor.u32 1.1754944e-38, %v1218
      %v1220 = vsel %vm1217, %v1219, %v1215
      %v1221 = vmul.f32 1.0, %v1220
      %v1222 = vmul.f32 %v1168, %v1014
      %v1223 = vmul.f32 %v1183, %v1015
      %v1224 = vtanh.pop %v1111
      %v1225 = vtanh.pop %v1112
      %1228 = vrot.lane.b32.xlu0 %v1224, 78
      %v1229 = vpop.permute.xlu0 %1228
      %1230 = vrot.lane.b32.xlu0 %v1225, 78
      %v1231 = vpop.permute.xlu0 %1230
      %v1234 = vmul.f32 %v1168, %v1229
      %v1235 = vmul.f32 %v1183, %v1231
      %1238 = vrot.lane.b32.xlu0 %v1234, 25
      %v1239 = vpop.permute.xlu0 %1238
      %1240 = vrot.lane.b32.xlu0 %v1235, 25
      %v1241 = vpop.permute.xlu0 %1240
      %v1244 = vadd.f32 %v1222, %v1239
      %v1245 = vadd.f32 %v1223, %v1241
      %v1246 = vmul.f32 %v1206, %v1038
      %v1247 = vmul.f32 %v1221, %v1039
      %v1248 = vtanh.pop %v1144
      %v1249 = vtanh.pop %v1145
      %1252 = vrot.lane.b32.xlu0 %v1248, 78
      %v1253 = vpop.permute.xlu0 %1252
      %1254 = vrot.lane.b32.xlu0 %v1249, 78
      %v1255 = vpop.permute.xlu0 %1254
      %v1258 = vmul.f32 %v1206, %v1253
      %v1259 = vmul.f32 %v1221, %v1255
      %1262 = vrot.lane.b32.xlu0 %v1258, 25
      %v1263 = vpop.permute.xlu0 %1262
      %1264 = vrot.lane.b32.xlu0 %v1259, 25
      %v1265 = vpop.permute.xlu0 %1264
      %v1268 = vadd.f32 %v1246, %v1263
      %v1269 = vadd.f32 %v1247, %v1265
      %v1270 = vtanh.pop %v1244
      %v1271 = vtanh.pop %v1245
      %1274 = vrot.lane.b32.xlu0 %v1270, 50
      %v1275 = vpop.permute.xlu0 %1274
      %1276 = vrot.lane.b32.xlu0 %v1271, 50
      %v1277 = vpop.permute.xlu0 %1276
      %v1280 = vmul.f32 %v1168, %v1275
      %v1281 = vmul.f32 %v1183, %v1277
      %v1282 = vtanh.pop %v1268
      %v1283 = vtanh.pop %v1269
      %1286 = vrot.lane.b32.xlu0 %v1282, 50
      %v1287 = vpop.permute.xlu0 %1286
      %1288 = vrot.lane.b32.xlu0 %v1283, 50
      %v1289 = vpop.permute.xlu0 %1288
      %v1292 = vmul.f32 %v1206, %v1287
      %v1293 = vmul.f32 %v1221, %v1289
      %1296 = vrot.lane.b32.xlu0 %v1280, 53
      %v1297 = vpop.permute.xlu0 %1296
      %1298 = vrot.lane.b32.xlu0 %v1281, 53
      %v1299 = vpop.permute.xlu0 %1298
      %1302 = vst.msk [vmem:[#allocation2 + $0x20] sm:$0xff] %vm478, %v1297
      %1303 = vst.msk [vmem:[#allocation2 + $0x28] sm:$0xff] %vm478, %v1299
      %1306 = vrot.lane.b32.xlu0 %v1292, 78
      %v1307 = vpop.permute.xlu0 %1306
      %1308 = vrot.lane.b32.xlu0 %v1293, 78
      %v1309 = vpop.permute.xlu0 %1308
      %1312 = vst.msk [vmem:[#allocation2 + $0x20] sm:$0xff] %vm851, %v1307
      %1313 = vst.msk [vmem:[#allocation2 + $0x28] sm:$0xff] %vm851, %v1309
      %v1314 = vsel %vm478, %v1297, 0
      %v1316 = vsel %vm478, %v1299, 0
      %1318 = vmatpush.msra.mxu0 0.0
      %1319 = vmatpush.msra.mxu0 0.0
      %1320 = vmatpush.msra.mxu0 0.0
      %1321 = vmatpush.msra.mxu0 0.0
      %1322 = vmatpush.msra.mxu0 0.0
      %1323 = vmatpush.msra.mxu0 0.0
      %1324 = vmatpush.msra.mxu0 0.0
      %1325 = vmatpush.msra.mxu0 0.0
      %1326 = vmatpush.msra.mxu0 0.0
      %1327 = vmatpush.msra.mxu0 0.0
      %1328 = vmatpush.msra.mxu0 0.0
      %1329 = vmatpush.msra.mxu0 0.0
      %1330 = vmatpush.msra.mxu0 %v630
      %1331 = vmatpush.msra.mxu0 %v620
      %1332 = vmatpush.msra.mxu0 %v619
      %1333 = vmatpush.msra.mxu0 %v618
      %1334 = vmatmul.f32.gmra.mxu0 %v1314
      %v1335 = vpop.f32.mrf.mxu0
      %v1336 = vadd.f32 0.0, %v1335
      %1337 = vmatmul.f32.gmra.mxu0 %v1316
      %v1338 = vpop.f32.mrf.mxu0
      %v1339 = vadd.f32 0.0, %v1338
      %1340 = vdwg.mxu0
      %v1341 = vadd.f32 %v549, %v1336
      %v1342 = vadd.f32 %v552, %v1339
      %1343 = vrot.lane.b32.xlu0 %v1292, 53
      %v1344 = vpop.permute.xlu0 %1343
      %1345 = vrot.lane.b32.xlu0 %v1293, 53
      %v1346 = vpop.permute.xlu0 %1345
      %v1347 = vsel %vm478, %v1344, 0
      %v1349 = vsel %vm478, %v1346, 0
      %1351 = vmatpush.msra.mxu0 0.0
      %1352 = vmatpush.msra.mxu0 0.0
      %1353 = vmatpush.msra.mxu0 0.0
      %1354 = vmatpush.msra.mxu0 0.0
      %1355 = vmatpush.msra.mxu0 0.0
      %1356 = vmatpush.msra.mxu0 0.0
      %1357 = vmatpush.msra.mxu0 0.0
      %1358 = vmatpush.msra.mxu0 0.0
      %1359 = vmatpush.msra.mxu0 0.0
      %1360 = vmatpush.msra.mxu0 0.0
      %1361 = vmatpush.msra.mxu0 0.0
      %1362 = vmatpush.msra.mxu0 0.0
      %1363 = vmatpush.msra.mxu0 %v658
      %1364 = vmatpush.msra.mxu0 %v624
      %1365 = vmatpush.msra.mxu0 %v623
      %1366 = vmatpush.msra.mxu0 %v622
      %1367 = vmatmul.f32.gmra.mxu0 %v1347
      %v1368 = vpop.f32.mrf.mxu0
      %v1369 = vadd.f32 0.0, %v1368
      %1370 = vmatmul.f32.gmra.mxu0 %v1349
      %v1371 = vpop.f32.mrf.mxu0
      %v1372 = vadd.f32 0.0, %v1371
      %1373 = vdwg.mxu0
      %v1374 = vadd.f32 %v595, %v1369
      %v1375 = vadd.f32 %v598, %v1372
      %v1376 = vxor.u32 %v1341, 2147483648
      %v1377 = vxor.u32 %v1342, 2147483648
      %v1378 = vmul.f32 %v1376, 1.442695
      %v1379 = vpow.pop %v1378
      %v1380 = vmul.f32 %v1377, 1.442695
      %v1381 = vpow.pop %v1380
      %v1382 = vadd.f32 %v1379, 1.0
      %v1383 = vadd.f32 %v1381, 1.0
      %v1384 = vrcp.pop %v1382
      %v1385 = vmul.f32 %v1382, %v1384
      %v1386 = vsub.f32 1.0, %v1385
      %v1387 = vmul.f32 %v1384, %v1386
      %v1388 = vadd.f32 %v1384, %v1387
      %vm1389 = vweird.f32 %v1382
      %vm1390 = vweird.f32 %v1384
      %vm1391 = vmor %vm1389, %vm1390
      %v1392 = vsel %vm1391, %v1384, %v1388
      %v1393 = vand.u32 2147483647, %v1382
      %vm1394 = vcmp.eq.f32.partialorder %v1393, 8.507059e+37
      %v1395 = vand.u32 %v1382, 2147483648
      %v1396 = vor.u32 1.1754944e-38, %v1395
      %v1397 = vsel %vm1394, %v1396, %v1392
      %v1398 = vmul.f32 1.0, %v1397
      %v1399 = vrcp.pop %v1383
      %v1400 = vmul.f32 %v1383, %v1399
      %v1401 = vsub.f32 1.0, %v1400
      %v1402 = vmul.f32 %v1399, %v1401
      %v1403 = vadd.f32 %v1399, %v1402
      %vm1404 = vweird.f32 %v1383
      %vm1405 = vweird.f32 %v1399
      %vm1406 = vmor %vm1404, %vm1405
      %v1407 = vsel %vm1406, %v1399, %v1403
      %v1408 = vand.u32 2147483647, %v1383
      %vm1409 = vcmp.eq.f32.partialorder %v1408, 8.507059e+37
      %v1410 = vand.u32 %v1383, 2147483648
      %v1411 = vor.u32 1.1754944e-38, %v1410
      %v1412 = vsel %vm1409, %v1411, %v1407
      %v1413 = vmul.f32 1.0, %v1412
      %v1414 = vxor.u32 %v1374, 2147483648
      %v1415 = vxor.u32 %v1375, 2147483648
      %v1416 = vmul.f32 %v1414, 1.442695
      %v1417 = vpow.pop %v1416
      %v1418 = vmul.f32 %v1415, 1.442695
      %v1419 = vpow.pop %v1418
      %v1420 = vadd.f32 %v1417, 1.0
      %v1421 = vadd.f32 %v1419, 1.0
      %v1422 = vrcp.pop %v1420
      %v1423 = vmul.f32 %v1420, %v1422
      %v1424 = vsub.f32 1.0, %v1423
      %v1425 = vmul.f32 %v1422, %v1424
      %v1426 = vadd.f32 %v1422, %v1425
      %vm1427 = vweird.f32 %v1420
      %vm1428 = vweird.f32 %v1422
      %vm1429 = vmor %vm1427, %vm1428
      %v1430 = vsel %vm1429, %v1422, %v1426
      %v1431 = vand.u32 2147483647, %v1420
      %vm1432 = vcmp.eq.f32.partialorder %v1431, 8.507059e+37
      %v1433 = vand.u32 %v1420, 2147483648
      %v1434 = vor.u32 1.1754944e-38, %v1433
      %v1435 = vsel %vm1432, %v1434, %v1430
      %v1436 = vmul.f32 1.0, %v1435
      %v1437 = vrcp.pop %v1421
      %v1438 = vmul.f32 %v1421, %v1437
      %v1439 = vsub.f32 1.0, %v1438
      %v1440 = vmul.f32 %v1437, %v1439
      %v1441 = vadd.f32 %v1437, %v1440
      %vm1442 = vweird.f32 %v1421
      %vm1443 = vweird.f32 %v1437
      %vm1444 = vmor %vm1442, %vm1443
      %v1445 = vsel %vm1444, %v1437, %v1441
      %v1446 = vand.u32 2147483647, %v1421
      %vm1447 = vcmp.eq.f32.partialorder %v1446, 8.507059e+37
      %v1448 = vand.u32 %v1421, 2147483648
      %v1449 = vor.u32 1.1754944e-38, %v1448
      %v1450 = vsel %vm1447, %v1449, %v1445
      %v1451 = vmul.f32 1.0, %v1450
      %v1452 = vmul.f32 %v1398, %v1244
      %v1453 = vmul.f32 %v1413, %v1245
      %v1454 = vtanh.pop %v1341
      %v1455 = vtanh.pop %v1342
      %1458 = vrot.lane.b32.xlu0 %v1454, 78
      %v1459 = vpop.permute.xlu0 %1458
      %1460 = vrot.lane.b32.xlu0 %v1455, 78
      %v1461 = vpop.permute.xlu0 %1460
      %v1464 = vmul.f32 %v1398, %v1459
      %v1465 = vmul.f32 %v1413, %v1461
      %1468 = vrot.lane.b32.xlu0 %v1464, 25
      %v1469 = vpop.permute.xlu0 %1468
      %1470 = vrot.lane.b32.xlu0 %v1465, 25
      %v1471 = vpop.permute.xlu0 %1470
      %v1474 = vadd.f32 %v1452, %v1469
      %v1475 = vadd.f32 %v1453, %v1471
      %v1476 = vmul.f32 %v1436, %v1268
      %v1477 = vmul.f32 %v1451, %v1269
      %v1478 = vtanh.pop %v1374
      %v1479 = vtanh.pop %v1375
      %1482 = vrot.lane.b32.xlu0 %v1478, 78
      %v1483 = vpop.permute.xlu0 %1482
      %1484 = vrot.lane.b32.xlu0 %v1479, 78
      %v1485 = vpop.permute.xlu0 %1484
      %v1488 = vmul.f32 %v1436, %v1483
      %v1489 = vmul.f32 %v1451, %v1485
      %1492 = vrot.lane.b32.xlu0 %v1488, 25
      %v1493 = vpop.permute.xlu0 %1492
      %1494 = vrot.lane.b32.xlu0 %v1489, 25
      %v1495 = vpop.permute.xlu0 %1494
      %v1498 = vadd.f32 %v1476, %v1493
      %v1499 = vadd.f32 %v1477, %v1495
      %v1500 = vtanh.pop %v1474
      %v1501 = vtanh.pop %v1475
      %1504 = vrot.lane.b32.xlu0 %v1500, 50
      %v1505 = vpop.permute.xlu0 %1504
      %1506 = vrot.lane.b32.xlu0 %v1501, 50
      %v1507 = vpop.permute.xlu0 %1506
      %v1510 = vmul.f32 %v1398, %v1505
      %v1511 = vmul.f32 %v1413, %v1507
      %v1512 = vtanh.pop %v1498
      %v1513 = vtanh.pop %v1499
      %1516 = vrot.lane.b32.xlu0 %v1512, 50
      %v1517 = vpop.permute.xlu0 %1516
      %1518 = vrot.lane.b32.xlu0 %v1513, 50
      %v1519 = vpop.permute.xlu0 %1518
      %v1522 = vmul.f32 %v1436, %v1517
      %v1523 = vmul.f32 %v1451, %v1519
      %1526 = vrot.lane.b32.xlu0 %v1510, 53
      %v1527 = vpop.permute.xlu0 %1526
      %1528 = vrot.lane.b32.xlu0 %v1511, 53
      %v1529 = vpop.permute.xlu0 %1528
      %1532 = vst.msk [vmem:[#allocation2 + $0x30] sm:$0xff] %vm478, %v1527
      %1533 = vst.msk [vmem:[#allocation2 + $0x38] sm:$0xff] %vm478, %v1529
      %1536 = vrot.lane.b32.xlu0 %v1522, 78
      %v1537 = vpop.permute.xlu0 %1536
      %1538 = vrot.lane.b32.xlu0 %v1523, 78
      %v1539 = vpop.permute.xlu0 %1538
      %1542 = vst.msk [vmem:[#allocation2 + $0x10] sm:$0xff] %vm851, %v1537
      %1543 = vst.msk [vmem:[#allocation2 + $0x18] sm:$0xff] %vm851, %v1539
      %v1544 = vsel %vm478, %v1527, 0
      %v1546 = vsel %vm478, %v1529, 0
      %1548 = vmatpush.msra.mxu0 0.0
      %1549 = vmatpush.msra.mxu0 0.0
      %1550 = vmatpush.msra.mxu0 0.0
      %1551 = vmatpush.msra.mxu0 0.0
      %1552 = vmatpush.msra.mxu0 0.0
      %1553 = vmatpush.msra.mxu0 0.0
      %1554 = vmatpush.msra.mxu0 0.0
      %1555 = vmatpush.msra.mxu0 0.0
      %1556 = vmatpush.msra.mxu0 0.0
      %1557 = vmatpush.msra.mxu0 0.0
      %1558 = vmatpush.msra.mxu0 0.0
      %1559 = vmatpush.msra.mxu0 0.0
      %1560 = vmatpush.msra.mxu0 %v630
      %1561 = vmatpush.msra.mxu0 %v620
      %1562 = vmatpush.msra.mxu0 %v619
      %1563 = vmatpush.msra.mxu0 %v618
      %1564 = vmatmul.f32.gmra.mxu0 %v1544
      %v1565 = vpop.f32.mrf.mxu0
      %v1566 = vadd.f32 0.0, %v1565
      %1567 = vmatmul.f32.gmra.mxu0 %v1546
      %v1568 = vpop.f32.mrf.mxu0
      %v1569 = vadd.f32 0.0, %v1568
      %1570 = vdwg.mxu0
      %v1571 = vadd.f32 %v555, %v1566
      %v1572 = vadd.f32 %v558, %v1569
      %1573 = vrot.lane.b32.xlu0 %v1522, 53
      %v1574 = vpop.permute.xlu0 %1573
      %1575 = vrot.lane.b32.xlu0 %v1523, 53
      %v1576 = vpop.permute.xlu0 %1575
      %v1577 = vsel %vm478, %v1574, 0
      %v1579 = vsel %vm478, %v1576, 0
      %1581 = vmatpush.msra.mxu0 0.0
      %1582 = vmatpush.msra.mxu0 0.0
      %1583 = vmatpush.msra.mxu0 0.0
      %1584 = vmatpush.msra.mxu0 0.0
      %1585 = vmatpush.msra.mxu0 0.0
      %1586 = vmatpush.msra.mxu0 0.0
      %1587 = vmatpush.msra.mxu0 0.0
      %1588 = vmatpush.msra.mxu0 0.0
      %1589 = vmatpush.msra.mxu0 0.0
      %1590 = vmatpush.msra.mxu0 0.0
      %1591 = vmatpush.msra.mxu0 0.0
      %1592 = vmatpush.msra.mxu0 0.0
      %1593 = vmatpush.msra.mxu0 %v658
      %1594 = vmatpush.msra.mxu0 %v624
      %1595 = vmatpush.msra.mxu0 %v623
      %1596 = vmatpush.msra.mxu0 %v622
      %1597 = vmatmul.f32.gmra.mxu0 %v1577
      %v1598 = vpop.f32.mrf.mxu0
      %v1599 = vadd.f32 0.0, %v1598
      %1600 = vmatmul.f32.gmra.mxu0 %v1579
      %v1601 = vpop.f32.mrf.mxu0
      %v1602 = vadd.f32 0.0, %v1601
      %1603 = vdwg.mxu0
      %v1604 = vadd.f32 %v589, %v1599
      %v1605 = vadd.f32 %v592, %v1602
      %v1606 = vxor.u32 %v1571, 2147483648
      %v1607 = vxor.u32 %v1572, 2147483648
      %v1608 = vmul.f32 %v1606, 1.442695
      %v1609 = vpow.pop %v1608
      %v1610 = vmul.f32 %v1607, 1.442695
      %v1611 = vpow.pop %v1610
      %v1612 = vadd.f32 %v1609, 1.0
      %v1613 = vadd.f32 %v1611, 1.0
      %v1614 = vrcp.pop %v1612
      %v1615 = vmul.f32 %v1612, %v1614
      %v1616 = vsub.f32 1.0, %v1615
      %v1617 = vmul.f32 %v1614, %v1616
      %v1618 = vadd.f32 %v1614, %v1617
      %vm1619 = vweird.f32 %v1612
      %vm1620 = vweird.f32 %v1614
      %vm1621 = vmor %vm1619, %vm1620
      %v1622 = vsel %vm1621, %v1614, %v1618
      %v1623 = vand.u32 2147483647, %v1612
      %vm1624 = vcmp.eq.f32.partialorder %v1623, 8.507059e+37
      %v1625 = vand.u32 %v1612, 2147483648
      %v1626 = vor.u32 1.1754944e-38, %v1625
      %v1627 = vsel %vm1624, %v1626, %v1622
      %v1628 = vmul.f32 1.0, %v1627
      %v1629 = vrcp.pop %v1613
      %v1630 = vmul.f32 %v1613, %v1629
      %v1631 = vsub.f32 1.0, %v1630
      %v1632 = vmul.f32 %v1629, %v1631
      %v1633 = vadd.f32 %v1629, %v1632
      %vm1634 = vweird.f32 %v1613
      %vm1635 = vweird.f32 %v1629
      %vm1636 = vmor %vm1634, %vm1635
      %v1637 = vsel %vm1636, %v1629, %v1633
      %v1638 = vand.u32 2147483647, %v1613
      %vm1639 = vcmp.eq.f32.partialorder %v1638, 8.507059e+37
      %v1640 = vand.u32 %v1613, 2147483648
      %v1641 = vor.u32 1.1754944e-38, %v1640
      %v1642 = vsel %vm1639, %v1641, %v1637
      %v1643 = vmul.f32 1.0, %v1642
      %v1644 = vxor.u32 %v1604, 2147483648
      %v1645 = vxor.u32 %v1605, 2147483648
      %v1646 = vmul.f32 %v1644, 1.442695
      %v1647 = vpow.pop %v1646
      %v1648 = vmul.f32 %v1645, 1.442695
      %v1649 = vpow.pop %v1648
      %v1650 = vadd.f32 %v1647, 1.0
      %v1651 = vadd.f32 %v1649, 1.0
      %v1652 = vrcp.pop %v1650
      %v1653 = vmul.f32 %v1650, %v1652
      %v1654 = vsub.f32 1.0, %v1653
      %v1655 = vmul.f32 %v1652, %v1654
      %v1656 = vadd.f32 %v1652, %v1655
      %vm1657 = vweird.f32 %v1650
      %vm1658 = vweird.f32 %v1652
      %vm1659 = vmor %vm1657, %vm1658
      %v1660 = vsel %vm1659, %v1652, %v1656
      %v1661 = vand.u32 2147483647, %v1650
      %vm1662 = vcmp.eq.f32.partialorder %v1661, 8.507059e+37
      %v1663 = vand.u32 %v1650, 2147483648
      %v1664 = vor.u32 1.1754944e-38, %v1663
      %v1665 = vsel %vm1662, %v1664, %v1660
      %v1666 = vmul.f32 1.0, %v1665
      %v1667 = vrcp.pop %v1651
      %v1668 = vmul.f32 %v1651, %v1667
      %v1669 = vsub.f32 1.0, %v1668
      %v1670 = vmul.f32 %v1667, %v1669
      %v1671 = vadd.f32 %v1667, %v1670
      %vm1672 = vweird.f32 %v1651
      %vm1673 = vweird.f32 %v1667
      %vm1674 = vmor %vm1672, %vm1673
      %v1675 = vsel %vm1674, %v1667, %v1671
      %v1676 = vand.u32 2147483647, %v1651
      %vm1677 = vcmp.eq.f32.partialorder %v1676, 8.507059e+37
      %v1678 = vand.u32 %v1651, 2147483648
      %v1679 = vor.u32 1.1754944e-38, %v1678
      %v1680 = vsel %vm1677, %v1679, %v1675
      %v1681 = vmul.f32 1.0, %v1680
      %v1682 = vmul.f32 %v1628, %v1474
      %v1683 = vmul.f32 %v1643, %v1475
      %v1684 = vtanh.pop %v1571
      %v1685 = vtanh.pop %v1572
      %1688 = vrot.lane.b32.xlu0 %v1684, 78
      %v1689 = vpop.permute.xlu0 %1688
      %1690 = vrot.lane.b32.xlu0 %v1685, 78
      %v1691 = vpop.permute.xlu0 %1690
      %v1694 = vmul.f32 %v1628, %v1689
      %v1695 = vmul.f32 %v1643, %v1691
      %1698 = vrot.lane.b32.xlu0 %v1694, 25
      %v1699 = vpop.permute.xlu0 %1698
      %1700 = vrot.lane.b32.xlu0 %v1695, 25
      %v1701 = vpop.permute.xlu0 %1700
      %v1704 = vadd.f32 %v1682, %v1699
      %v1705 = vadd.f32 %v1683, %v1701
      %v1706 = vmul.f32 %v1666, %v1498
      %v1707 = vmul.f32 %v1681, %v1499
      %v1708 = vtanh.pop %v1604
      %v1709 = vtanh.pop %v1605
      %1712 = vrot.lane.b32.xlu0 %v1708, 78
      %v1713 = vpop.permute.xlu0 %1712
      %1714 = vrot.lane.b32.xlu0 %v1709, 78
      %v1715 = vpop.permute.xlu0 %1714
      %v1718 = vmul.f32 %v1666, %v1713
      %v1719 = vmul.f32 %v1681, %v1715
      %1722 = vrot.lane.b32.xlu0 %v1718, 25
      %v1723 = vpop.permute.xlu0 %1722
      %1724 = vrot.lane.b32.xlu0 %v1719, 25
      %v1725 = vpop.permute.xlu0 %1724
      %v1728 = vadd.f32 %v1706, %v1723
      %v1729 = vadd.f32 %v1707, %v1725
      %v1730 = vtanh.pop %v1704
      %v1731 = vtanh.pop %v1705
      %1734 = vrot.lane.b32.xlu0 %v1730, 50
      %v1735 = vpop.permute.xlu0 %1734
      %1736 = vrot.lane.b32.xlu0 %v1731, 50
      %v1737 = vpop.permute.xlu0 %1736
      %v1740 = vmul.f32 %v1628, %v1735
      %v1741 = vmul.f32 %v1643, %v1737
      %v1742 = vtanh.pop %v1728
      %v1743 = vtanh.pop %v1729
      %1746 = vrot.lane.b32.xlu0 %v1742, 50
      %v1747 = vpop.permute.xlu0 %1746
      %1748 = vrot.lane.b32.xlu0 %v1743, 50
      %v1749 = vpop.permute.xlu0 %1748
      %v1752 = vmul.f32 %v1666, %v1747
      %v1753 = vmul.f32 %v1681, %v1749
      %1756 = vrot.lane.b32.xlu0 %v1740, 53
      %v1757 = vpop.permute.xlu0 %1756
      %1758 = vrot.lane.b32.xlu0 %v1741, 53
      %v1759 = vpop.permute.xlu0 %1758
      %1762 = vst.msk [vmem:[#allocation2 + $0x40] sm:$0xff] %vm478, %v1757
      %1763 = vst.msk [vmem:[#allocation2 + $0x48] sm:$0xff] %vm478, %v1759
      %1766 = vrot.lane.b32.xlu0 %v1752, 78
      %v1767 = vpop.permute.xlu0 %1766
      %1768 = vrot.lane.b32.xlu0 %v1753, 78
      %v1769 = vpop.permute.xlu0 %1768
      %1772 = vst.msk [vmem:[#allocation2] sm:$0xff] %vm851, %v1767
      %1773 = vst.msk [vmem:[#allocation2 + $0x8] sm:$0xff] %vm851, %v1769
      %v1774 = vld [vmem:[#allocation2] sm:$0xff]
      %v1775 = vld [vmem:[#allocation2 + $0x8] sm:$0xff]
      %v1776 = vld [vmem:[#allocation2 + $0x10] sm:$0xff]
      %v1777 = vld [vmem:[#allocation2 + $0x18] sm:$0xff]
      %v1778 = vld [vmem:[#allocation2 + $0x20] sm:$0xff]
      %v1779 = vld [vmem:[#allocation2 + $0x28] sm:$0xff]
      %v1780 = vld [vmem:[#allocation2 + $0x30] sm:$0xff]
      %v1781 = vld [vmem:[#allocation2 + $0x38] sm:$0xff]
      %v1782 = vld [vmem:[#allocation2 + $0x40] sm:$0xff]
      %v1783 = vld [vmem:[#allocation2 + $0x48] sm:$0xff]
      %v1784 = vld [vmem:[%s7] sm:$0xff]
      %v1785 = vld [vmem:[%s7 + $0x8] sm:$0xff]
      %v1786 = vld [vmem:[%s7 + $0x10] sm:$0xff]
      %v1787 = vld [vmem:[%s7 + $0x18] sm:$0xff]
      %v1788 = vld [vmem:[%s7 + $0x20] sm:$0xff]
      %v1789 = vld [vmem:[%s7 + $0x28] sm:$0xff]
      %v1790 = vld [vmem:[%s7 + $0x30] sm:$0x3]
      %v1791 = vld [vmem:[%s8] sm:$0x1]
      %v1792 = vld [vmem:[%s9] sm:$0xff]
      %v1793 = vld [vmem:[%s9 + $0x8] sm:$0xff]
      %v1794 = vld [vmem:[%s9 + $0x10] sm:$0xff]
      %v1795 = vld [vmem:[%s9 + $0x18] sm:$0xff]
      %v1796 = vld [vmem:[%s9 + $0x20] sm:$0xff]
      %v1797 = vld [vmem:[%s9 + $0x28] sm:$0xff]
      %v1798 = vld [vmem:[%s9 + $0x30] sm:$0x3]
      %v1800 = vperm.slane %v1791, 0
      %vm1802 = vcmask 408576
      %v1804 = vsel %vm1802, %v1774, 0
      %v1807 = vsel %vm1802, %v1775, 0
      %v1810 = vsel %vm1802, %v1776, 0
      %v1813 = vsel %vm1802, %v1777, 0
      %v1816 = vsel %vm1802, %v1778, 0
      %v1819 = vsel %vm1802, %v1779, 0
      %v1822 = vsel %vm1802, %v1780, 0
      %v1825 = vsel %vm1802, %v1781, 0
      %v1828 = vsel %vm1802, %v1782, 0
      %v1831 = vsel %vm1802, %v1783, 0
      %vm1833 = vcmask 1041408
      %v1835 = vsel %vm1833, %v1790, 0
      %1837 = vmatpush.msra.mxu0 0.0
      %1838 = vmatpush.msra.mxu0 0.0
      %1839 = vmatpush.msra.mxu0 0.0
      %1840 = vmatpush.msra.mxu0 0.0
      %1841 = vmatpush.msra.mxu0 0.0
      %1842 = vmatpush.msra.mxu0 0.0
      %1843 = vmatpush.msra.mxu0 0.0
      %1844 = vmatpush.msra.mxu0 0.0
      %1845 = vmatpush.msra.mxu0 0.0
      %1846 = vmatpush.msra.mxu0 %v1835
      %1847 = vmatpush.msra.mxu0 %v1789
      %1848 = vmatpush.msra.mxu0 %v1788
      %1849 = vmatpush.msra.mxu0 %v1787
      %1850 = vmatpush.msra.mxu0 %v1786
      %1851 = vmatpush.msra.mxu0 %v1785
      %1852 = vmatpush.msra.mxu0 %v1784
      %1853 = vmatmul.f32.gmra.mxu0 %v1804
      %v1854 = vpop.f32.mrf.mxu0
      %v1855 = vadd.f32 %v1800, %v1854
      %1856 = vmatmul.f32.gmra.mxu0 %v1807
      %v1857 = vpop.f32.mrf.mxu0
      %v1858 = vadd.f32 %v1800, %v1857
      %1859 = vmatmul.f32.gmra.mxu0 %v1810
      %v1860 = vpop.f32.mrf.mxu0
      %v1861 = vadd.f32 %v1800, %v1860
      %1862 = vmatmul.f32.gmra.mxu0 %v1813
      %v1863 = vpop.f32.mrf.mxu0
      %v1864 = vadd.f32 %v1800, %v1863
      %1865 = vmatmul.f32.gmra.mxu0 %v1816
      %v1866 = vpop.f32.mrf.mxu0
      %v1867 = vadd.f32 %v1800, %v1866
      %1868 = vmatmul.f32.gmra.mxu0 %v1819
      %v1869 = vpop.f32.mrf.mxu0
      %v1870 = vadd.f32 %v1800, %v1869
      %1871 = vmatmul.f32.gmra.mxu0 %v1822
      %v1872 = vpop.f32.mrf.mxu0
      %v1873 = vadd.f32 %v1800, %v1872
      %1874 = vmatmul.f32.gmra.mxu0 %v1825
      %v1875 = vpop.f32.mrf.mxu0
      %v1876 = vadd.f32 %v1800, %v1875
      %1877 = vmatmul.f32.gmra.mxu0 %v1828
      %v1878 = vpop.f32.mrf.mxu0
      %v1879 = vadd.f32 %v1800, %v1878
      %1880 = vmatmul.f32.gmra.mxu0 %v1831
      %v1881 = vpop.f32.mrf.mxu0
      %v1882 = vadd.f32 %v1800, %v1881
      %1883 = vdwg.mxu0
      %v1884 = vtanh.pop %v1855
      %v1885 = vtanh.pop %v1858
      %v1886 = vtanh.pop %v1861
      %v1887 = vtanh.pop %v1864
      %v1888 = vtanh.pop %v1867
      %v1889 = vtanh.pop %v1870
      %v1890 = vtanh.pop %v1873
      %v1891 = vtanh.pop %v1876
      %v1892 = vtanh.pop %v1879
      %v1893 = vtanh.pop %v1882
      %v1895 = vsel %vm1802, %v1884, 0
      %v1898 = vsel %vm1802, %v1885, 0
      %v1901 = vsel %vm1802, %v1886, 0
      %v1904 = vsel %vm1802, %v1887, 0
      %v1907 = vsel %vm1802, %v1888, 0
      %v1910 = vsel %vm1802, %v1889, 0
      %v1913 = vsel %vm1802, %v1890, 0
      %v1916 = vsel %vm1802, %v1891, 0
      %v1919 = vsel %vm1802, %v1892, 0
      %v1922 = vsel %vm1802, %v1893, 0
      %v1925 = vsel %vm1833, %v1798, 0
      %1927 = vmatpush.msra.mxu0 0.0
      %1928 = vmatpush.msra.mxu0 0.0
      %1929 = vmatpush.msra.mxu0 0.0
      %1930 = vmatpush.msra.mxu0 0.0
      %1931 = vmatpush.msra.mxu0 0.0
      %1932 = vmatpush.msra.mxu0 0.0
      %1933 = vmatpush.msra.mxu0 0.0
      %1934 = vmatpush.msra.mxu0 0.0
      %1935 = vmatpush.msra.mxu0 0.0
      %1936 = vmatpush.msra.mxu0 %v1925
      %1937 = vmatpush.msra.mxu0 %v1797
      %1938 = vmatpush.msra.mxu0 %v1796
      %1939 = vmatpush.msra.mxu0 %v1795
      %1940 = vmatpush.msra.mxu0 %v1794
      %1941 = vmatpush.msra.mxu0 %v1793
      %1942 = vmatpush.msra.mxu0 %v1792
      %1943 = vmatmul.f32.gmra.mxu0 %v1895
      %v1944 = vpop.f32.mrf.mxu0
      %v1945 = vadd.f32 0.0, %v1944
      %1946 = vmatmul.f32.gmra.mxu0 %v1898
      %v1947 = vpop.f32.mrf.mxu0
      %v1948 = vadd.f32 0.0, %v1947
      %1949 = vmatmul.f32.gmra.mxu0 %v1901
      %v1950 = vpop.f32.mrf.mxu0
      %v1951 = vadd.f32 0.0, %v1950
      %1952 = vmatmul.f32.gmra.mxu0 %v1904
      %v1953 = vpop.f32.mrf.mxu0
      %v1954 = vadd.f32 0.0, %v1953
      %1955 = vmatmul.f32.gmra.mxu0 %v1907
      %v1956 = vpop.f32.mrf.mxu0
      %v1957 = vadd.f32 0.0, %v1956
      %1958 = vmatmul.f32.gmra.mxu0 %v1910
      %v1959 = vpop.f32.mrf.mxu0
      %v1960 = vadd.f32 0.0, %v1959
      %1961 = vmatmul.f32.gmra.mxu0 %v1913
      %v1962 = vpop.f32.mrf.mxu0
      %v1963 = vadd.f32 0.0, %v1962
      %1964 = vmatmul.f32.gmra.mxu0 %v1916
      %v1965 = vpop.f32.mrf.mxu0
      %v1966 = vadd.f32 0.0, %v1965
      %1967 = vmatmul.f32.gmra.mxu0 %v1919
      %v1968 = vpop.f32.mrf.mxu0
      %v1969 = vadd.f32 0.0, %v1968
      %1970 = vmatmul.f32.gmra.mxu0 %v1922
      %v1971 = vpop.f32.mrf.mxu0
      %v1972 = vadd.f32 0.0, %v1971
      %1973 = vdwg.mxu0
      %v1974 = vmax.f32 %v1945, %v1951
      %v1975 = vmax.f32 %v1948, %v1954
      %v1976 = vmax.f32 %v1974, %v1957
      %v1977 = vmax.f32 %v1975, %v1960
      %v1978 = vmax.f32 %v1976, %v1963
      %v1979 = vmax.f32 %v1977, %v1966
      %v1980 = vmax.f32 %v1978, %v1969
      %v1981 = vmax.f32 %v1979, %v1972
      %v1982 = vsub.f32 %v1945, %v1980
      %v1983 = vsub.f32 %v1948, %v1981
      %v1984 = vmul.f32 %v1982, 1.442695
      %v1985 = vpow.pop %v1984
      %v1986 = vmul.f32 %v1983, 1.442695
      %v1987 = vpow.pop %v1986
      %v1988 = vsub.f32 %v1951, %v1980
      %v1989 = vsub.f32 %v1954, %v1981
      %v1990 = vmul.f32 %v1988, 1.442695
      %v1991 = vpow.pop %v1990
      %v1992 = vmul.f32 %v1989, 1.442695
      %v1993 = vpow.pop %v1992
      %v1994 = vsub.f32 %v1957, %v1980
      %v1995 = vsub.f32 %v1960, %v1981
      %v1996 = vmul.f32 %v1994, 1.442695
      %v1997 = vpow.pop %v1996
      %v1998 = vmul.f32 %v1995, 1.442695
      %v1999 = vpow.pop %v1998
      %v2000 = vsub.f32 %v1963, %v1980
      %v2001 = vsub.f32 %v1966, %v1981
      %v2002 = vmul.f32 %v2000, 1.442695
      %v2003 = vpow.pop %v2002
      %v2004 = vmul.f32 %v2001, 1.442695
      %v2005 = vpow.pop %v2004
      %v2006 = vsub.f32 %v1969, %v1980
      %v2007 = vsub.f32 %v1972, %v1981
      %v2008 = vmul.f32 %v2006, 1.442695
      %v2009 = vpow.pop %v2008
      %v2010 = vmul.f32 %v2007, 1.442695
      %v2011 = vpow.pop %v2010
      %v2012 = vadd.f32 %v1985, %v1991
      %v2013 = vadd.f32 %v1987, %v1993
      %v2014 = vadd.f32 %v2012, %v1997
      %v2015 = vadd.f32 %v2013, %v1999
      %v2016 = vadd.f32 %v2014, %v2003
      %v2017 = vadd.f32 %v2015, %v2005
      %v2018 = vadd.f32 %v2016, %v2009
      %v2019 = vadd.f32 %v2017, %v2011
      %v2020 = vrcp.pop %v2018
      %v2021 = vrcp.pop %v2019
      %v2022 = vmul.f32 %v1985, %v2020
      %v2023 = vmul.f32 %v1987, %v2021
      %2025 = vset.pattern.permute.xlu0 0
      %2026 = vperm.xlu0 %2025, %v2022
      %v2027 = vpop.permute.xlu0 %2026
      %2030 = vset.pattern.permute.xlu0 0
      %2031 = vperm.xlu0 %2030, %v2023
      %v2032 = vpop.permute.xlu0 %2031
      %v2034 = vmul.f32 %v2027, %v1774
      %v2035 = vmul.f32 %v2032, %v1775
      %v2036 = vmul.f32 %v1991, %v2020
      %v2037 = vmul.f32 %v1993, %v2021
      %2039 = vset.pattern.permute.xlu0 0
      %2040 = vperm.xlu0 %2039, %v2036
      %v2041 = vpop.permute.xlu0 %2040
      %2044 = vset.pattern.permute.xlu0 0
      %2045 = vperm.xlu0 %2044, %v2037
      %v2046 = vpop.permute.xlu0 %2045
      %v2048 = vmul.f32 %v2041, %v1776
      %v2049 = vmul.f32 %v2046, %v1777
      %v2050 = vadd.f32 %v2034, %v2048
      %v2051 = vadd.f32 %v2035, %v2049
      %v2052 = vmul.f32 %v1997, %v2020
      %v2053 = vmul.f32 %v1999, %v2021
      %2055 = vset.pattern.permute.xlu0 0
      %2056 = vperm.xlu0 %2055, %v2052
      %v2057 = vpop.permute.xlu0 %2056
      %2060 = vset.pattern.permute.xlu0 0
      %2061 = vperm.xlu0 %2060, %v2053
      %v2062 = vpop.permute.xlu0 %2061
      %v2064 = vmul.f32 %v2057, %v1778
      %v2065 = vmul.f32 %v2062, %v1779
      %v2066 = vadd.f32 %v2050, %v2064
      %v2067 = vadd.f32 %v2051, %v2065
      %v2068 = vmul.f32 %v2003, %v2020
      %v2069 = vmul.f32 %v2005, %v2021
      %2071 = vset.pattern.permute.xlu0 0
      %2072 = vperm.xlu0 %2071, %v2068
      %v2073 = vpop.permute.xlu0 %2072
      %2076 = vset.pattern.permute.xlu0 0
      %2077 = vperm.xlu0 %2076, %v2069
      %v2078 = vpop.permute.xlu0 %2077
      %v2080 = vmul.f32 %v2073, %v1780
      %v2081 = vmul.f32 %v2078, %v1781
      %v2082 = vadd.f32 %v2066, %v2080
      %v2083 = vadd.f32 %v2067, %v2081
      %v2084 = vmul.f32 %v2009, %v2020
      %v2085 = vmul.f32 %v2011, %v2021
      %2087 = vset.pattern.permute.xlu0 0
      %2088 = vperm.xlu0 %2087, %v2084
      %v2089 = vpop.permute.xlu0 %2088
      %2092 = vset.pattern.permute.xlu0 0
      %2093 = vperm.xlu0 %2092, %v2085
      %v2094 = vpop.permute.xlu0 %2093
      %v2096 = vmul.f32 %v2089, %v1782
      %v2097 = vmul.f32 %v2094, %v1783
      %v2098 = vadd.f32 %v2082, %v2096
      %v2099 = vadd.f32 %v2083, %v2097
      %2100 = vst.msk [vmem:[%s452] sm:$0xff] %vm1802, %v2098
      %2101 = vst.msk [vmem:[%s452 + $0x8] sm:$0xff] %vm1802, %v2099
      %v2102 = vld [vmem:[%s10] sm:$0xff]
      %v2103 = vld [vmem:[%s10 + $0x8] sm:$0xff]
      %v2104 = vld [vmem:[%s10 + $0x10] sm:$0xff]
      %v2105 = vld [vmem:[%s10 + $0x18] sm:$0xff]
      %v2106 = vld [vmem:[%s10 + $0x20] sm:$0xff]
      %v2107 = vld [vmem:[%s10 + $0x28] sm:$0xff]
      %v2108 = vld [vmem:[%s10 + $0x30] sm:$0x3]
      %v2109 = vld [vmem:[#allocation3] sm:$0x1]
      %v2111 = vperm.slane %v2109, 0
      %v2114 = vsel %vm1802, %v2098, 0
      %v2117 = vsel %vm1802, %v2099, 0
      %v2120 = vsel %vm1833, %v2108, 0
      %2122 = vmatpush.msra.mxu0 0.0
      %2123 = vmatpush.msra.mxu0 0.0
      %2124 = vmatpush.msra.mxu0 0.0
      %2125 = vmatpush.msra.mxu0 0.0
      %2126 = vmatpush.msra.mxu0 0.0
      %2127 = vmatpush.msra.mxu0 0.0
      %2128 = vmatpush.msra.mxu0 0.0
      %2129 = vmatpush.msra.mxu0 0.0
      %2130 = vmatpush.msra.mxu0 0.0
      %2131 = vmatpush.msra.mxu0 %v2120
      %2132 = vmatpush.msra.mxu0 %v2107
      %2133 = vmatpush.msra.mxu0 %v2106
      %2134 = vmatpush.msra.mxu0 %v2105
      %2135 = vmatpush.msra.mxu0 %v2104
      %2136 = vmatpush.msra.mxu0 %v2103
      %2137 = vmatpush.msra.mxu0 %v2102
      %2138 = vmatmul.f32.gmra.mxu0 %v2114
      %v2139 = vpop.f32.mrf.mxu0
      %v2140 = vadd.f32 %v2111, %v2139
      %2141 = vmatmul.f32.gmra.mxu0 %v2117
      %v2142 = vpop.f32.mrf.mxu0
      %v2143 = vadd.f32 %v2111, %v2142
      %2144 = vdwg.mxu0
      %v2145 = vxor.u32 %v2140, 2147483648
      %v2146 = vxor.u32 %v2143, 2147483648
      %v2147 = vmul.f32 %v2145, 1.442695
      %v2148 = vpow.pop %v2147
      %v2149 = vmul.f32 %v2146, 1.442695
      %v2150 = vpow.pop %v2149
      %v2151 = vadd.f32 %v2148, 1.0
      %v2152 = vadd.f32 %v2150, 1.0
      %v2153 = vrcp.pop %v2151
      %v2154 = vmul.f32 %v2151, %v2153
      %v2155 = vsub.f32 1.0, %v2154
      %v2156 = vmul.f32 %v2153, %v2155
      %v2157 = vadd.f32 %v2153, %v2156
      %vm2158 = vweird.f32 %v2151
      %vm2159 = vweird.f32 %v2153
      %vm2160 = vmor %vm2158, %vm2159
      %v2161 = vsel %vm2160, %v2153, %v2157
      %v2162 = vand.u32 2147483647, %v2151
      %vm2163 = vcmp.eq.f32.partialorder %v2162, 8.507059e+37
      %v2164 = vand.u32 %v2151, 2147483648
      %v2165 = vor.u32 1.1754944e-38, %v2164
      %v2166 = vsel %vm2163, %v2165, %v2161
      %v2167 = vmul.f32 1.0, %v2166
      %v2168 = vrcp.pop %v2152
      %v2169 = vmul.f32 %v2152, %v2168
      %v2170 = vsub.f32 1.0, %v2169
      %v2171 = vmul.f32 %v2168, %v2170
      %v2172 = vadd.f32 %v2168, %v2171
      %vm2173 = vweird.f32 %v2152
      %vm2174 = vweird.f32 %v2168
      %vm2175 = vmor %vm2173, %vm2174
      %v2176 = vsel %vm2175, %v2168, %v2172
      %v2177 = vand.u32 2147483647, %v2152
      %vm2178 = vcmp.eq.f32.partialorder %v2177, 8.507059e+37
      %v2179 = vand.u32 %v2152, 2147483648
      %v2180 = vor.u32 1.1754944e-38, %v2179
      %v2181 = vsel %vm2178, %v2180, %v2176
      %v2182 = vmul.f32 1.0, %v2181
      %vm2183 = vcmask 7168
      %2184 = vst.msk [vmem:[%s458] sm:$0xff] %vm2183, %v2167
      %2185 = vst.msk [vmem:[%s458 + $0x8] sm:$0xff] %vm2183, %v2182
      %s2186 = smul.u32 2, %s27
      %p2187 = scmp.lt.s32.totalorder %s2186, 3
      %s2188 = scalar_select %p2187, %s2186, 3
      %s2189 = smul.addr %s2188, 8
      %s2190 = scalar_lea.vmem %s12, %s2189
      %s2191 = smul.u32 2, %s27
      %p2192 = scmp.lt.s32.totalorder %s2191, 3
      %s2193 = scalar_select %p2192, %s2191, 3
      %s2194 = smul.addr %s2193, 8
      %s2195 = scalar_lea.vmem %s13, %s2194
      // Predicated region
      $region69: #{forward.6} parent=67 // pred_check
        %p2196 = pneg %p302
      $region70: #{forward.6} parent=67 // pred_check_branch
        %2198 = sbr.rel (%p2196) target = $region72
      $region71: #{forward.6} parent=67 // pred_region
        %s2199 = smul.u32 2, %s27
      $region72: #{forward.6} parent=67 // pred_fallthru
        _
      // Predicated region
      $region73: #{forward.6} parent=67 // pred_check
        %p2200 = pneg %p328
      $region74: #{forward.6} parent=67 // pred_check_branch
        %2202 = sbr.rel (%p2200) target = $region76
      $region75: #{forward.6} parent=67 // pred_region
        %s2203 = smul.u32 2, %s27
      $region76: #{forward.6} parent=67 // pred_fallthru
        _
    $region68: #{forward.6} parent=5 // pred_fallthru
      _
    %p2204 = scmp.le.s32.totalorder 2, %s22
    // Predicated region
    $region77: #{forward.6} parent=5 // pred_check
      %p2205 = pneg %p2204
    $region78: #{forward.6} parent=5 // pred_check_branch
      %2207 = sbr.rel (%p2205) target = $region80
    $region79: #{forward.6} parent=5 // pred_region
      %s2208 = ssub.s32 %s22, 2
      // Predicated region
      $region81: #{forward.6} parent=79 // pred_check
        %p2209 = pneg %p308
      $region82: #{forward.6} parent=79 // pred_check_branch
        %2211 = sbr.rel (%p2209) target = $region84
      $region83: #{forward.6} parent=79 // pred_region
        %s2212 = smul.u32 2, %s28
        %p2213 = scmp.lt.s32.totalorder %s2212, 3
        %s2214 = scalar_select %p2213, %s2212, 3
        %s2215 = smul.addr %s2214, 8
        %s2216 = scalar_lea.vmem %s12, %s2215
      $region84: #{forward.6} parent=79 // pred_fallthru
        _
      // Predicated region
      $region85: #{forward.6} parent=79 // pred_check
        %p2217 = pneg %p334
      $region86: #{forward.6} parent=79 // pred_check_branch
        %2219 = sbr.rel (%p2217) target = $region88
      $region87: #{forward.6} parent=79 // pred_region
        %s2220 = smul.u32 2, %s28
        %p2221 = scmp.lt.s32.totalorder %s2220, 3
        %s2222 = scalar_select %p2221, %s2220, 3
        %s2223 = smul.addr %s2222, 8
        %s2224 = scalar_lea.vmem %s13, %s2223
      $region88: #{forward.6} parent=79 // pred_fallthru
        _
    $region80: #{forward.6} parent=5 // pred_fallthru
      _
  $region6: #{forward.6} parent=0 // loop_footer
    %s26 = sadd.s32 1, %s22
  $region7: #{forward.6} parent=0 // loop_footer_branch
    %21 = sbr.rel target = $region3
  $region8: #{forward.6} parent=0 // loop_exit
    _

// kernel: forward.5
$region0: #{forward.5}
  #allocation0 [shape = 'u32[]', space=smem, size = 0x4, offset = 0x4, fixed_abs, tag = 'smem constant byte address 0x4 - core index']
  #allocation1 [shape = 'u32[72,128]{1,0:T(1,128)}', space=vmem, size = 0x9000, scoped, tag = 'internal scratch']
  #allocation2 [shape = 'f32[48,50]{1,0:T(8,128)}', space=vmem, size = 0x6000, scoped, tag = 'scratch operand']
  %s0 = inlined_call_operand.vmem [shape: f32[48,25], index: 0, kind: input, shape index: {}]
  %s1 = inlined_call_operand.vmem [shape: f32[25,100], index: 1, kind: input, shape index: {}]
  %s2 = inlined_call_operand.vmem [shape: f32[25,100], index: 2, kind: input, shape index: {}]
  %s3 = inlined_call_operand.vmem [shape: f32[1,100], index: 3, kind: input, shape index: {}]
  %s4 = inlined_call_operand.vmem [shape: f32[25,100], index: 4, kind: input, shape index: {}]
  %s5 = inlined_call_operand.vmem [shape: f32[25,100], index: 5, kind: input, shape index: {}]
  %s6 = inlined_call_operand.vmem [shape: f32[1,100], index: 6, kind: input, shape index: {}]
  %s7 = inlined_call_operand.vmem [shape: f32[50,50], index: 7, kind: input, shape index: {}]
  %s8 = inlined_call_operand.vmem [shape: f32[1,50], index: 8, kind: input, shape index: {}]
  %s9 = inlined_call_operand.vmem [shape: f32[50,1], index: 9, kind: input, shape index: {}]
  %s10 = inlined_call_operand.vmem [shape: f32[8,50], index: 10, kind: output, shape index: {}]
  %s11 = sld [smem:[#allocation0]]
  $region50: #{forward.5} parent=0
    _
  %s13 = ssub.s32 1, %s11
  %s14 = scalar_select 0, %s13, %s11
  // Predicated region
  $region2: #{forward.5} parent=0 // pred_check
    _
  $region3: #{forward.5} parent=0 // pred_check_branch
    %16 = sbr.rel (0) target = $region5
  $region4: #{forward.5} parent=0 // pred_region
    _
  $region5: #{forward.5} parent=0 // pred_fallthru
    _
  // Predicated region
  $region6: #{forward.5} parent=0 // pred_check
    _
  $region7: #{forward.5} parent=0 // pred_check_branch
    %18 = sbr.rel (0) target = $region9
  $region8: #{forward.5} parent=0 // pred_region
    _
  $region9: #{forward.5} parent=0 // pred_fallthru
    _
  // Predicated region
  $region10: #{forward.5} parent=0 // pred_check
    _
  $region11: #{forward.5} parent=0 // pred_check_branch
    %20 = sbr.rel (0) target = $region13
  $region12: #{forward.5} parent=0 // pred_region
    _
  $region13: #{forward.5} parent=0 // pred_fallthru
    _
  // Predicated region
  $region14: #{forward.5} parent=0 // pred_check
    _
  $region15: #{forward.5} parent=0 // pred_check_branch
    %22 = sbr.rel (0) target = $region17
  $region16: #{forward.5} parent=0 // pred_region
    _
  $region17: #{forward.5} parent=0 // pred_fallthru
    _
  // Predicated region
  $region18: #{forward.5} parent=0 // pred_check
    _
  $region19: #{forward.5} parent=0 // pred_check_branch
    %24 = sbr.rel (0) target = $region21
  $region20: #{forward.5} parent=0 // pred_region
    _
  $region21: #{forward.5} parent=0 // pred_fallthru
    _
  // Predicated region
  $region22: #{forward.5} parent=0 // pred_check
    _
  $region23: #{forward.5} parent=0 // pred_check_branch
    %26 = sbr.rel (0) target = $region25
  $region24: #{forward.5} parent=0 // pred_region
    _
  $region25: #{forward.5} parent=0 // pred_fallthru
    _
  // Predicated region
  $region26: #{forward.5} parent=0 // pred_check
    _
  $region27: #{forward.5} parent=0 // pred_check_branch
    %28 = sbr.rel (0) target = $region29
  $region28: #{forward.5} parent=0 // pred_region
    _
  $region29: #{forward.5} parent=0 // pred_fallthru
    _
  // Predicated region
  $region30: #{forward.5} parent=0 // pred_check
    _
  $region31: #{forward.5} parent=0 // pred_check_branch
    %30 = sbr.rel (0) target = $region33
  $region32: #{forward.5} parent=0 // pred_region
    _
  $region33: #{forward.5} parent=0 // pred_fallthru
    _
  // Predicated region
  $region34: #{forward.5} parent=0 // pred_check
    _
  $region35: #{forward.5} parent=0 // pred_check_branch
    %32 = sbr.rel (0) target = $region37
  $region36: #{forward.5} parent=0 // pred_region
    _
  $region37: #{forward.5} parent=0 // pred_fallthru
    _
  // Predicated region
  $region38: #{forward.5} parent=0 // pred_check
    _
  $region39: #{forward.5} parent=0 // pred_check_branch
    %34 = sbr.rel (0) target = $region41
  $region40: #{forward.5} parent=0 // pred_region
    _
  $region41: #{forward.5} parent=0 // pred_fallthru
    _
  %v35 = vld [vmem:[%s0] sm:$0xff]
  %v36 = vld [vmem:[%s0 + $0x8] sm:$0xff]
  %v37 = vld [vmem:[%s0 + $0x10] sm:$0xff]
  %v38 = vld [vmem:[%s0 + $0x18] sm:$0xff]
  %v39 = vld [vmem:[%s0 + $0x20] sm:$0xff]
  %v40 = vld [vmem:[%s0 + $0x28] sm:$0xff]
  %v41 = vld [vmem:[%s1] sm:$0xff]
  %v42 = vld [vmem:[%s1 + $0x8] sm:$0xff]
  %v43 = vld [vmem:[%s1 + $0x10] sm:$0xff]
  %v44 = vld [vmem:[%s1 + $0x18] sm:$0x1]
  %v45 = vld [vmem:[%s3] sm:$0x1]
  %v47 = vperm.slane %v45, 0
  %vm49 = vcmask 203776
  %v51 = vsel %vm49, %v35, 0
  %v54 = vsel %vm49, %v36, 0
  %v57 = vsel %vm49, %v37, 0
  %v60 = vsel %vm49, %v38, 0
  %v63 = vsel %vm49, %v39, 0
  %v66 = vsel %vm49, %v40, 0
  %vm68 = vcmask 1040384
  %v70 = vsel %vm68, %v44, 0
  %72 = vmatpush.msra.mxu0 0.0
  %73 = vmatpush.msra.mxu0 0.0
  %74 = vmatpush.msra.mxu0 0.0
  %75 = vmatpush.msra.mxu0 0.0
  %76 = vmatpush.msra.mxu0 0.0
  %77 = vmatpush.msra.mxu0 0.0
  %78 = vmatpush.msra.mxu0 0.0
  %79 = vmatpush.msra.mxu0 0.0
  %80 = vmatpush.msra.mxu0 0.0
  %81 = vmatpush.msra.mxu0 0.0
  %82 = vmatpush.msra.mxu0 0.0
  %83 = vmatpush.msra.mxu0 0.0
  %84 = vmatpush.msra.mxu0 %v70
  %85 = vmatpush.msra.mxu0 %v43
  %86 = vmatpush.msra.mxu0 %v42
  %87 = vmatpush.msra.mxu0 %v41
  %88 = vmatmul.f32.gmra.mxu0 %v51
  %v89 = vpop.f32.mrf.mxu0
  %v90 = vadd.f32 %v47, %v89
  %91 = vmatmul.f32.gmra.mxu0 %v54
  %v92 = vpop.f32.mrf.mxu0
  %v93 = vadd.f32 %v47, %v92
  %94 = vmatmul.f32.gmra.mxu0 %v57
  %v95 = vpop.f32.mrf.mxu0
  %v96 = vadd.f32 %v47, %v95
  %97 = vmatmul.f32.gmra.mxu0 %v60
  %v98 = vpop.f32.mrf.mxu0
  %v99 = vadd.f32 %v47, %v98
  %100 = vmatmul.f32.gmra.mxu0 %v63
  %v101 = vpop.f32.mrf.mxu0
  %v102 = vadd.f32 %v47, %v101
  %103 = vmatmul.f32.gmra.mxu0 %v66
  %v104 = vpop.f32.mrf.mxu0
  %v105 = vadd.f32 %v47, %v104
  %106 = vdwg.mxu0
  %v107 = vld [vmem:[%s4] sm:$0xff]
  %v108 = vld [vmem:[%s4 + $0x8] sm:$0xff]
  %v109 = vld [vmem:[%s4 + $0x10] sm:$0xff]
  %v110 = vld [vmem:[%s4 + $0x18] sm:$0x1]
  %v111 = vld [vmem:[%s6] sm:$0x1]
  %v113 = vperm.slane %v111, 0
  %v116 = vsel %vm68, %v110, 0
  %118 = vmatpush.msra.mxu0 0.0
  %119 = vmatpush.msra.mxu0 0.0
  %120 = vmatpush.msra.mxu0 0.0
  %121 = vmatpush.msra.mxu0 0.0
  %122 = vmatpush.msra.mxu0 0.0
  %123 = vmatpush.msra.mxu0 0.0
  %124 = vmatpush.msra.mxu0 0.0
  %125 = vmatpush.msra.mxu0 0.0
  %126 = vmatpush.msra.mxu0 0.0
  %127 = vmatpush.msra.mxu0 0.0
  %128 = vmatpush.msra.mxu0 0.0
  %129 = vmatpush.msra.mxu0 0.0
  %130 = vmatpush.msra.mxu0 %v116
  %131 = vmatpush.msra.mxu0 %v109
  %132 = vmatpush.msra.mxu0 %v108
  %133 = vmatpush.msra.mxu0 %v107
  %134 = vmatmul.f32.gmra.mxu0 %v51
  %v135 = vpop.f32.mrf.mxu0
  %v136 = vadd.f32 %v113, %v135
  %137 = vmatmul.f32.gmra.mxu0 %v54
  %v138 = vpop.f32.mrf.mxu0
  %v139 = vadd.f32 %v113, %v138
  %140 = vmatmul.f32.gmra.mxu0 %v57
  %v141 = vpop.f32.mrf.mxu0
  %v142 = vadd.f32 %v113, %v141
  %143 = vmatmul.f32.gmra.mxu0 %v60
  %v144 = vpop.f32.mrf.mxu0
  %v145 = vadd.f32 %v113, %v144
  %146 = vmatmul.f32.gmra.mxu0 %v63
  %v147 = vpop.f32.mrf.mxu0
  %v148 = vadd.f32 %v113, %v147
  %149 = vmatmul.f32.gmra.mxu0 %v66
  %v150 = vpop.f32.mrf.mxu0
  %v151 = vadd.f32 %v113, %v150
  %152 = vdwg.mxu0
  %v153 = vld [vmem:[%s2] sm:$0xff]
  %v154 = vld [vmem:[%s2 + $0x8] sm:$0xff]
  %v155 = vld [vmem:[%s2 + $0x10] sm:$0xff]
  %v156 = vld [vmem:[%s2 + $0x18] sm:$0x1]
  %v157 = vld [vmem:[%s5] sm:$0xff]
  %v158 = vld [vmem:[%s5 + $0x8] sm:$0xff]
  %v159 = vld [vmem:[%s5 + $0x10] sm:$0xff]
  %v160 = vld [vmem:[%s5 + $0x18] sm:$0x1]
  %v162 = vsel %vm49, 0.0, 0
  %v165 = vsel %vm68, %v156, 0
  %167 = vmatpush.msra.mxu0 0.0
  %168 = vmatpush.msra.mxu0 0.0
  %169 = vmatpush.msra.mxu0 0.0
  %170 = vmatpush.msra.mxu0 0.0
  %171 = vmatpush.msra.mxu0 0.0
  %172 = vmatpush.msra.mxu0 0.0
  %173 = vmatpush.msra.mxu0 0.0
  %174 = vmatpush.msra.mxu0 0.0
  %175 = vmatpush.msra.mxu0 0.0
  %176 = vmatpush.msra.mxu0 0.0
  %177 = vmatpush.msra.mxu0 0.0
  %178 = vmatpush.msra.mxu0 0.0
  %179 = vmatpush.msra.mxu0 %v165
  %180 = vmatpush.msra.mxu0 %v155
  %181 = vmatpush.msra.mxu0 %v154
  %182 = vmatpush.msra.mxu0 %v153
  %183 = vmatmul.f32.gmra.mxu0 %v162
  %v184 = vpop.f32.mrf.mxu0
  %v185 = vadd.f32 0.0, %v184
  %186 = vdwg.mxu0
  %v187 = vadd.f32 %v90, %v185
  %v189 = vsel %vm68, %v160, 0
  %191 = vmatpush.msra.mxu0 0.0
  %192 = vmatpush.msra.mxu0 0.0
  %193 = vmatpush.msra.mxu0 0.0
  %194 = vmatpush.msra.mxu0 0.0
  %195 = vmatpush.msra.mxu0 0.0
  %196 = vmatpush.msra.mxu0 0.0
  %197 = vmatpush.msra.mxu0 0.0
  %198 = vmatpush.msra.mxu0 0.0
  %199 = vmatpush.msra.mxu0 0.0
  %200 = vmatpush.msra.mxu0 0.0
  %201 = vmatpush.msra.mxu0 0.0
  %202 = vmatpush.msra.mxu0 0.0
  %203 = vmatpush.msra.mxu0 %v189
  %204 = vmatpush.msra.mxu0 %v159
  %205 = vmatpush.msra.mxu0 %v158
  %206 = vmatpush.msra.mxu0 %v157
  %207 = vmatmul.f32.gmra.mxu0 %v162
  %v208 = vpop.f32.mrf.mxu0
  %v209 = vadd.f32 0.0, %v208
  %210 = vdwg.mxu0
  %v211 = vadd.f32 %v151, %v209
  %v212 = vxor.u32 %v187, 2147483648
  %v213 = vmul.f32 %v212, 1.442695
  %v214 = vpow.pop %v213
  %v215 = vadd.f32 %v214, 1.0
  %v216 = vrcp.pop %v215
  %v217 = vmul.f32 %v215, %v216
  %v218 = vsub.f32 1.0, %v217
  %v219 = vmul.f32 %v216, %v218
  %v220 = vadd.f32 %v216, %v219
  %vm221 = vweird.f32 %v215
  %vm222 = vweird.f32 %v216
  %vm223 = vmor %vm221, %vm222
  %v224 = vsel %vm223, %v216, %v220
  %v225 = vand.u32 2147483647, %v215
  %vm226 = vcmp.eq.f32.partialorder %v225, 8.507059e+37
  %v227 = vand.u32 %v215, 2147483648
  %v228 = vor.u32 1.1754944e-38, %v227
  %v229 = vsel %vm226, %v228, %v224
  %v230 = vmul.f32 1.0, %v229
  %v231 = vxor.u32 %v211, 2147483648
  %v232 = vmul.f32 %v231, 1.442695
  %v233 = vpow.pop %v232
  %v234 = vadd.f32 %v233, 1.0
  %v235 = vrcp.pop %v234
  %v236 = vmul.f32 %v234, %v235
  %v237 = vsub.f32 1.0, %v236
  %v238 = vmul.f32 %v235, %v237
  %v239 = vadd.f32 %v235, %v238
  %vm240 = vweird.f32 %v234
  %vm241 = vweird.f32 %v235
  %vm242 = vmor %vm240, %vm241
  %v243 = vsel %vm242, %v235, %v239
  %v244 = vand.u32 2147483647, %v234
  %vm245 = vcmp.eq.f32.partialorder %v244, 8.507059e+37
  %v246 = vand.u32 %v234, 2147483648
  %v247 = vor.u32 1.1754944e-38, %v246
  %v248 = vsel %vm245, %v247, %v243
  %v249 = vmul.f32 1.0, %v248
  %v250 = vmul.f32 %v230, 0.0
  %v251 = vtanh.pop %v187
  %253 = vrot.lane.b32.xlu0 %v251, 78
  %v254 = vpop.permute.xlu0 %253
  %v256 = vmul.f32 %v230, %v254
  %258 = vrot.lane.b32.xlu0 %v256, 25
  %v259 = vpop.permute.xlu0 %258
  %v261 = vadd.f32 %v250, %v259
  %v262 = vmul.f32 %v249, 0.0
  %v263 = vtanh.pop %v211
  %265 = vrot.lane.b32.xlu0 %v263, 78
  %v266 = vpop.permute.xlu0 %265
  %v268 = vmul.f32 %v249, %v266
  %270 = vrot.lane.b32.xlu0 %v268, 25
  %v271 = vpop.permute.xlu0 %270
  %v273 = vadd.f32 %v262, %v271
  %v274 = vtanh.pop %v261
  %276 = vrot.lane.b32.xlu0 %v274, 50
  %v277 = vpop.permute.xlu0 %276
  %v279 = vmul.f32 %v230, %v277
  %v280 = vtanh.pop %v273
  %282 = vrot.lane.b32.xlu0 %v280, 50
  %v283 = vpop.permute.xlu0 %282
  %v285 = vmul.f32 %v249, %v283
  %287 = vrot.lane.b32.xlu0 %v279, 53
  %v288 = vpop.permute.xlu0 %287
  %290 = vst.msk [vmem:[#allocation2] sm:$0xff] %vm49, %v288
  %292 = vrot.lane.b32.xlu0 %v285, 78
  %v293 = vpop.permute.xlu0 %292
  %vm295 = vcmask 408776
  %296 = vst.msk [vmem:[#allocation2 + $0x28] sm:$0xff] %vm295, %v293
  %v297 = vsel %vm49, %v288, 0
  %299 = vmatpush.msra.mxu0 0.0
  %300 = vmatpush.msra.mxu0 0.0
  %301 = vmatpush.msra.mxu0 0.0
  %302 = vmatpush.msra.mxu0 0.0
  %303 = vmatpush.msra.mxu0 0.0
  %304 = vmatpush.msra.mxu0 0.0
  %305 = vmatpush.msra.mxu0 0.0
  %306 = vmatpush.msra.mxu0 0.0
  %307 = vmatpush.msra.mxu0 0.0
  %308 = vmatpush.msra.mxu0 0.0
  %309 = vmatpush.msra.mxu0 0.0
  %310 = vmatpush.msra.mxu0 0.0
  %311 = vmatpush.msra.mxu0 %v165
  %312 = vmatpush.msra.mxu0 %v155
  %313 = vmatpush.msra.mxu0 %v154
  %314 = vmatpush.msra.mxu0 %v153
  %315 = vmatmul.f32.gmra.mxu0 %v297
  %v316 = vpop.f32.mrf.mxu0
  %v317 = vadd.f32 0.0, %v316
  %318 = vdwg.mxu0
  %v319 = vadd.f32 %v93, %v317
  %320 = vrot.lane.b32.xlu0 %v285, 53
  %v321 = vpop.permute.xlu0 %320
  %v322 = vsel %vm49, %v321, 0
  %324 = vmatpush.msra.mxu0 0.0
  %325 = vmatpush.msra.mxu0 0.0
  %326 = vmatpush.msra.mxu0 0.0
  %327 = vmatpush.msra.mxu0 0.0
  %328 = vmatpush.msra.mxu0 0.0
  %329 = vmatpush.msra.mxu0 0.0
  %330 = vmatpush.msra.mxu0 0.0
  %331 = vmatpush.msra.mxu0 0.0
  %332 = vmatpush.msra.mxu0 0.0
  %333 = vmatpush.msra.mxu0 0.0
  %334 = vmatpush.msra.mxu0 0.0
  %335 = vmatpush.msra.mxu0 0.0
  %336 = vmatpush.msra.mxu0 %v189
  %337 = vmatpush.msra.mxu0 %v159
  %338 = vmatpush.msra.mxu0 %v158
  %339 = vmatpush.msra.mxu0 %v157
  %340 = vmatmul.f32.gmra.mxu0 %v322
  %v341 = vpop.f32.mrf.mxu0
  %v342 = vadd.f32 0.0, %v341
  %343 = vdwg.mxu0
  %v344 = vadd.f32 %v148, %v342
  %v345 = vxor.u32 %v319, 2147483648
  %v346 = vmul.f32 %v345, 1.442695
  %v347 = vpow.pop %v346
  %v348 = vadd.f32 %v347, 1.0
  %v349 = vrcp.pop %v348
  %v350 = vmul.f32 %v348, %v349
  %v351 = vsub.f32 1.0, %v350
  %v352 = vmul.f32 %v349, %v351
  %v353 = vadd.f32 %v349, %v352
  %vm354 = vweird.f32 %v348
  %vm355 = vweird.f32 %v349
  %vm356 = vmor %vm354, %vm355
  %v357 = vsel %vm356, %v349, %v353
  %v358 = vand.u32 2147483647, %v348
  %vm359 = vcmp.eq.f32.partialorder %v358, 8.507059e+37
  %v360 = vand.u32 %v348, 2147483648
  %v361 = vor.u32 1.1754944e-38, %v360
  %v362 = vsel %vm359, %v361, %v357
  %v363 = vmul.f32 1.0, %v362
  %v364 = vxor.u32 %v344, 2147483648
  %v365 = vmul.f32 %v364, 1.442695
  %v366 = vpow.pop %v365
  %v367 = vadd.f32 %v366, 1.0
  %v368 = vrcp.pop %v367
  %v369 = vmul.f32 %v367, %v368
  %v370 = vsub.f32 1.0, %v369
  %v371 = vmul.f32 %v368, %v370
  %v372 = vadd.f32 %v368, %v371
  %vm373 = vweird.f32 %v367
  %vm374 = vweird.f32 %v368
  %vm375 = vmor %vm373, %vm374
  %v376 = vsel %vm375, %v368, %v372
  %v377 = vand.u32 2147483647, %v367
  %vm378 = vcmp.eq.f32.partialorder %v377, 8.507059e+37
  %v379 = vand.u32 %v367, 2147483648
  %v380 = vor.u32 1.1754944e-38, %v379
  %v381 = vsel %vm378, %v380, %v376
  %v382 = vmul.f32 1.0, %v381
  %v383 = vmul.f32 %v363, %v261
  %v384 = vtanh.pop %v319
  %386 = vrot.lane.b32.xlu0 %v384, 78
  %v387 = vpop.permute.xlu0 %386
  %v389 = vmul.f32 %v363, %v387
  %391 = vrot.lane.b32.xlu0 %v389, 25
  %v392 = vpop.permute.xlu0 %391
  %v394 = vadd.f32 %v383, %v392
  %v395 = vmul.f32 %v382, %v273
  %v396 = vtanh.pop %v344
  %398 = vrot.lane.b32.xlu0 %v396, 78
  %v399 = vpop.permute.xlu0 %398
  %v401 = vmul.f32 %v382, %v399
  %403 = vrot.lane.b32.xlu0 %v401, 25
  %v404 = vpop.permute.xlu0 %403
  %v406 = vadd.f32 %v395, %v404
  %v407 = vtanh.pop %v394
  %409 = vrot.lane.b32.xlu0 %v407, 50
  %v410 = vpop.permute.xlu0 %409
  %v412 = vmul.f32 %v363, %v410
  %v413 = vtanh.pop %v406
  %415 = vrot.lane.b32.xlu0 %v413, 50
  %v416 = vpop.permute.xlu0 %415
  %v418 = vmul.f32 %v382, %v416
  %420 = vrot.lane.b32.xlu0 %v412, 53
  %v421 = vpop.permute.xlu0 %420
  %423 = vst.msk [vmem:[#allocation2 + $0x8] sm:$0xff] %vm49, %v421
  %425 = vrot.lane.b32.xlu0 %v418, 78
  %v426 = vpop.permute.xlu0 %425
  %428 = vst.msk [vmem:[#allocation2 + $0x20] sm:$0xff] %vm295, %v426
  %v429 = vsel %vm49, %v421, 0
  %431 = vmatpush.msra.mxu0 0.0
  %432 = vmatpush.msra.mxu0 0.0
  %433 = vmatpush.msra.mxu0 0.0
  %434 = vmatpush.msra.mxu0 0.0
  %435 = vmatpush.msra.mxu0 0.0
  %436 = vmatpush.msra.mxu0 0.0
  %437 = vmatpush.msra.mxu0 0.0
  %438 = vmatpush.msra.mxu0 0.0
  %439 = vmatpush.msra.mxu0 0.0
  %440 = vmatpush.msra.mxu0 0.0
  %441 = vmatpush.msra.mxu0 0.0
  %442 = vmatpush.msra.mxu0 0.0
  %443 = vmatpush.msra.mxu0 %v165
  %444 = vmatpush.msra.mxu0 %v155
  %445 = vmatpush.msra.mxu0 %v154
  %446 = vmatpush.msra.mxu0 %v153
  %447 = vmatmul.f32.gmra.mxu0 %v429
  %v448 = vpop.f32.mrf.mxu0
  %v449 = vadd.f32 0.0, %v448
  %450 = vdwg.mxu0
  %v451 = vadd.f32 %v96, %v449
  %452 = vrot.lane.b32.xlu0 %v418, 53
  %v453 = vpop.permute.xlu0 %452
  %v454 = vsel %vm49, %v453, 0
  %456 = vmatpush.msra.mxu0 0.0
  %457 = vmatpush.msra.mxu0 0.0
  %458 = vmatpush.msra.mxu0 0.0
  %459 = vmatpush.msra.mxu0 0.0
  %460 = vmatpush.msra.mxu0 0.0
  %461 = vmatpush.msra.mxu0 0.0
  %462 = vmatpush.msra.mxu0 0.0
  %463 = vmatpush.msra.mxu0 0.0
  %464 = vmatpush.msra.mxu0 0.0
  %465 = vmatpush.msra.mxu0 0.0
  %466 = vmatpush.msra.mxu0 0.0
  %467 = vmatpush.msra.mxu0 0.0
  %468 = vmatpush.msra.mxu0 %v189
  %469 = vmatpush.msra.mxu0 %v159
  %470 = vmatpush.msra.mxu0 %v158
  %471 = vmatpush.msra.mxu0 %v157
  %472 = vmatmul.f32.gmra.mxu0 %v454
  %v473 = vpop.f32.mrf.mxu0
  %v474 = vadd.f32 0.0, %v473
  %475 = vdwg.mxu0
  %v476 = vadd.f32 %v145, %v474
  %v477 = vxor.u32 %v451, 2147483648
  %v478 = vmul.f32 %v477, 1.442695
  %v479 = vpow.pop %v478
  %v480 = vadd.f32 %v479, 1.0
  %v481 = vrcp.pop %v480
  %v482 = vmul.f32 %v480, %v481
  %v483 = vsub.f32 1.0, %v482
  %v484 = vmul.f32 %v481, %v483
  %v485 = vadd.f32 %v481, %v484
  %vm486 = vweird.f32 %v480
  %vm487 = vweird.f32 %v481
  %vm488 = vmor %vm486, %vm487
  %v489 = vsel %vm488, %v481, %v485
  %v490 = vand.u32 2147483647, %v480
  %vm491 = vcmp.eq.f32.partialorder %v490, 8.507059e+37
  %v492 = vand.u32 %v480, 2147483648
  %v493 = vor.u32 1.1754944e-38, %v492
  %v494 = vsel %vm491, %v493, %v489
  %v495 = vmul.f32 1.0, %v494
  %v496 = vxor.u32 %v476, 2147483648
  %v497 = vmul.f32 %v496, 1.442695
  %v498 = vpow.pop %v497
  %v499 = vadd.f32 %v498, 1.0
  %v500 = vrcp.pop %v499
  %v501 = vmul.f32 %v499, %v500
  %v502 = vsub.f32 1.0, %v501
  %v503 = vmul.f32 %v500, %v502
  %v504 = vadd.f32 %v500, %v503
  %vm505 = vweird.f32 %v499
  %vm506 = vweird.f32 %v500
  %vm507 = vmor %vm505, %vm506
  %v508 = vsel %vm507, %v500, %v504
  %v509 = vand.u32 2147483647, %v499
  %vm510 = vcmp.eq.f32.partialorder %v509, 8.507059e+37
  %v511 = vand.u32 %v499, 2147483648
  %v512 = vor.u32 1.1754944e-38, %v511
  %v513 = vsel %vm510, %v512, %v508
  %v514 = vmul.f32 1.0, %v513
  %v515 = vmul.f32 %v495, %v394
  %v516 = vtanh.pop %v451
  %518 = vrot.lane.b32.xlu0 %v516, 78
  %v519 = vpop.permute.xlu0 %518
  %v521 = vmul.f32 %v495, %v519
  %523 = vrot.lane.b32.xlu0 %v521, 25
  %v524 = vpop.permute.xlu0 %523
  %v526 = vadd.f32 %v515, %v524
  %v527 = vmul.f32 %v514, %v406
  %v528 = vtanh.pop %v476
  %530 = vrot.lane.b32.xlu0 %v528, 78
  %v531 = vpop.permute.xlu0 %530
  %v533 = vmul.f32 %v514, %v531
  %535 = vrot.lane.b32.xlu0 %v533, 25
  %v536 = vpop.permute.xlu0 %535
  %v538 = vadd.f32 %v527, %v536
  %v539 = vtanh.pop %v526
  %541 = vrot.lane.b32.xlu0 %v539, 50
  %v542 = vpop.permute.xlu0 %541
  %v544 = vmul.f32 %v495, %v542
  %v545 = vtanh.pop %v538
  %547 = vrot.lane.b32.xlu0 %v545, 50
  %v548 = vpop.permute.xlu0 %547
  %v550 = vmul.f32 %v514, %v548
  %552 = vrot.lane.b32.xlu0 %v544, 53
  %v553 = vpop.permute.xlu0 %552
  %555 = vst.msk [vmem:[#allocation2 + $0x10] sm:$0xff] %vm49, %v553
  %557 = vrot.lane.b32.xlu0 %v550, 78
  %v558 = vpop.permute.xlu0 %557
  %560 = vst.msk [vmem:[#allocation2 + $0x18] sm:$0xff] %vm295, %v558
  %v561 = vsel %vm49, %v553, 0
  %563 = vmatpush.msra.mxu0 0.0
  %564 = vmatpush.msra.mxu0 0.0
  %565 = vmatpush.msra.mxu0 0.0
  %566 = vmatpush.msra.mxu0 0.0
  %567 = vmatpush.msra.mxu0 0.0
  %568 = vmatpush.msra.mxu0 0.0
  %569 = vmatpush.msra.mxu0 0.0
  %570 = vmatpush.msra.mxu0 0.0
  %571 = vmatpush.msra.mxu0 0.0
  %572 = vmatpush.msra.mxu0 0.0
  %573 = vmatpush.msra.mxu0 0.0
  %574 = vmatpush.msra.mxu0 0.0
  %575 = vmatpush.msra.mxu0 %v165
  %576 = vmatpush.msra.mxu0 %v155
  %577 = vmatpush.msra.mxu0 %v154
  %578 = vmatpush.msra.mxu0 %v153
  %579 = vmatmul.f32.gmra.mxu0 %v561
  %v580 = vpop.f32.mrf.mxu0
  %v581 = vadd.f32 0.0, %v580
  %582 = vdwg.mxu0
  %v583 = vadd.f32 %v99, %v581
  %584 = vrot.lane.b32.xlu0 %v550, 53
  %v585 = vpop.permute.xlu0 %584
  %v586 = vsel %vm49, %v585, 0
  %588 = vmatpush.msra.mxu0 0.0
  %589 = vmatpush.msra.mxu0 0.0
  %590 = vmatpush.msra.mxu0 0.0
  %591 = vmatpush.msra.mxu0 0.0
  %592 = vmatpush.msra.mxu0 0.0
  %593 = vmatpush.msra.mxu0 0.0
  %594 = vmatpush.msra.mxu0 0.0
  %595 = vmatpush.msra.mxu0 0.0
  %596 = vmatpush.msra.mxu0 0.0
  %597 = vmatpush.msra.mxu0 0.0
  %598 = vmatpush.msra.mxu0 0.0
  %599 = vmatpush.msra.mxu0 0.0
  %600 = vmatpush.msra.mxu0 %v189
  %601 = vmatpush.msra.mxu0 %v159
  %602 = vmatpush.msra.mxu0 %v158
  %603 = vmatpush.msra.mxu0 %v157
  %604 = vmatmul.f32.gmra.mxu0 %v586
  %v605 = vpop.f32.mrf.mxu0
  %v606 = vadd.f32 0.0, %v605
  %607 = vdwg.mxu0
  %v608 = vadd.f32 %v142, %v606
  %v609 = vxor.u32 %v583, 2147483648
  %v610 = vmul.f32 %v609, 1.442695
  %v611 = vpow.pop %v610
  %v612 = vadd.f32 %v611, 1.0
  %v613 = vrcp.pop %v612
  %v614 = vmul.f32 %v612, %v613
  %v615 = vsub.f32 1.0, %v614
  %v616 = vmul.f32 %v613, %v615
  %v617 = vadd.f32 %v613, %v616
  %vm618 = vweird.f32 %v612
  %vm619 = vweird.f32 %v613
  %vm620 = vmor %vm618, %vm619
  %v621 = vsel %vm620, %v613, %v617
  %v622 = vand.u32 2147483647, %v612
  %vm623 = vcmp.eq.f32.partialorder %v622, 8.507059e+37
  %v624 = vand.u32 %v612, 2147483648
  %v625 = vor.u32 1.1754944e-38, %v624
  %v626 = vsel %vm623, %v625, %v621
  %v627 = vmul.f32 1.0, %v626
  %v628 = vxor.u32 %v608, 2147483648
  %v629 = vmul.f32 %v628, 1.442695
  %v630 = vpow.pop %v629
  %v631 = vadd.f32 %v630, 1.0
  %v632 = vrcp.pop %v631
  %v633 = vmul.f32 %v631, %v632
  %v634 = vsub.f32 1.0, %v633
  %v635 = vmul.f32 %v632, %v634
  %v636 = vadd.f32 %v632, %v635
  %vm637 = vweird.f32 %v631
  %vm638 = vweird.f32 %v632
  %vm639 = vmor %vm637, %vm638
  %v640 = vsel %vm639, %v632, %v636
  %v641 = vand.u32 2147483647, %v631
  %vm642 = vcmp.eq.f32.partialorder %v641, 8.507059e+37
  %v643 = vand.u32 %v631, 2147483648
  %v644 = vor.u32 1.1754944e-38, %v643
  %v645 = vsel %vm642, %v644, %v640
  %v646 = vmul.f32 1.0, %v645
  %v647 = vmul.f32 %v627, %v526
  %v648 = vtanh.pop %v583
  %650 = vrot.lane.b32.xlu0 %v648, 78
  %v651 = vpop.permute.xlu0 %650
  %v653 = vmul.f32 %v627, %v651
  %655 = vrot.lane.b32.xlu0 %v653, 25
  %v656 = vpop.permute.xlu0 %655
  %v658 = vadd.f32 %v647, %v656
  %v659 = vmul.f32 %v646, %v538
  %v660 = vtanh.pop %v608
  %662 = vrot.lane.b32.xlu0 %v660, 78
  %v663 = vpop.permute.xlu0 %662
  %v665 = vmul.f32 %v646, %v663
  %667 = vrot.lane.b32.xlu0 %v665, 25
  %v668 = vpop.permute.xlu0 %667
  %v670 = vadd.f32 %v659, %v668
  %v671 = vtanh.pop %v658
  %673 = vrot.lane.b32.xlu0 %v671, 50
  %v674 = vpop.permute.xlu0 %673
  %v676 = vmul.f32 %v627, %v674
  %v677 = vtanh.pop %v670
  %679 = vrot.lane.b32.xlu0 %v677, 50
  %v680 = vpop.permute.xlu0 %679
  %v682 = vmul.f32 %v646, %v680
  %684 = vrot.lane.b32.xlu0 %v676, 53
  %v685 = vpop.permute.xlu0 %684
  %687 = vst.msk [vmem:[#allocation2 + $0x18] sm:$0xff] %vm49, %v685
  %689 = vrot.lane.b32.xlu0 %v682, 78
  %v690 = vpop.permute.xlu0 %689
  %692 = vst.msk [vmem:[#allocation2 + $0x10] sm:$0xff] %vm295, %v690
  %v693 = vsel %vm49, %v685, 0
  %695 = vmatpush.msra.mxu0 0.0
  %696 = vmatpush.msra.mxu0 0.0
  %697 = vmatpush.msra.mxu0 0.0
  %698 = vmatpush.msra.mxu0 0.0
  %699 = vmatpush.msra.mxu0 0.0
  %700 = vmatpush.msra.mxu0 0.0
  %701 = vmatpush.msra.mxu0 0.0
  %702 = vmatpush.msra.mxu0 0.0
  %703 = vmatpush.msra.mxu0 0.0
  %704 = vmatpush.msra.mxu0 0.0
  %705 = vmatpush.msra.mxu0 0.0
  %706 = vmatpush.msra.mxu0 0.0
  %707 = vmatpush.msra.mxu0 %v165
  %708 = vmatpush.msra.mxu0 %v155
  %709 = vmatpush.msra.mxu0 %v154
  %710 = vmatpush.msra.mxu0 %v153
  %711 = vmatmul.f32.gmra.mxu0 %v693
  %v712 = vpop.f32.mrf.mxu0
  %v713 = vadd.f32 0.0, %v712
  %714 = vdwg.mxu0
  %v715 = vadd.f32 %v102, %v713
  %716 = vrot.lane.b32.xlu0 %v682, 53
  %v717 = vpop.permute.xlu0 %716
  %v718 = vsel %vm49, %v717, 0
  %720 = vmatpush.msra.mxu0 0.0
  %721 = vmatpush.msra.mxu0 0.0
  %722 = vmatpush.msra.mxu0 0.0
  %723 = vmatpush.msra.mxu0 0.0
  %724 = vmatpush.msra.mxu0 0.0
  %725 = vmatpush.msra.mxu0 0.0
  %726 = vmatpush.msra.mxu0 0.0
  %727 = vmatpush.msra.mxu0 0.0
  %728 = vmatpush.msra.mxu0 0.0
  %729 = vmatpush.msra.mxu0 0.0
  %730 = vmatpush.msra.mxu0 0.0
  %731 = vmatpush.msra.mxu0 0.0
  %732 = vmatpush.msra.mxu0 %v189
  %733 = vmatpush.msra.mxu0 %v159
  %734 = vmatpush.msra.mxu0 %v158
  %735 = vmatpush.msra.mxu0 %v157
  %736 = vmatmul.f32.gmra.mxu0 %v718
  %v737 = vpop.f32.mrf.mxu0
  %v738 = vadd.f32 0.0, %v737
  %739 = vdwg.mxu0
  %v740 = vadd.f32 %v139, %v738
  %v741 = vxor.u32 %v715, 2147483648
  %v742 = vmul.f32 %v741, 1.442695
  %v743 = vpow.pop %v742
  %v744 = vadd.f32 %v743, 1.0
  %v745 = vrcp.pop %v744
  %v746 = vmul.f32 %v744, %v745
  %v747 = vsub.f32 1.0, %v746
  %v748 = vmul.f32 %v745, %v747
  %v749 = vadd.f32 %v745, %v748
  %vm750 = vweird.f32 %v744
  %vm751 = vweird.f32 %v745
  %vm752 = vmor %vm750, %vm751
  %v753 = vsel %vm752, %v745, %v749
  %v754 = vand.u32 2147483647, %v744
  %vm755 = vcmp.eq.f32.partialorder %v754, 8.507059e+37
  %v756 = vand.u32 %v744, 2147483648
  %v757 = vor.u32 1.1754944e-38, %v756
  %v758 = vsel %vm755, %v757, %v753
  %v759 = vmul.f32 1.0, %v758
  %v760 = vxor.u32 %v740, 2147483648
  %v761 = vmul.f32 %v760, 1.442695
  %v762 = vpow.pop %v761
  %v763 = vadd.f32 %v762, 1.0
  %v764 = vrcp.pop %v763
  %v765 = vmul.f32 %v763, %v764
  %v766 = vsub.f32 1.0, %v765
  %v767 = vmul.f32 %v764, %v766
  %v768 = vadd.f32 %v764, %v767
  %vm769 = vweird.f32 %v763
  %vm770 = vweird.f32 %v764
  %vm771 = vmor %vm769, %vm770
  %v772 = vsel %vm771, %v764, %v768
  %v773 = vand.u32 2147483647, %v763
  %vm774 = vcmp.eq.f32.partialorder %v773, 8.507059e+37
  %v775 = vand.u32 %v763, 2147483648
  %v776 = vor.u32 1.1754944e-38, %v775
  %v777 = vsel %vm774, %v776, %v772
  %v778 = vmul.f32 1.0, %v777
  %v779 = vmul.f32 %v759, %v658
  %v780 = vtanh.pop %v715
  %782 = vrot.lane.b32.xlu0 %v780, 78
  %v783 = vpop.permute.xlu0 %782
  %v785 = vmul.f32 %v759, %v783
  %787 = vrot.lane.b32.xlu0 %v785, 25
  %v788 = vpop.permute.xlu0 %787
  %v790 = vadd.f32 %v779, %v788
  %v791 = vmul.f32 %v778, %v670
  %v792 = vtanh.pop %v740
  %794 = vrot.lane.b32.xlu0 %v792, 78
  %v795 = vpop.permute.xlu0 %794
  %v797 = vmul.f32 %v778, %v795
  %799 = vrot.lane.b32.xlu0 %v797, 25
  %v800 = vpop.permute.xlu0 %799
  %v802 = vadd.f32 %v791, %v800
  %v803 = vtanh.pop %v790
  %805 = vrot.lane.b32.xlu0 %v803, 50
  %v806 = vpop.permute.xlu0 %805
  %v808 = vmul.f32 %v759, %v806
  %v809 = vtanh.pop %v802
  %811 = vrot.lane.b32.xlu0 %v809, 50
  %v812 = vpop.permute.xlu0 %811
  %v814 = vmul.f32 %v778, %v812
  %816 = vrot.lane.b32.xlu0 %v808, 53
  %v817 = vpop.permute.xlu0 %816
  %819 = vst.msk [vmem:[#allocation2 + $0x20] sm:$0xff] %vm49, %v817
  %821 = vrot.lane.b32.xlu0 %v814, 78
  %v822 = vpop.permute.xlu0 %821
  %824 = vst.msk [vmem:[#allocation2 + $0x8] sm:$0xff] %vm295, %v822
  %v825 = vsel %vm49, %v817, 0
  %827 = vmatpush.msra.mxu0 0.0
  %828 = vmatpush.msra.mxu0 0.0
  %829 = vmatpush.msra.mxu0 0.0
  %830 = vmatpush.msra.mxu0 0.0
  %831 = vmatpush.msra.mxu0 0.0
  %832 = vmatpush.msra.mxu0 0.0
  %833 = vmatpush.msra.mxu0 0.0
  %834 = vmatpush.msra.mxu0 0.0
  %835 = vmatpush.msra.mxu0 0.0
  %836 = vmatpush.msra.mxu0 0.0
  %837 = vmatpush.msra.mxu0 0.0
  %838 = vmatpush.msra.mxu0 0.0
  %839 = vmatpush.msra.mxu0 %v165
  %840 = vmatpush.msra.mxu0 %v155
  %841 = vmatpush.msra.mxu0 %v154
  %842 = vmatpush.msra.mxu0 %v153
  %843 = vmatmul.f32.gmra.mxu0 %v825
  %v844 = vpop.f32.mrf.mxu0
  %v845 = vadd.f32 0.0, %v844
  %846 = vdwg.mxu0
  %v847 = vadd.f32 %v105, %v845
  %848 = vrot.lane.b32.xlu0 %v814, 53
  %v849 = vpop.permute.xlu0 %848
  %v850 = vsel %vm49, %v849, 0
  %852 = vmatpush.msra.mxu0 0.0
  %853 = vmatpush.msra.mxu0 0.0
  %854 = vmatpush.msra.mxu0 0.0
  %855 = vmatpush.msra.mxu0 0.0
  %856 = vmatpush.msra.mxu0 0.0
  %857 = vmatpush.msra.mxu0 0.0
  %858 = vmatpush.msra.mxu0 0.0
  %859 = vmatpush.msra.mxu0 0.0
  %860 = vmatpush.msra.mxu0 0.0
  %861 = vmatpush.msra.mxu0 0.0
  %862 = vmatpush.msra.mxu0 0.0
  %863 = vmatpush.msra.mxu0 0.0
  %864 = vmatpush.msra.mxu0 %v189
  %865 = vmatpush.msra.mxu0 %v159
  %866 = vmatpush.msra.mxu0 %v158
  %867 = vmatpush.msra.mxu0 %v157
  %868 = vmatmul.f32.gmra.mxu0 %v850
  %v869 = vpop.f32.mrf.mxu0
  %v870 = vadd.f32 0.0, %v869
  %871 = vdwg.mxu0
  %v872 = vadd.f32 %v136, %v870
  %v873 = vxor.u32 %v847, 2147483648
  %v874 = vmul.f32 %v873, 1.442695
  %v875 = vpow.pop %v874
  %v876 = vadd.f32 %v875, 1.0
  %v877 = vrcp.pop %v876
  %v878 = vmul.f32 %v876, %v877
  %v879 = vsub.f32 1.0, %v878
  %v880 = vmul.f32 %v877, %v879
  %v881 = vadd.f32 %v877, %v880
  %vm882 = vweird.f32 %v876
  %vm883 = vweird.f32 %v877
  %vm884 = vmor %vm882, %vm883
  %v885 = vsel %vm884, %v877, %v881
  %v886 = vand.u32 2147483647, %v876
  %vm887 = vcmp.eq.f32.partialorder %v886, 8.507059e+37
  %v888 = vand.u32 %v876, 2147483648
  %v889 = vor.u32 1.1754944e-38, %v888
  %v890 = vsel %vm887, %v889, %v885
  %v891 = vmul.f32 1.0, %v890
  %v892 = vxor.u32 %v872, 2147483648
  %v893 = vmul.f32 %v892, 1.442695
  %v894 = vpow.pop %v893
  %v895 = vadd.f32 %v894, 1.0
  %v896 = vrcp.pop %v895
  %v897 = vmul.f32 %v895, %v896
  %v898 = vsub.f32 1.0, %v897
  %v899 = vmul.f32 %v896, %v898
  %v900 = vadd.f32 %v896, %v899
  %vm901 = vweird.f32 %v895
  %vm902 = vweird.f32 %v896
  %vm903 = vmor %vm901, %vm902
  %v904 = vsel %vm903, %v896, %v900
  %v905 = vand.u32 2147483647, %v895
  %vm906 = vcmp.eq.f32.partialorder %v905, 8.507059e+37
  %v907 = vand.u32 %v895, 2147483648
  %v908 = vor.u32 1.1754944e-38, %v907
  %v909 = vsel %vm906, %v908, %v904
  %v910 = vmul.f32 1.0, %v909
  %v911 = vmul.f32 %v891, %v790
  %v912 = vtanh.pop %v847
  %914 = vrot.lane.b32.xlu0 %v912, 78
  %v915 = vpop.permute.xlu0 %914
  %v917 = vmul.f32 %v891, %v915
  %919 = vrot.lane.b32.xlu0 %v917, 25
  %v920 = vpop.permute.xlu0 %919
  %v922 = vadd.f32 %v911, %v920
  %v923 = vmul.f32 %v910, %v802
  %v924 = vtanh.pop %v872
  %926 = vrot.lane.b32.xlu0 %v924, 78
  %v927 = vpop.permute.xlu0 %926
  %v929 = vmul.f32 %v910, %v927
  %931 = vrot.lane.b32.xlu0 %v929, 25
  %v932 = vpop.permute.xlu0 %931
  %v934 = vadd.f32 %v923, %v932
  %v935 = vtanh.pop %v922
  %937 = vrot.lane.b32.xlu0 %v935, 50
  %v938 = vpop.permute.xlu0 %937
  %v940 = vmul.f32 %v891, %v938
  %v941 = vtanh.pop %v934
  %943 = vrot.lane.b32.xlu0 %v941, 50
  %v944 = vpop.permute.xlu0 %943
  %v946 = vmul.f32 %v910, %v944
  %948 = vrot.lane.b32.xlu0 %v940, 53
  %v949 = vpop.permute.xlu0 %948
  %951 = vst.msk [vmem:[#allocation2 + $0x28] sm:$0xff] %vm49, %v949
  %953 = vrot.lane.b32.xlu0 %v946, 78
  %v954 = vpop.permute.xlu0 %953
  %956 = vst.msk [vmem:[#allocation2] sm:$0xff] %vm295, %v954
  %v957 = vld [vmem:[#allocation2] sm:$0xff]
  %v958 = vld [vmem:[#allocation2 + $0x8] sm:$0xff]
  %v959 = vld [vmem:[#allocation2 + $0x10] sm:$0xff]
  %v960 = vld [vmem:[#allocation2 + $0x18] sm:$0xff]
  %v961 = vld [vmem:[#allocation2 + $0x20] sm:$0xff]
  %v962 = vld [vmem:[#allocation2 + $0x28] sm:$0xff]
  %v963 = vld [vmem:[%s7] sm:$0xff]
  %v964 = vld [vmem:[%s7 + $0x8] sm:$0xff]
  %v965 = vld [vmem:[%s7 + $0x10] sm:$0xff]
  %v966 = vld [vmem:[%s7 + $0x18] sm:$0xff]
  %v967 = vld [vmem:[%s7 + $0x20] sm:$0xff]
  %v968 = vld [vmem:[%s7 + $0x28] sm:$0xff]
  %v969 = vld [vmem:[%s7 + $0x30] sm:$0x3]
  %v970 = vld [vmem:[%s8] sm:$0x1]
  %v971 = vld [vmem:[%s9] sm:$0xff]
  %v972 = vld [vmem:[%s9 + $0x8] sm:$0xff]
  %v973 = vld [vmem:[%s9 + $0x10] sm:$0xff]
  %v974 = vld [vmem:[%s9 + $0x18] sm:$0xff]
  %v975 = vld [vmem:[%s9 + $0x20] sm:$0xff]
  %v976 = vld [vmem:[%s9 + $0x28] sm:$0xff]
  %v977 = vld [vmem:[%s9 + $0x30] sm:$0x3]
  %v979 = vperm.slane %v970, 0
  %vm981 = vcmask 408576
  %v983 = vsel %vm981, %v957, 0
  %v986 = vsel %vm981, %v958, 0
  %v989 = vsel %vm981, %v959, 0
  %v992 = vsel %vm981, %v960, 0
  %v995 = vsel %vm981, %v961, 0
  %v998 = vsel %vm981, %v962, 0
  %vm1000 = vcmask 1041408
  %v1002 = vsel %vm1000, %v969, 0
  %1004 = vmatpush.msra.mxu0 0.0
  %1005 = vmatpush.msra.mxu0 0.0
  %1006 = vmatpush.msra.mxu0 0.0
  %1007 = vmatpush.msra.mxu0 0.0
  %1008 = vmatpush.msra.mxu0 0.0
  %1009 = vmatpush.msra.mxu0 0.0
  %1010 = vmatpush.msra.mxu0 0.0
  %1011 = vmatpush.msra.mxu0 0.0
  %1012 = vmatpush.msra.mxu0 0.0
  %1013 = vmatpush.msra.mxu0 %v1002
  %1014 = vmatpush.msra.mxu0 %v968
  %1015 = vmatpush.msra.mxu0 %v967
  %1016 = vmatpush.msra.mxu0 %v966
  %1017 = vmatpush.msra.mxu0 %v965
  %1018 = vmatpush.msra.mxu0 %v964
  %1019 = vmatpush.msra.mxu0 %v963
  %1020 = vmatmul.f32.gmra.mxu0 %v983
  %v1021 = vpop.f32.mrf.mxu0
  %v1022 = vadd.f32 %v979, %v1021
  %1023 = vmatmul.f32.gmra.mxu0 %v986
  %v1024 = vpop.f32.mrf.mxu0
  %v1025 = vadd.f32 %v979, %v1024
  %1026 = vmatmul.f32.gmra.mxu0 %v989
  %v1027 = vpop.f32.mrf.mxu0
  %v1028 = vadd.f32 %v979, %v1027
  %1029 = vmatmul.f32.gmra.mxu0 %v992
  %v1030 = vpop.f32.mrf.mxu0
  %v1031 = vadd.f32 %v979, %v1030
  %1032 = vmatmul.f32.gmra.mxu0 %v995
  %v1033 = vpop.f32.mrf.mxu0
  %v1034 = vadd.f32 %v979, %v1033
  %1035 = vmatmul.f32.gmra.mxu0 %v998
  %v1036 = vpop.f32.mrf.mxu0
  %v1037 = vadd.f32 %v979, %v1036
  %1038 = vdwg.mxu0
  %v1039 = vtanh.pop %v1022
  %v1040 = vtanh.pop %v1025
  %v1041 = vtanh.pop %v1028
  %v1042 = vtanh.pop %v1031
  %v1043 = vtanh.pop %v1034
  %v1044 = vtanh.pop %v1037
  %v1046 = vsel %vm981, %v1039, 0
  %v1049 = vsel %vm981, %v1040, 0
  %v1052 = vsel %vm981, %v1041, 0
  %v1055 = vsel %vm981, %v1042, 0
  %v1058 = vsel %vm981, %v1043, 0
  %v1061 = vsel %vm981, %v1044, 0
  %v1064 = vsel %vm1000, %v977, 0
  %1066 = vmatpush.msra.mxu0 0.0
  %1067 = vmatpush.msra.mxu0 0.0
  %1068 = vmatpush.msra.mxu0 0.0
  %1069 = vmatpush.msra.mxu0 0.0
  %1070 = vmatpush.msra.mxu0 0.0
  %1071 = vmatpush.msra.mxu0 0.0
  %1072 = vmatpush.msra.mxu0 0.0
  %1073 = vmatpush.msra.mxu0 0.0
  %1074 = vmatpush.msra.mxu0 0.0
  %1075 = vmatpush.msra.mxu0 %v1064
  %1076 = vmatpush.msra.mxu0 %v976
  %1077 = vmatpush.msra.mxu0 %v975
  %1078 = vmatpush.msra.mxu0 %v974
  %1079 = vmatpush.msra.mxu0 %v973
  %1080 = vmatpush.msra.mxu0 %v972
  %1081 = vmatpush.msra.mxu0 %v971
  %1082 = vmatmul.f32.gmra.mxu0 %v1046
  %v1083 = vpop.f32.mrf.mxu0
  %v1084 = vadd.f32 0.0, %v1083
  %1085 = vmatmul.f32.gmra.mxu0 %v1049
  %v1086 = vpop.f32.mrf.mxu0
  %v1087 = vadd.f32 0.0, %v1086
  %1088 = vmatmul.f32.gmra.mxu0 %v1052
  %v1089 = vpop.f32.mrf.mxu0
  %v1090 = vadd.f32 0.0, %v1089
  %1091 = vmatmul.f32.gmra.mxu0 %v1055
  %v1092 = vpop.f32.mrf.mxu0
  %v1093 = vadd.f32 0.0, %v1092
  %1094 = vmatmul.f32.gmra.mxu0 %v1058
  %v1095 = vpop.f32.mrf.mxu0
  %v1096 = vadd.f32 0.0, %v1095
  %1097 = vmatmul.f32.gmra.mxu0 %v1061
  %v1098 = vpop.f32.mrf.mxu0
  %v1099 = vadd.f32 0.0, %v1098
  %1100 = vdwg.mxu0
  %v1101 = vmax.f32 %v1084, %v1087
  %v1102 = vmax.f32 %v1101, %v1090
  %v1103 = vmax.f32 %v1102, %v1093
  %v1104 = vmax.f32 %v1103, %v1096
  %v1105 = vmax.f32 %v1104, %v1099
  %v1106 = vsub.f32 %v1084, %v1105
  %v1107 = vmul.f32 %v1106, 1.442695
  %v1108 = vpow.pop %v1107
  %v1109 = vsub.f32 %v1087, %v1105
  %v1110 = vmul.f32 %v1109, 1.442695
  %v1111 = vpow.pop %v1110
  %v1112 = vsub.f32 %v1090, %v1105
  %v1113 = vmul.f32 %v1112, 1.442695
  %v1114 = vpow.pop %v1113
  %v1115 = vsub.f32 %v1093, %v1105
  %v1116 = vmul.f32 %v1115, 1.442695
  %v1117 = vpow.pop %v1116
  %v1118 = vsub.f32 %v1096, %v1105
  %v1119 = vmul.f32 %v1118, 1.442695
  %v1120 = vpow.pop %v1119
  %v1121 = vsub.f32 %v1099, %v1105
  %v1122 = vmul.f32 %v1121, 1.442695
  %v1123 = vpow.pop %v1122
  %v1124 = vadd.f32 %v1108, %v1111
  %v1125 = vadd.f32 %v1124, %v1114
  %v1126 = vadd.f32 %v1125, %v1117
  %v1127 = vadd.f32 %v1126, %v1120
  %v1128 = vadd.f32 %v1127, %v1123
  %v1129 = vrcp.pop %v1128
  %v1130 = vmul.f32 %v1108, %v1129
  %1132 = vset.pattern.permute.xlu0 0
  %1133 = vperm.xlu0 %1132, %v1130
  %v1134 = vpop.permute.xlu0 %1133
  %v1136 = vmul.f32 %v1134, %v957
  %v1137 = vmul.f32 %v1111, %v1129
  %1139 = vset.pattern.permute.xlu0 0
  %1140 = vperm.xlu0 %1139, %v1137
  %v1141 = vpop.permute.xlu0 %1140
  %v1143 = vmul.f32 %v1141, %v958
  %v1144 = vadd.f32 %v1136, %v1143
  %v1145 = vmul.f32 %v1114, %v1129
  %1147 = vset.pattern.permute.xlu0 0
  %1148 = vperm.xlu0 %1147, %v1145
  %v1149 = vpop.permute.xlu0 %1148
  %v1151 = vmul.f32 %v1149, %v959
  %v1152 = vadd.f32 %v1144, %v1151
  %v1153 = vmul.f32 %v1117, %v1129
  %1155 = vset.pattern.permute.xlu0 0
  %1156 = vperm.xlu0 %1155, %v1153
  %v1157 = vpop.permute.xlu0 %1156
  %v1159 = vmul.f32 %v1157, %v960
  %v1160 = vadd.f32 %v1152, %v1159
  %v1161 = vmul.f32 %v1120, %v1129
  %1163 = vset.pattern.permute.xlu0 0
  %1164 = vperm.xlu0 %1163, %v1161
  %v1165 = vpop.permute.xlu0 %1164
  %v1167 = vmul.f32 %v1165, %v961
  %v1168 = vadd.f32 %v1160, %v1167
  %v1169 = vmul.f32 %v1123, %v1129
  %1171 = vset.pattern.permute.xlu0 0
  %1172 = vperm.xlu0 %1171, %v1169
  %v1173 = vpop.permute.xlu0 %1172
  %v1175 = vmul.f32 %v1173, %v962
  %v1176 = vadd.f32 %v1168, %v1175
  %1177 = vst.msk [vmem:[%s10] sm:$0xff] %vm981, %v1176
  // Predicated region
  $region42: #{forward.5} parent=0 // pred_check
    _
  $region43: #{forward.5} parent=0 // pred_check_branch
    %1179 = sbr.rel (0) target = $region45
  $region44: #{forward.5} parent=0 // pred_region
    _
  $region45: #{forward.5} parent=0 // pred_fallthru
    _
  // Predicated region
  $region46: #{forward.5} parent=0 // pred_check
    _
  $region47: #{forward.5} parent=0 // pred_check_branch
    %1181 = sbr.rel (0) target = $region49
  $region48: #{forward.5} parent=0 // pred_region
    _
  $region49: #{forward.5} parent=0 // pred_fallthru
    _

// kernel: forward.9
$region0: #{forward.9}
  #allocation0 [shape = 'u32[]', space=smem, size = 0x4, offset = 0x4, fixed_abs, tag = 'smem constant byte address 0x4 - core index']
  #allocation1 [shape = 'u32[72,128]{1,0:T(1,128)}', space=vmem, size = 0x9000, scoped, tag = 'internal scratch']
  #allocation2 [shape = 'f32[1,1]{1,0:T(1,128)S(1)}', space=vmem, size = 0x200, scoped, tag = 'scoped memory for forward.9']
  %s0 = inlined_call_operand.vmem [shape: f32[16,50], index: 0, kind: input, shape index: {}]
  %s1 = inlined_call_operand.vmem [shape: f32[50,50], index: 1, kind: input, shape index: {}]
  %s2 = inlined_call_operand.vmem [shape: f32[1,50], index: 2, kind: input, shape index: {}]
  %s3 = inlined_call_operand.vmem [shape: f32[50,1], index: 3, kind: input, shape index: {}]
  %s4 = inlined_call_operand.vmem [shape: f32[50,1], index: 4, kind: input, shape index: {}]
  %s5 = inlined_call_operand.<no memory space> [shape: f32[1,1], index: 5, kind: input, shape index: {}]
  %s6 = inlined_call_operand.hbm [shape: f32[8,50], index: 6, kind: output, shape index: {0}]
  %s7 = inlined_call_operand.vmem [shape: f32[8,1], index: 7, kind: output, shape index: {1}]
  %8 = xla_tuple %s6, %s7
  %s9 = sld [smem:[#allocation0]]
  $region42: #{forward.9} parent=0
    _
  %s11 = ssub.s32 1, %s9
  %s12 = scalar_select 0, %s11, %s9
  %v13 = vstv %s5
  %14 = vst [vmem:[#allocation2] sm:$0x1] %v13
  $region1: #{forward.9} parent=0
    #allocation3 [shape = 'u8[4096]{0}', space=vmem, size = 0x1000, scoped, tag = 'output window, operand 0, single buffered']
    #allocation4 [shape = 's32[1]{0}', space=sflag, size = 0x4, scoped, tag = 'scoped memory for forward.9']
    %15 = vsyncpa [#allocation4], 0
    // Predicated region
    $region2: #{forward.9} parent=1 // pred_check
      _
    $region3: #{forward.9} parent=1 // pred_check_branch
      %17 = sbr.rel (0) target = $region5
    $region4: #{forward.9} parent=1 // pred_region
      _
    $region5: #{forward.9} parent=1 // pred_fallthru
      _
    // Predicated region
    $region6: #{forward.9} parent=1 // pred_check
      _
    $region7: #{forward.9} parent=1 // pred_check_branch
      %19 = sbr.rel (0) target = $region9
    $region8: #{forward.9} parent=1 // pred_region
      _
    $region9: #{forward.9} parent=1 // pred_fallthru
      _
    // Predicated region
    $region10: #{forward.9} parent=1 // pred_check
      _
    $region11: #{forward.9} parent=1 // pred_check_branch
      %21 = sbr.rel (0) target = $region13
    $region12: #{forward.9} parent=1 // pred_region
      _
    $region13: #{forward.9} parent=1 // pred_fallthru
      _
    // Predicated region
    $region14: #{forward.9} parent=1 // pred_check
      _
    $region15: #{forward.9} parent=1 // pred_check_branch
      %23 = sbr.rel (0) target = $region17
    $region16: #{forward.9} parent=1 // pred_region
      _
    $region17: #{forward.9} parent=1 // pred_fallthru
      _
    // Predicated region
    $region18: #{forward.9} parent=1 // pred_check
      _
    $region19: #{forward.9} parent=1 // pred_check_branch
      %25 = sbr.rel (0) target = $region21
    $region20: #{forward.9} parent=1 // pred_region
      _
    $region21: #{forward.9} parent=1 // pred_fallthru
      _
    // Predicated region
    $region22: #{forward.9} parent=1 // pred_check
      _
    $region23: #{forward.9} parent=1 // pred_check_branch
      %27 = sbr.rel (0) target = $region25
    $region24: #{forward.9} parent=1 // pred_region
      _
    $region25: #{forward.9} parent=1 // pred_fallthru
      _
    %v28 = vld [vmem:[%s0] sm:$0xff]
    %v29 = vld [vmem:[%s0 + $0x8] sm:$0xff]
    %v30 = vld [vmem:[%s1] sm:$0xff]
    %v31 = vld [vmem:[%s1 + $0x8] sm:$0xff]
    %v32 = vld [vmem:[%s1 + $0x10] sm:$0xff]
    %v33 = vld [vmem:[%s1 + $0x18] sm:$0xff]
    %v34 = vld [vmem:[%s1 + $0x20] sm:$0xff]
    %v35 = vld [vmem:[%s1 + $0x28] sm:$0xff]
    %v36 = vld [vmem:[%s1 + $0x30] sm:$0x3]
    %v37 = vld [vmem:[%s2] sm:$0x1]
    %v38 = vld [vmem:[%s3] sm:$0xff]
    %v39 = vld [vmem:[%s3 + $0x8] sm:$0xff]
    %v40 = vld [vmem:[%s3 + $0x10] sm:$0xff]
    %v41 = vld [vmem:[%s3 + $0x18] sm:$0xff]
    %v42 = vld [vmem:[%s3 + $0x20] sm:$0xff]
    %v43 = vld [vmem:[%s3 + $0x28] sm:$0xff]
    %v44 = vld [vmem:[%s3 + $0x30] sm:$0x3]
    %v46 = vperm.slane %v37, 0
    %vm48 = vcmask 408576
    %v50 = vsel %vm48, %v28, 0
    %v53 = vsel %vm48, %v29, 0
    %vm55 = vcmask 1041408
    %v57 = vsel %vm55, %v36, 0
    %59 = vmatpush.msra.mxu0 0.0
    %60 = vmatpush.msra.mxu0 0.0
    %61 = vmatpush.msra.mxu0 0.0
    %62 = vmatpush.msra.mxu0 0.0
    %63 = vmatpush.msra.mxu0 0.0
    %64 = vmatpush.msra.mxu0 0.0
    %65 = vmatpush.msra.mxu0 0.0
    %66 = vmatpush.msra.mxu0 0.0
    %67 = vmatpush.msra.mxu0 0.0
    %68 = vmatpush.msra.mxu0 %v57
    %69 = vmatpush.msra.mxu0 %v35
    %70 = vmatpush.msra.mxu0 %v34
    %71 = vmatpush.msra.mxu0 %v33
    %72 = vmatpush.msra.mxu0 %v32
    %73 = vmatpush.msra.mxu0 %v31
    %74 = vmatpush.msra.mxu0 %v30
    %75 = vmatmul.f32.gmra.mxu0 %v50
    %v76 = vpop.f32.mrf.mxu0
    %v77 = vadd.f32 %v46, %v76
    %78 = vmatmul.f32.gmra.mxu0 %v53
    %v79 = vpop.f32.mrf.mxu0
    %v80 = vadd.f32 %v46, %v79
    %81 = vdwg.mxu0
    %v82 = vtanh.pop %v77
    %v83 = vtanh.pop %v80
    %v85 = vsel %vm48, %v82, 0
    %v88 = vsel %vm48, %v83, 0
    %v91 = vsel %vm55, %v44, 0
    %93 = vmatpush.msra.mxu0 0.0
    %94 = vmatpush.msra.mxu0 0.0
    %95 = vmatpush.msra.mxu0 0.0
    %96 = vmatpush.msra.mxu0 0.0
    %97 = vmatpush.msra.mxu0 0.0
    %98 = vmatpush.msra.mxu0 0.0
    %99 = vmatpush.msra.mxu0 0.0
    %100 = vmatpush.msra.mxu0 0.0
    %101 = vmatpush.msra.mxu0 0.0
    %102 = vmatpush.msra.mxu0 %v91
    %103 = vmatpush.msra.mxu0 %v43
    %104 = vmatpush.msra.mxu0 %v42
    %105 = vmatpush.msra.mxu0 %v41
    %106 = vmatpush.msra.mxu0 %v40
    %107 = vmatpush.msra.mxu0 %v39
    %108 = vmatpush.msra.mxu0 %v38
    %109 = vmatmul.f32.gmra.mxu0 %v85
    %v110 = vpop.f32.mrf.mxu0
    %v111 = vadd.f32 0.0, %v110
    %112 = vmatmul.f32.gmra.mxu0 %v88
    %v113 = vpop.f32.mrf.mxu0
    %v114 = vadd.f32 0.0, %v113
    %115 = vdwg.mxu0
    %v116 = vmax.f32 %v111, %v114
    %v117 = vsub.f32 %v111, %v116
    %v118 = vmul.f32 %v117, 1.442695
    %v119 = vpow.pop %v118
    %v120 = vsub.f32 %v114, %v116
    %v121 = vmul.f32 %v120, 1.442695
    %v122 = vpow.pop %v121
    %v123 = vadd.f32 %v119, %v122
    %v124 = vrcp.pop %v123
    %v125 = vmul.f32 %v119, %v124
    %127 = vset.pattern.permute.xlu0 0
    %128 = vperm.xlu0 %127, %v125
    %v129 = vpop.permute.xlu0 %128
    %v131 = vmul.f32 %v129, %v28
    %v132 = vmul.f32 %v122, %v124
    %134 = vset.pattern.permute.xlu0 0
    %135 = vperm.xlu0 %134, %v132
    %v136 = vpop.permute.xlu0 %135
    %v138 = vmul.f32 %v136, %v29
    %v139 = vadd.f32 %v131, %v138
    %140 = vst.msk [vmem:[#allocation3] sm:$0xff] %vm48, %v139
    %v141 = vld [vmem:[%s4] sm:$0xff]
    %v142 = vld [vmem:[%s4 + $0x8] sm:$0xff]
    %v143 = vld [vmem:[%s4 + $0x10] sm:$0xff]
    %v144 = vld [vmem:[%s4 + $0x18] sm:$0xff]
    %v145 = vld [vmem:[%s4 + $0x20] sm:$0xff]
    %v146 = vld [vmem:[%s4 + $0x28] sm:$0xff]
    %v147 = vld [vmem:[%s4 + $0x30] sm:$0x3]
    %v148 = vld [vmem:[#allocation2] sm:$0x1]
    %v150 = vperm.slane %v148, 0
    %v153 = vsel %vm48, %v139, 0
    %v156 = vsel %vm55, %v147, 0
    %158 = vmatpush.msra.mxu0 0.0
    %159 = vmatpush.msra.mxu0 0.0
    %160 = vmatpush.msra.mxu0 0.0
    %161 = vmatpush.msra.mxu0 0.0
    %162 = vmatpush.msra.mxu0 0.0
    %163 = vmatpush.msra.mxu0 0.0
    %164 = vmatpush.msra.mxu0 0.0
    %165 = vmatpush.msra.mxu0 0.0
    %166 = vmatpush.msra.mxu0 0.0
    %167 = vmatpush.msra.mxu0 %v156
    %168 = vmatpush.msra.mxu0 %v146
    %169 = vmatpush.msra.mxu0 %v145
    %170 = vmatpush.msra.mxu0 %v144
    %171 = vmatpush.msra.mxu0 %v143
    %172 = vmatpush.msra.mxu0 %v142
    %173 = vmatpush.msra.mxu0 %v141
    %174 = vmatmul.f32.gmra.mxu0 %v153
    %v175 = vpop.f32.mrf.mxu0
    %v176 = vadd.f32 %v150, %v175
    %177 = vdwg.mxu0
    %v178 = vxor.u32 %v176, 2147483648
    %v179 = vmul.f32 %v178, 1.442695
    %v180 = vpow.pop %v179
    %v181 = vadd.f32 %v180, 1.0
    %v182 = vrcp.pop %v181
    %v183 = vmul.f32 %v181, %v182
    %v184 = vsub.f32 1.0, %v183
    %v185 = vmul.f32 %v182, %v184
    %v186 = vadd.f32 %v182, %v185
    %vm187 = vweird.f32 %v181
    %vm188 = vweird.f32 %v182
    %vm189 = vmor %vm187, %vm188
    %v190 = vsel %vm189, %v182, %v186
    %v191 = vand.u32 2147483647, %v181
    %vm192 = vcmp.eq.f32.partialorder %v191, 8.507059e+37
    %v193 = vand.u32 %v181, 2147483648
    %v194 = vor.u32 1.1754944e-38, %v193
    %v195 = vsel %vm192, %v194, %v190
    %v196 = vmul.f32 1.0, %v195
    %vm197 = vcmask 7168
    %198 = vst.msk [vmem:[%s7] sm:$0xff] %vm197, %v196
    // Predicated region
    $region26: #{forward.9} parent=1 // pred_check
      _
    $region27: #{forward.9} parent=1 // pred_check_branch
      %200 = sbr.rel (0) target = $region29
    $region28: #{forward.9} parent=1 // pred_region
      %202 = vsyncadd [#allocation4], 0
      %s204 = sshll.u32 [#allocation3], 4
      %s205 = int_to_ptr.vmem [resolvable:$true] %s204
      %s206 = sshll.u32 %s6, 4
      %s207 = int_to_ptr.hbm [resolvable:$true] %s206
      %209 = dma.vmem_to_hbm [thread:$0]  %s205, 128, %s207, [#allocation4]
    $region29: #{forward.9} parent=1 // pred_fallthru
      _
    // Predicated region
    $region30: #{forward.9} parent=1 // pred_check
      _
    $region31: #{forward.9} parent=1 // pred_check_branch
      %211 = sbr.rel (0) target = $region33
    $region32: #{forward.9} parent=1 // pred_region
      _
    $region33: #{forward.9} parent=1 // pred_fallthru
      _
    // Predicated region
    $region34: #{forward.9} parent=1 // pred_check
      _
    $region35: #{forward.9} parent=1 // pred_check_branch
      %213 = sbr.rel (0) target = $region37
    $region36: #{forward.9} parent=1 // pred_region
      %215 = dma.done [#allocation4], 128
    $region37: #{forward.9} parent=1 // pred_fallthru
      _
    // Predicated region
    $region38: #{forward.9} parent=1 // pred_check
      _
    $region39: #{forward.9} parent=1 // pred_check_branch
      %217 = sbr.rel (0) target = $region41
    $region40: #{forward.9} parent=1 // pred_region
      _
    $region41: #{forward.9} parent=1 // pred_fallthru
      _
    %218 = vsyncpa [#allocation4], 1

</llo_original>
